<compile_context>
chip_gen: v5e
topology: v5e:2x2
jax: 0.10.0
libtpu: 0.0.40
codegen_flags: <defaults>
</compile_context>

<pallas_src>
import math

import jax
import jax.numpy as jnp
from jax.experimental import pallas as pl
from jax.experimental.pallas import tpu as pltpu

BN_EPS = 1e-5
MXU_DTYPE = jnp.bfloat16            # MXU operand / HBM activation dtype
VMEM_LIMIT = 48 * 1024 * 1024       # headroom above the 32 MiB scoped default,
                                    # still below v7x's 64 MiB physical per TC


def _choose_tile(P, max_tile):
    """Return (point_tile, padded_point_count).

    Single tile (P rounded up to a multiple of 8) when P <= max_tile; otherwise
    tiles of size max_tile (must be a multiple of 128 so the lane-dense
    transposed class output block stays legal) with P padded up to a multiple.
    """
    if P <= max_tile:
        tp = ((P + 7) // 8) * 8
        return tp, tp
    assert max_tile % 128 == 0, "max_tile must be a multiple of 128 when tiling"
    n = (P + max_tile - 1) // max_tile
    return max_tile, n * max_tile


# ---------------- Kernel A: fused per-view MLP + convto64 accumulation ----------------

def _view_mlp_kernel(x_ref, w1_ref, s1_ref, t1_ref, w2_ref, s2_ref, t2_ref,
                     w3_ref, s3_ref, t3_ref, wto_ref, sto_ref, tto_ref, pf_ref):
    V = w1_ref.shape[0]
    tp = x_ref.shape[2]
    acc = jnp.zeros((tp, 64), jnp.float32)
    # Views unrolled in-body: weights have constant index_maps so they are
    # fetched once and stay VMEM-resident; the 1024*V concat is contracted
    # on the fly into a 64-wide f32 accumulator.
    for r in range(V):
        # 3 -> 64
        h = jnp.dot(x_ref[0, r], w1_ref[r], preferred_element_type=jnp.float32)
        h = jnp.maximum(h * s1_ref[r] + t1_ref[r], 0.0)
        # 64 -> 128
        h = jnp.dot(h.astype(MXU_DTYPE), w2_ref[r],
                    preferred_element_type=jnp.float32)
        h = jnp.maximum(h * s2_ref[r] + t2_ref[r], 0.0)
        # 128 -> 1024 (no ReLU, matches bn3(conv3(x)))
        h = jnp.dot(h.astype(MXU_DTYPE), w3_ref[r],
                    preferred_element_type=jnp.float32)
        h = h * s3_ref[r] + t3_ref[r]
        # convto64 partial contraction for this view (accumulates the concat)
        acc = acc + jnp.dot(h.astype(MXU_DTYPE), wto_ref[r],
                            preferred_element_type=jnp.float32)
    y = acc * sto_ref[...] + tto_ref[...]
    pf_ref[0] = jnp.maximum(y, 0.0).astype(pf_ref.dtype)


def fused_view_mlp(x, vp, sto, tto, *, tp):
    B, V, P, _ = x.shape
    n_pt = P // tp
    return pl.pallas_call(
        _view_mlp_kernel,
        out_shape=jax.ShapeDtypeStruct((B, P, 64), MXU_DTYPE),
        grid=(B, n_pt),
        in_specs=[
            pl.BlockSpec((1, V, tp, 3), lambda b, p: (b, 0, p, 0)),
            pl.BlockSpec((V, 3, 64), lambda b, p: (0, 0, 0)),
            pl.BlockSpec((V, 1, 64), lambda b, p: (0, 0, 0)),
            pl.BlockSpec((V, 1, 64), lambda b, p: (0, 0, 0)),
            pl.BlockSpec((V, 64, 128), lambda b, p: (0, 0, 0)),
            pl.BlockSpec((V, 1, 128), lambda b, p: (0, 0, 0)),
            pl.BlockSpec((V, 1, 128), lambda b, p: (0, 0, 0)),
            pl.BlockSpec((V, 128, 1024), lambda b, p: (0, 0, 0)),
            pl.BlockSpec((V, 1, 1024), lambda b, p: (0, 0, 0)),
            pl.BlockSpec((V, 1, 1024), lambda b, p: (0, 0, 0)),
            pl.BlockSpec((V, 1024, 64), lambda b, p: (0, 0, 0)),
            pl.BlockSpec((1, 64), lambda b, p: (0, 0)),
            pl.BlockSpec((1, 64), lambda b, p: (0, 0)),
        ],
        out_specs=pl.BlockSpec((1, tp, 64), lambda b, p: (b, p, 0)),
        compiler_params=pltpu.CompilerParams(
            dimension_semantics=("parallel", "parallel"),
            vmem_limit_bytes=VMEM_LIMIT),
    )(x, vp["w1"], vp["s1"], vp["t1"], vp["w2"], vp["s2"], vp["t2"],
      vp["w3"], vp["s3"], vp["t3"], vp["wto64"], sto, tto)


# ---------------- Kernel B: feat 64->128->1024 + masked max over points ----------------

def _make_feat_global_kernel(n_valid, tp, p_pad):
    mask_needed = n_valid < p_pad

    def kernel(pf_ref, w2_ref, s2_ref, t2_ref, w3_ref, s3_ref, t3_ref,
               g_ref, mx_ref):
        p = pl.program_id(1)

        @pl.when(p == 0)
        def _():
            mx_ref[...] = jnp.full(mx_ref.shape, -jnp.inf, mx_ref.dtype)

        h = jnp.dot(pf_ref[0], w2_ref[...], preferred_element_type=jnp.float32)
        h = jnp.maximum(h * s2_ref[...] + t2_ref[...], 0.0)
        h = jnp.dot(h.astype(MXU_DTYPE), w3_ref[...],
                    preferred_element_type=jnp.float32)
        h = h * s3_ref[...] + t3_ref[...]
        if mask_needed:
            # Padded point rows must not contaminate the global max.
            row = jax.lax.broadcasted_iota(jnp.int32, (tp, 1), 0) + p * tp
            h = jnp.where(row < n_valid, h, -jnp.inf)
        mx_ref[...] = jnp.maximum(mx_ref[...], jnp.max(h, axis=0, keepdims=True))

        @pl.when(p == pl.num_programs(1) - 1)
        def _():
            g_ref[0] = mx_ref[...]

    return kernel


def fused_feat_global(pf, fp, *, tp, n_valid):
    B, P_pad, _ = pf.shape
    n_pt = P_pad // tp
    kernel = _make_feat_global_kernel(n_valid, tp, P_pad)
    return pl.pallas_call(
        kernel,
        out_shape=jax.ShapeDtypeStruct((B, 1, 1024), jnp.float32),
        grid=(B, n_pt),
        in_specs=[
            pl.BlockSpec((1, tp, 64), lambda b, p: (b, p, 0)),
            pl.BlockSpec((64, 128), lambda b, p: (0, 0)),
            pl.BlockSpec((1, 128), lambda b, p: (0, 0)),
            pl.BlockSpec((1, 128), lambda b, p: (0, 0)),
            pl.BlockSpec((128, 1024), lambda b, p: (0, 0)),
            pl.BlockSpec((1, 1024), lambda b, p: (0, 0)),
            pl.BlockSpec((1, 1024), lambda b, p: (0, 0)),
        ],
        out_specs=pl.BlockSpec((1, 1, 1024), lambda b, p: (b, 0, 0)),
        scratch_shapes=[pltpu.VMEM((1, 1024), jnp.float32)],
        compiler_params=pltpu.CompilerParams(
            dimension_semantics=("parallel", "arbitrary"),
            vmem_limit_bytes=VMEM_LIMIT),
    )(pf, fp["w2"], fp["s2"], fp["t2"], fp["w3"], fp["s3"], fp["t3"])


# ---------------- Kernel C: fused classification head + log-softmax (lane-dense out) ------

def _cls_head_kernel(pf_ref, gb_ref, w1p_ref, s1_ref, t1_ref, w2_ref, s2_ref,
                     t2_ref, w3_ref, s3_ref, t3_ref, w4t_ref, b4_ref, o_ref):
    # conv1(cat[g, pointfeat]) == pointfeat @ W1[1024:] + g @ W1[:1024]; the
    # global part is the precomputed per-batch bias gb (constant over points).
    y = jnp.dot(pf_ref[0], w1p_ref[...], preferred_element_type=jnp.float32)
    y = jnp.maximum((y + gb_ref[0]) * s1_ref[...] + t1_ref[...], 0.0)     # (TP,512)
    y = jnp.dot(y.astype(MXU_DTYPE), w2_ref[...], preferred_element_type=jnp.float32)
    y = jnp.maximum(y * s2_ref[...] + t2_ref[...], 0.0)                   # (TP,256)
    y = jnp.dot(y.astype(MXU_DTYPE), w3_ref[...], preferred_element_type=jnp.float32)
    y = jnp.maximum(y * s3_ref[...] + t3_ref[...], 0.0)                   # (TP,128)
    # Last layer computed transposed so the only HBM write of this kernel is
    # lane-dense: lanes carry the point axis, not the k-wide class axis.
    yt = jax.lax.dot_general(w4t_ref[...], y.astype(MXU_DTYPE),
                             (((1,), (1,)), ((), ())),
                             preferred_element_type=jnp.float32)          # (k, TP)
    yt = yt + b4_ref[...]
    m = jnp.max(yt, axis=0, keepdims=True)
    z = yt - m
    lse = jnp.log(jnp.sum(jnp.exp(z), axis=0, keepdims=True))
    o_ref[0] = (z - lse).astype(o_ref.dtype)


def fused_cls_head(pf, gb, cp, *, tp, k):
    B, P_pad, _ = pf.shape
    n_pt = P_pad // tp
    return pl.pallas_call(
        _cls_head_kernel,
        out_shape=jax.ShapeDtypeStruct((B, k, P_pad), jnp.float32),
        grid=(B, n_pt),
        in_specs=[
            pl.BlockSpec((1, tp, 64), lambda b, p: (b, p, 0)),
            pl.BlockSpec((1, 1, 512), lambda b, p: (b, 0, 0)),
            pl.BlockSpec((64, 512), lambda b, p: (0, 0)),
            pl.BlockSpec((1, 512), lambda b, p: (0, 0)),
            pl.BlockSpec((1, 512), lambda b, p: (0, 0)),
            pl.BlockSpec((512, 256), lambda b, p: (0, 0)),
            pl.BlockSpec((1, 256), lambda b, p: (0, 0)),
            pl.BlockSpec((1, 256), lambda b, p: (0, 0)),
            pl.BlockSpec((256, 128), lambda b, p: (0, 0)),
            pl.BlockSpec((1, 128), lambda b, p: (0, 0)),
            pl.BlockSpec((1, 128), lambda b, p: (0, 0)),
            pl.BlockSpec((k, 128), lambda b, p: (0, 0)),
            pl.BlockSpec((k, 1), lambda b, p: (0, 0)),
        ],
        out_specs=pl.BlockSpec((1, k, tp), lambda b, p: (b, 0, p)),
        compiler_params=pltpu.CompilerParams(
            dimension_semantics=("parallel", "parallel"),
            vmem_limit_bytes=VMEM_LIMIT),
    )(pf, gb, cp["w1p"], cp["s1"], cp["t1"], cp["w2"], cp["s2"], cp["t2"],
      cp["w3"], cp["s3"], cp["t3"], cp["w4t"], cp["b4"])


# ---------------- Parameters (deterministic, synthetic) ----------------

def _init_conv(key, cin, cout):
    k1, k2 = jax.random.split(key)
    bound = 1.0 / math.sqrt(cin)
    w = jax.random.uniform(k1, (cin, cout), jnp.float32, -bound, bound)
    b = jax.random.uniform(k2, (cout,), jnp.float32, -bound, bound)
    return w, b


def _fold_bn(conv_bias, cout):
    # Fresh BatchNorm1d in eval mode: gamma=1, beta=0, running_mean=0, var=1.
    gamma = jnp.ones((cout,), jnp.float32)
    beta = jnp.zeros((cout,), jnp.float32)
    mean = jnp.zeros((cout,), jnp.float32)
    var = jnp.ones((cout,), jnp.float32)
    scale = gamma / jnp.sqrt(var + BN_EPS)
    shift = beta + (conv_bias - mean) * scale
    return scale.reshape(1, -1), shift.reshape(1, -1)


def init_params(key, views=2, k=2):
    keys = jax.random.split(key, 3 * views + 7)
    ki = 0
    # per-view N_Views_MLP_for_3d: 3 -> 64 -> 128 -> 1024 (stacked on a view axis)
    w1s, s1s, t1s, w2s, s2s, t2s, w3s, s3s, t3s = ([] for _ in range(9))
    for _ in range(views):
        w, b = _init_conv(keys[ki], 3, 64); ki += 1
        s, t = _fold_bn(b, 64); w1s.append(w); s1s.append(s); t1s.append(t)
        w, b = _init_conv(keys[ki], 64, 128); ki += 1
        s, t = _fold_bn(b, 128); w2s.append(w); s2s.append(s); t2s.append(t)
        w, b = _init_conv(keys[ki], 128, 1024); ki += 1
        s, t = _fold_bn(b, 1024); w3s.append(w); s3s.append(s); t3s.append(t)
    view = {
        "w1": jnp.stack(w1s).astype(MXU_DTYPE), "s1": jnp.stack(s1s), "t1": jnp.stack(t1s),
        "w2": jnp.stack(w2s).astype(MXU_DTYPE), "s2": jnp.stack(s2s), "t2": jnp.stack(t2s),
        "w3": jnp.stack(w3s).astype(MXU_DTYPE), "s3": jnp.stack(s3s), "t3": jnp.stack(t3s),
    }
    # PointNetfeat: convto64 (1024*views -> 64) split per view for the fused accumulation.
    w, b = _init_conv(keys[ki], 1024 * views, 64); ki += 1
    view["wto64"] = w.reshape(views, 1024, 64).astype(MXU_DTYPE)
    feat = {}
    feat["sto64"], feat["tto64"] = _fold_bn(b, 64)
    w, b = _init_conv(keys[ki], 64, 128); ki += 1
    feat["w2"] = w.astype(MXU_DTYPE); feat["s2"], feat["t2"] = _fold_bn(b, 128)
    w, b = _init_conv(keys[ki], 128, 1024); ki += 1
    feat["w3"] = w.astype(MXU_DTYPE); feat["s3"], feat["t3"] = _fold_bn(b, 1024)
    # Head: conv1 (1088->512) split into global[:1024] and pointfeat[1024:] parts.
    cls = {}
    w, b = _init_conv(keys[ki], 1088, 512); ki += 1
    cls["w1g"] = w[:1024].astype(MXU_DTYPE)
    cls["w1p"] = w[1024:].astype(MXU_DTYPE)
    cls["s1"], cls["t1"] = _fold_bn(b, 512)
    w, b = _init_conv(keys[ki], 512, 256); ki += 1
    cls["w2"] = w.astype(MXU_DTYPE); cls["s2"], cls["t2"] = _fold_bn(b, 256)
    w, b = _init_conv(keys[ki], 256, 128); ki += 1
    cls["w3"] = w.astype(MXU_DTYPE); cls["s3"], cls["t3"] = _fold_bn(b, 128)
    w, b = _init_conv(keys[ki], 128, k); ki += 1
    cls["w4t"] = jnp.transpose(w).astype(MXU_DTYPE)   # (k, 128), for lane-dense out
    cls["b4"] = b.reshape(-1, 1)                      # (k, 1)
    return {"views": views, "k": k, "view": view, "feat": feat, "cls": cls}


# ---------------- Forward pass ----------------

def pointnet_densecls_forward(params, x, *, max_tile=1024):
    """x: (B, views, n_pts, 3) float32 -> log-probs (B, n_pts, k)."""
    B, V, P, _ = x.shape
    k = params["k"]
    tp, p_pad = _choose_tile(P, max_tile)
    if p_pad != P:
        x = jnp.pad(x, ((0, 0), (0, 0), (0, p_pad - P), (0, 0)))
    xb = x.astype(MXU_DTYPE)
    pf = fused_view_mlp(xb, params["view"], params["feat"]["sto64"],
                        params["feat"]["tto64"], tp=tp)            # (B, p_pad, 64) bf16
    g = fused_feat_global(pf, params["feat"], tp=tp, n_valid=P)    # (B, 1, 1024) f32
    # M=1 projection of the global feature: cheaper as a plain batched XLA
    # matmul than keeping the (1024,512) weight resident inside Kernel B.
    gb = jax.lax.dot_general(g.astype(MXU_DTYPE), params["cls"]["w1g"],
                             (((2,), (0,)), ((), ())),
                             preferred_element_type=jnp.float32)   # (B, 1, 512)
    out_t = fused_cls_head(pf, gb, params["cls"], tp=tp, k=k)      # (B, k, p_pad)
    return jnp.transpose(out_t[:, :, :P], (0, 2, 1))               # (B, P, k)


# ---------------- Pure-JAX reference (same bf16 casts) for validation ----------------

def _mm(a, w):
    return jax.lax.dot_general(a.astype(MXU_DTYPE), w,
                               (((a.ndim - 1,), (0,)), ((), ())),
                               preferred_element_type=jnp.float32)


def reference_forward(params, x):
    B, V, P, _ = x.shape
    vp, fp, cp = params["view"], params["feat"], params["cls"]
    xb = x.astype(MXU_DTYPE)
    acc = jnp.zeros((B, P, 64), jnp.float32)
    for r in range(V):
        h = _mm(xb[:, r], vp["w1"][r])
        h = jnp.maximum(h * vp["s1"][r] + vp["t1"][r], 0.0)
        h = _mm(h, vp["w2"][r])
        h = jnp.maximum(h * vp["s2"][r] + vp["t2"][r], 0.0)
        h = _mm(h, vp["w3"][r])
        h = h * vp["s3"][r] + vp["t3"][r]
        acc = acc + _mm(h, vp["wto64"][r])
    pf = jnp.maximum(acc * fp["sto64"] + fp["tto64"], 0.0).astype(MXU_DTYPE)
    h = _mm(pf, fp["w2"])
    h = jnp.maximum(h * fp["s2"] + fp["t2"], 0.0)
    h = _mm(h, fp["w3"])
    h = h * fp["s3"] + fp["t3"]
    g = jnp.max(h, axis=1, keepdims=True)                    # (B,1,1024)
    gb = _mm(g, cp["w1g"])                                   # (B,1,512)
    y = _mm(pf, cp["w1p"]) + gb
    y = jnp.maximum(y * cp["s1"] + cp["t1"], 0.0)
    y = _mm(y, cp["w2"]); y = jnp.maximum(y * cp["s2"] + cp["t2"], 0.0)
    y = _mm(y, cp["w3"]); y = jnp.maximum(y * cp["s3"] + cp["t3"], 0.0)
    y = _mm(y, jnp.transpose(cp["w4t"])) + cp["b4"].reshape(1, 1, -1)
    return jax.nn.log_softmax(y, axis=-1)


if __name__ == "__main__":
    B, V, P, K = 2, 2, 200, 2   # batch, views, points per view, classes
    key = jax.random.PRNGKey(0)
    pkey, xkey = jax.random.split(key)
    params = init_params(pkey, views=V, k=K)
    x = jax.random.normal(xkey, (B, V, P, 3), jnp.float32)
    ref = reference_forward(params, x)

    # Multi-tile path: max_tile=128 -> P padded 200 -> 256, two point tiles,
    # exercising the max accumulation across tiles and the padded-row masking.
    out = pointnet_densecls_forward(params, x, max_tile=128)
    out = jax.block_until_ready(out)
    assert out.shape == (B, P, K), out.shape
    assert bool(jnp.all(jnp.isfinite(out)))
    assert bool(jnp.allclose(out, ref, rtol=2e-2, atol=2e-2)), \
        float(jnp.max(jnp.abs(out - ref)))

    # Single-tile path (default max_tile): P rounded up to 208, one tile.
    out2 = pointnet_densecls_forward(params, x)
    out2 = jax.block_until_ready(out2)
    assert out2.shape == (B, P, K), out2.shape
    assert bool(jnp.allclose(out2, ref, rtol=2e-2, atol=2e-2)), \
        float(jnp.max(jnp.abs(out2 - ref)))

    print("KERNEL_OK")
</pallas_src>

<mosaic_0001>
module attributes {stable_mosaic.version = 11 : i64} {
  func.func @_view_mlp_kernel(%arg0: i32, %arg1: i32, %arg2: memref<1x2x128x3xbf16, #tpu.memory_space<vmem>>, %arg3: memref<2x3x64xbf16, #tpu.memory_space<vmem>>, %arg4: memref<2x1x64xf32, #tpu.memory_space<vmem>>, %arg5: memref<2x1x64xf32, #tpu.memory_space<vmem>>, %arg6: memref<2x64x128xbf16, #tpu.memory_space<vmem>>, %arg7: memref<2x1x128xf32, #tpu.memory_space<vmem>>, %arg8: memref<2x1x128xf32, #tpu.memory_space<vmem>>, %arg9: memref<2x128x1024xbf16, #tpu.memory_space<vmem>>, %arg10: memref<2x1x1024xf32, #tpu.memory_space<vmem>>, %arg11: memref<2x1x1024xf32, #tpu.memory_space<vmem>>, %arg12: memref<2x1024x64xbf16, #tpu.memory_space<vmem>>, %arg13: memref<1x64xf32, #tpu.memory_space<vmem>>, %arg14: memref<1x64xf32, #tpu.memory_space<vmem>>, %arg15: memref<1x128x64xbf16, #tpu.memory_space<vmem>>) attributes {dimension_semantics = [#tpu.dimension_semantics<parallel>, #tpu.dimension_semantics<parallel>], iteration_bounds = array<i64: 2, 2>, scalar_prefetch = 0 : i64, scratch_operands = 0 : i64, tpu.core_type = #tpu.core_type<tc>, window_params = [{transform_indices = @transform_0, window_bounds = array<i64: 1, 2, 128, 3>}, {pipeline_mode = #tpu.pipeline_mode<synchronous>, transform_indices = @transform_1, window_bounds = array<i64: 2, 3, 64>}, {pipeline_mode = #tpu.pipeline_mode<synchronous>, transform_indices = @transform_2, window_bounds = array<i64: 2, 1, 64>}, {pipeline_mode = #tpu.pipeline_mode<synchronous>, transform_indices = @transform_3, window_bounds = array<i64: 2, 1, 64>}, {pipeline_mode = #tpu.pipeline_mode<synchronous>, transform_indices = @transform_4, window_bounds = array<i64: 2, 64, 128>}, {pipeline_mode = #tpu.pipeline_mode<synchronous>, transform_indices = @transform_5, window_bounds = array<i64: 2, 1, 128>}, {pipeline_mode = #tpu.pipeline_mode<synchronous>, transform_indices = @transform_6, window_bounds = array<i64: 2, 1, 128>}, {pipeline_mode = #tpu.pipeline_mode<synchronous>, transform_indices = @transform_7, window_bounds = array<i64: 2, 128, 1024>}, {pipeline_mode = #tpu.pipeline_mode<synchronous>, transform_indices = @transform_8, window_bounds = array<i64: 2, 1, 1024>}, {pipeline_mode = #tpu.pipeline_mode<synchronous>, transform_indices = @transform_9, window_bounds = array<i64: 2, 1, 1024>}, {pipeline_mode = #tpu.pipeline_mode<synchronous>, transform_indices = @transform_10, window_bounds = array<i64: 2, 1024, 64>}, {pipeline_mode = #tpu.pipeline_mode<synchronous>, transform_indices = @transform_11, window_bounds = array<i64: 1, 64>}, {pipeline_mode = #tpu.pipeline_mode<synchronous>, transform_indices = @transform_12, window_bounds = array<i64: 1, 64>}, {transform_indices = @transform_13, window_bounds = array<i64: 1, 128, 64>}]} {
    %cst = arith.constant 0.000000e+00 : f32
    %0 = vector.broadcast %cst : f32 to vector<128x64xf32>
    %c0 = arith.constant 0 : index
    %c0_0 = arith.constant 0 : index
    %c0_1 = arith.constant 0 : index
    %c0_2 = arith.constant 0 : index
    %1 = vector.load %arg2[%c0, %c0_0, %c0_1, %c0_2] : memref<1x2x128x3xbf16, #tpu.memory_space<vmem>>, vector<1x1x128x3xbf16>
    %2 = vector.shape_cast %1 : vector<1x1x128x3xbf16> to vector<128x3xbf16>
    %c0_3 = arith.constant 0 : index
    %c0_4 = arith.constant 0 : index
    %c0_5 = arith.constant 0 : index
    %3 = vector.load %arg3[%c0_3, %c0_4, %c0_5] : memref<2x3x64xbf16, #tpu.memory_space<vmem>>, vector<1x3x64xbf16>
    %4 = vector.shape_cast %3 : vector<1x3x64xbf16> to vector<3x64xbf16>
    %cst_6 = arith.constant dense<0.000000e+00> : vector<128x64xf32>
    %5 = tpu.matmul %2, %4, %cst_6 {dimension_numbers = #tpu.dot_dimension_numbers<[1], [0], [0], [1], [0, 0, 1, 1], [], []>} : vector<128x3xbf16>, vector<3x64xbf16>, vector<128x64xf32> -> vector<128x64xf32>
    %c0_7 = arith.constant 0 : index
    %c0_8 = arith.constant 0 : index
    %c0_9 = arith.constant 0 : index
    %6 = vector.load %arg4[%c0_7, %c0_8, %c0_9] : memref<2x1x64xf32, #tpu.memory_space<vmem>>, vector<1x1x64xf32>
    %7 = vector.shape_cast %6 : vector<1x1x64xf32> to vector<1x64xf32>
    %8 = vector.broadcast %7 : vector<1x64xf32> to vector<128x64xf32>
    %9 = arith.mulf %5, %8 : vector<128x64xf32>
    %c0_10 = arith.constant 0 : index
    %c0_11 = arith.constant 0 : index
    %c0_12 = arith.constant 0 : index
    %10 = vector.load %arg5[%c0_10, %c0_11, %c0_12] : memref<2x1x64xf32, #tpu.memory_space<vmem>>, vector<1x1x64xf32>
    %11 = vector.shape_cast %10 : vector<1x1x64xf32> to vector<1x64xf32>
    %12 = vector.broadcast %11 : vector<1x64xf32> to vector<128x64xf32>
    %13 = arith.addf %9, %12 : vector<128x64xf32>
    %cst_13 = arith.constant 0.000000e+00 : f32
    %14 = vector.broadcast %cst_13 : f32 to vector<128x64xf32>
    %15 = arith.maximumf %13, %14 : vector<128x64xf32>
    %16 = arith.truncf %15 : vector<128x64xf32> to vector<128x64xbf16>
    %c0_14 = arith.constant 0 : index
    %c0_15 = arith.constant 0 : index
    %c0_16 = arith.constant 0 : index
    %17 = vector.load %arg6[%c0_14, %c0_15, %c0_16] : memref<2x64x128xbf16, #tpu.memory_space<vmem>>, vector<1x64x128xbf16>
    %18 = vector.shape_cast %17 : vector<1x64x128xbf16> to vector<64x128xbf16>
    %cst_17 = arith.constant dense<0.000000e+00> : vector<128x128xf32>
    %19 = tpu.matmul %16, %18, %cst_17 {dimension_numbers = #tpu.dot_dimension_numbers<[1], [0], [0], [1], [0, 0, 1, 1], [], []>} : vector<128x64xbf16>, vector<64x128xbf16>, vector<128x128xf32> -> vector<128x128xf32>
    %c0_18 = arith.constant 0 : index
    %c0_19 = arith.constant 0 : index
    %c0_20 = arith.constant 0 : index
    %20 = vector.load %arg7[%c0_18, %c0_19, %c0_20] : memref<2x1x128xf32, #tpu.memory_space<vmem>>, vector<1x1x128xf32>
    %21 = vector.shape_cast %20 : vector<1x1x128xf32> to vector<1x128xf32>
    %22 = vector.broadcast %21 : vector<1x128xf32> to vector<128x128xf32>
    %23 = arith.mulf %19, %22 : vector<128x128xf32>
    %c0_21 = arith.constant 0 : index
    %c0_22 = arith.constant 0 : index
    %c0_23 = arith.constant 0 : index
    %24 = vector.load %arg8[%c0_21, %c0_22, %c0_23] : memref<2x1x128xf32, #tpu.memory_space<vmem>>, vector<1x1x128xf32>
    %25 = vector.shape_cast %24 : vector<1x1x128xf32> to vector<1x128xf32>
    %26 = vector.broadcast %25 : vector<1x128xf32> to vector<128x128xf32>
    %27 = arith.addf %23, %26 : vector<128x128xf32>
    %cst_24 = arith.constant 0.000000e+00 : f32
    %28 = vector.broadcast %cst_24 : f32 to vector<128x128xf32>
    %29 = arith.maximumf %27, %28 : vector<128x128xf32>
    %30 = arith.truncf %29 : vector<128x128xf32> to vector<128x128xbf16>
    %c0_25 = arith.constant 0 : index
    %c0_26 = arith.constant 0 : index
    %c0_27 = arith.constant 0 : index
    %31 = vector.load %arg9[%c0_25, %c0_26, %c0_27] : memref<2x128x1024xbf16, #tpu.memory_space<vmem>>, vector<1x128x1024xbf16>
    %32 = vector.shape_cast %31 : vector<1x128x1024xbf16> to vector<128x1024xbf16>
    %cst_28 = arith.constant dense<0.000000e+00> : vector<128x1024xf32>
    %33 = tpu.matmul %30, %32, %cst_28 {dimension_numbers = #tpu.dot_dimension_numbers<[1], [0], [0], [1], [0, 0, 1, 1], [], []>} : vector<128x128xbf16>, vector<128x1024xbf16>, vector<128x1024xf32> -> vector<128x1024xf32>
    %c0_29 = arith.constant 0 : index
    %c0_30 = arith.constant 0 : index
    %c0_31 = arith.constant 0 : index
    %34 = vector.load %arg10[%c0_29, %c0_30, %c0_31] : memref<2x1x1024xf32, #tpu.memory_space<vmem>>, vector<1x1x1024xf32>
    %35 = vector.shape_cast %34 : vector<1x1x1024xf32> to vector<1x1024xf32>
    %36 = vector.broadcast %35 : vector<1x1024xf32> to vector<128x1024xf32>
    %37 = arith.mulf %33, %36 : vector<128x1024xf32>
    %c0_32 = arith.constant 0 : index
    %c0_33 = arith.constant 0 : index
    %c0_34 = arith.constant 0 : index
    %38 = vector.load %arg11[%c0_32, %c0_33, %c0_34] : memref<2x1x1024xf32, #tpu.memory_space<vmem>>, vector<1x1x1024xf32>
    %39 = vector.shape_cast %38 : vector<1x1x1024xf32> to vector<1x1024xf32>
    %40 = vector.broadcast %39 : vector<1x1024xf32> to vector<128x1024xf32>
    %41 = arith.addf %37, %40 : vector<128x1024xf32>
    %42 = arith.truncf %41 : vector<128x1024xf32> to vector<128x1024xbf16>
    %c0_35 = arith.constant 0 : index
    %c0_36 = arith.constant 0 : index
    %c0_37 = arith.constant 0 : index
    %43 = vector.load %arg12[%c0_35, %c0_36, %c0_37] : memref<2x1024x64xbf16, #tpu.memory_space<vmem>>, vector<1x1024x64xbf16>
    %44 = vector.shape_cast %43 : vector<1x1024x64xbf16> to vector<1024x64xbf16>
    %cst_38 = arith.constant dense<0.000000e+00> : vector<128x64xf32>
    %45 = tpu.matmul %42, %44, %cst_38 {dimension_numbers = #tpu.dot_dimension_numbers<[1], [0], [0], [1], [0, 0, 1, 1], [], []>} : vector<128x1024xbf16>, vector<1024x64xbf16>, vector<128x64xf32> -> vector<128x64xf32>
    %46 = arith.addf %0, %45 : vector<128x64xf32>
    %c0_39 = arith.constant 0 : index
    %c1 = arith.constant 1 : index
    %c0_40 = arith.constant 0 : index
    %c0_41 = arith.constant 0 : index
    %47 = vector.load %arg2[%c0_39, %c1, %c0_40, %c0_41] : memref<1x2x128x3xbf16, #tpu.memory_space<vmem>>, vector<1x1x128x3xbf16>
    %48 = vector.shape_cast %47 : vector<1x1x128x3xbf16> to vector<128x3xbf16>
    %c1_42 = arith.constant 1 : index
    %c0_43 = arith.constant 0 : index
    %c0_44 = arith.constant 0 : index
    %49 = vector.load %arg3[%c1_42, %c0_43, %c0_44] : memref<2x3x64xbf16, #tpu.memory_space<vmem>>, vector<1x3x64xbf16>
    %50 = vector.shape_cast %49 : vector<1x3x64xbf16> to vector<3x64xbf16>
    %cst_45 = arith.constant dense<0.000000e+00> : vector<128x64xf32>
    %51 = tpu.matmul %48, %50, %cst_45 {dimension_numbers = #tpu.dot_dimension_numbers<[1], [0], [0], [1], [0, 0, 1, 1], [], []>} : vector<128x3xbf16>, vector<3x64xbf16>, vector<128x64xf32> -> vector<128x64xf32>
    %c1_46 = arith.constant 1 : index
    %c0_47 = arith.constant 0 : index
    %c0_48 = arith.constant 0 : index
    %52 = vector.load %arg4[%c1_46, %c0_47, %c0_48] : memref<2x1x64xf32, #tpu.memory_space<vmem>>, vector<1x1x64xf32>
    %53 = vector.shape_cast %52 : vector<1x1x64xf32> to vector<1x64xf32>
    %54 = vector.broadcast %53 : vector<1x64xf32> to vector<128x64xf32>
    %55 = arith.mulf %51, %54 : vector<128x64xf32>
    %c1_49 = arith.constant 1 : index
    %c0_50 = arith.constant 0 : index
    %c0_51 = arith.constant 0 : index
    %56 = vector.load %arg5[%c1_49, %c0_50, %c0_51] : memref<2x1x64xf32, #tpu.memory_space<vmem>>, vector<1x1x64xf32>
    %57 = vector.shape_cast %56 : vector<1x1x64xf32> to vector<1x64xf32>
    %58 = vector.broadcast %57 : vector<1x64xf32> to vector<128x64xf32>
    %59 = arith.addf %55, %58 : vector<128x64xf32>
    %cst_52 = arith.constant 0.000000e+00 : f32
    %60 = vector.broadcast %cst_52 : f32 to vector<128x64xf32>
    %61 = arith.maximumf %59, %60 : vector<128x64xf32>
    %62 = arith.truncf %61 : vector<128x64xf32> to vector<128x64xbf16>
    %c1_53 = arith.constant 1 : index
    %c0_54 = arith.constant 0 : index
    %c0_55 = arith.constant 0 : index
    %63 = vector.load %arg6[%c1_53, %c0_54, %c0_55] : memref<2x64x128xbf16, #tpu.memory_space<vmem>>, vector<1x64x128xbf16>
    %64 = vector.shape_cast %63 : vector<1x64x128xbf16> to vector<64x128xbf16>
    %cst_56 = arith.constant dense<0.000000e+00> : vector<128x128xf32>
    %65 = tpu.matmul %62, %64, %cst_56 {dimension_numbers = #tpu.dot_dimension_numbers<[1], [0], [0], [1], [0, 0, 1, 1], [], []>} : vector<128x64xbf16>, vector<64x128xbf16>, vector<128x128xf32> -> vector<128x128xf32>
    %c1_57 = arith.constant 1 : index
    %c0_58 = arith.constant 0 : index
    %c0_59 = arith.constant 0 : index
    %66 = vector.load %arg7[%c1_57, %c0_58, %c0_59] : memref<2x1x128xf32, #tpu.memory_space<vmem>>, vector<1x1x128xf32>
    %67 = vector.shape_cast %66 : vector<1x1x128xf32> to vector<1x128xf32>
    %68 = vector.broadcast %67 : vector<1x128xf32> to vector<128x128xf32>
    %69 = arith.mulf %65, %68 : vector<128x128xf32>
    %c1_60 = arith.constant 1 : index
    %c0_61 = arith.constant 0 : index
    %c0_62 = arith.constant 0 : index
    %70 = vector.load %arg8[%c1_60, %c0_61, %c0_62] : memref<2x1x128xf32, #tpu.memory_space<vmem>>, vector<1x1x128xf32>
    %71 = vector.shape_cast %70 : vector<1x1x128xf32> to vector<1x128xf32>
    %72 = vector.broadcast %71 : vector<1x128xf32> to vector<128x128xf32>
    %73 = arith.addf %69, %72 : vector<128x128xf32>
    %cst_63 = arith.constant 0.000000e+00 : f32
    %74 = vector.broadcast %cst_63 : f32 to vector<128x128xf32>
    %75 = arith.maximumf %73, %74 : vector<128x128xf32>
    %76 = arith.truncf %75 : vector<128x128xf32> to vector<128x128xbf16>
    %c1_64 = arith.constant 1 : index
    %c0_65 = arith.constant 0 : index
    %c0_66 = arith.constant 0 : index
    %77 = vector.load %arg9[%c1_64, %c0_65, %c0_66] : memref<2x128x1024xbf16, #tpu.memory_space<vmem>>, vector<1x128x1024xbf16>
    %78 = vector.shape_cast %77 : vector<1x128x1024xbf16> to vector<128x1024xbf16>
    %cst_67 = arith.constant dense<0.000000e+00> : vector<128x1024xf32>
    %79 = tpu.matmul %76, %78, %cst_67 {dimension_numbers = #tpu.dot_dimension_numbers<[1], [0], [0], [1], [0, 0, 1, 1], [], []>} : vector<128x128xbf16>, vector<128x1024xbf16>, vector<128x1024xf32> -> vector<128x1024xf32>
    %c1_68 = arith.constant 1 : index
    %c0_69 = arith.constant 0 : index
    %c0_70 = arith.constant 0 : index
    %80 = vector.load %arg10[%c1_68, %c0_69, %c0_70] : memref<2x1x1024xf32, #tpu.memory_space<vmem>>, vector<1x1x1024xf32>
    %81 = vector.shape_cast %80 : vector<1x1x1024xf32> to vector<1x1024xf32>
    %82 = vector.broadcast %81 : vector<1x1024xf32> to vector<128x1024xf32>
    %83 = arith.mulf %79, %82 : vector<128x1024xf32>
    %c1_71 = arith.constant 1 : index
    %c0_72 = arith.constant 0 : index
    %c0_73 = arith.constant 0 : index
    %84 = vector.load %arg11[%c1_71, %c0_72, %c0_73] : memref<2x1x1024xf32, #tpu.memory_space<vmem>>, vector<1x1x1024xf32>
    %85 = vector.shape_cast %84 : vector<1x1x1024xf32> to vector<1x1024xf32>
    %86 = vector.broadcast %85 : vector<1x1024xf32> to vector<128x1024xf32>
    %87 = arith.addf %83, %86 : vector<128x1024xf32>
    %88 = arith.truncf %87 : vector<128x1024xf32> to vector<128x1024xbf16>
    %c1_74 = arith.constant 1 : index
    %c0_75 = arith.constant 0 : index
    %c0_76 = arith.constant 0 : index
    %89 = vector.load %arg12[%c1_74, %c0_75, %c0_76] : memref<2x1024x64xbf16, #tpu.memory_space<vmem>>, vector<1x1024x64xbf16>
    %90 = vector.shape_cast %89 : vector<1x1024x64xbf16> to vector<1024x64xbf16>
    %cst_77 = arith.constant dense<0.000000e+00> : vector<128x64xf32>
    %91 = tpu.matmul %88, %90, %cst_77 {dimension_numbers = #tpu.dot_dimension_numbers<[1], [0], [0], [1], [0, 0, 1, 1], [], []>} : vector<128x1024xbf16>, vector<1024x64xbf16>, vector<128x64xf32> -> vector<128x64xf32>
    %92 = arith.addf %46, %91 : vector<128x64xf32>
    %c0_78 = arith.constant 0 : index
    %c0_79 = arith.constant 0 : index
    %93 = vector.load %arg13[%c0_78, %c0_79] : memref<1x64xf32, #tpu.memory_space<vmem>>, vector<1x64xf32>
    %94 = vector.broadcast %93 : vector<1x64xf32> to vector<128x64xf32>
    %95 = arith.mulf %92, %94 : vector<128x64xf32>
    %c0_80 = arith.constant 0 : index
    %c0_81 = arith.constant 0 : index
    %96 = vector.load %arg14[%c0_80, %c0_81] : memref<1x64xf32, #tpu.memory_space<vmem>>, vector<1x64xf32>
    %97 = vector.broadcast %96 : vector<1x64xf32> to vector<128x64xf32>
    %98 = arith.addf %95, %97 : vector<128x64xf32>
    %cst_82 = arith.constant 0.000000e+00 : f32
    %99 = vector.broadcast %cst_82 : f32 to vector<128x64xf32>
    %100 = arith.maximumf %98, %99 : vector<128x64xf32>
    %101 = arith.truncf %100 : vector<128x64xf32> to vector<128x64xbf16>
    %c0_83 = arith.constant 0 : index
    %c0_84 = arith.constant 0 : index
    %c0_85 = arith.constant 0 : index
    %102 = vector.load %arg15[%c0_83, %c0_84, %c0_85] : memref<1x128x64xbf16, #tpu.memory_space<vmem>>, vector<1x128x64xbf16>
    %103 = vector.shape_cast %102 : vector<1x128x64xbf16> to vector<128x64xbf16>
    %104 = vector.shape_cast %101 : vector<128x64xbf16> to vector<1x128x64xbf16>
    tpu.vector_store %arg15[%c0_83, %c0_84, %c0_85], %104 {strides = array<i32>} : memref<1x128x64xbf16, #tpu.memory_space<vmem>>, vector<1x128x64xbf16>,
    return
  }
  func.func @transform_0(%arg0: i32, %arg1: i32) -> (i32, i32, i32, i32) {
    %c0_i32 = arith.constant 0 : i32
    %c0_i32_0 = arith.constant 0 : i32
    %c0_i32_1 = arith.constant 0 : i32
    return %arg0, %c0_i32, %arg1, %c0_i32_0 : i32, i32, i32, i32
  }
  func.func @transform_1(%arg0: i32, %arg1: i32) -> (i32, i32, i32) {
    %c0_i32 = arith.constant 0 : i32
    %c0_i32_0 = arith.constant 0 : i32
    %c0_i32_1 = arith.constant 0 : i32
    %c0_i32_2 = arith.constant 0 : i32
    return %c0_i32, %c0_i32_0, %c0_i32_1 : i32, i32, i32
  }
  func.func @transform_2(%arg0: i32, %arg1: i32) -> (i32, i32, i32) {
    %c0_i32 = arith.constant 0 : i32
    %c0_i32_0 = arith.constant 0 : i32
    %c0_i32_1 = arith.constant 0 : i32
    %c0_i32_2 = arith.constant 0 : i32
    return %c0_i32, %c0_i32_0, %c0_i32_1 : i32, i32, i32
  }
  func.func @transform_3(%arg0: i32, %arg1: i32) -> (i32, i32, i32) {
    %c0_i32 = arith.constant 0 : i32
    %c0_i32_0 = arith.constant 0 : i32
    %c0_i32_1 = arith.constant 0 : i32
    %c0_i32_2 = arith.constant 0 : i32
    return %c0_i32, %c0_i32_0, %c0_i32_1 : i32, i32, i32
  }
  func.func @transform_4(%arg0: i32, %arg1: i32) -> (i32, i32, i32) {
    %c0_i32 = arith.constant 0 : i32
    %c0_i32_0 = arith.constant 0 : i32
    %c0_i32_1 = arith.constant 0 : i32
    %c0_i32_2 = arith.constant 0 : i32
    return %c0_i32, %c0_i32_0, %c0_i32_1 : i32, i32, i32
  }
  func.func @transform_5(%arg0: i32, %arg1: i32) -> (i32, i32, i32) {
    %c0_i32 = arith.constant 0 : i32
    %c0_i32_0 = arith.constant 0 : i32
    %c0_i32_1 = arith.constant 0 : i32
    %c0_i32_2 = arith.constant 0 : i32
    return %c0_i32, %c0_i32_0, %c0_i32_1 : i32, i32, i32
  }
  func.func @transform_6(%arg0: i32, %arg1: i32) -> (i32, i32, i32) {
    %c0_i32 = arith.constant 0 : i32
    %c0_i32_0 = arith.constant 0 : i32
    %c0_i32_1 = arith.constant 0 : i32
    %c0_i32_2 = arith.constant 0 : i32
    return %c0_i32, %c0_i32_0, %c0_i32_1 : i32, i32, i32
  }
  func.func @transform_7(%arg0: i32, %arg1: i32) -> (i32, i32, i32) {
    %c0_i32 = arith.constant 0 : i32
    %c0_i32_0 = arith.constant 0 : i32
    %c0_i32_1 = arith.constant 0 : i32
    %c0_i32_2 = arith.constant 0 : i32
    return %c0_i32, %c0_i32_0, %c0_i32_1 : i32, i32, i32
  }
  func.func @transform_8(%arg0: i32, %arg1: i32) -> (i32, i32, i32) {
    %c0_i32 = arith.constant 0 : i32
    %c0_i32_0 = arith.constant 0 : i32
    %c0_i32_1 = arith.constant 0 : i32
    %c0_i32_2 = arith.constant 0 : i32
    return %c0_i32, %c0_i32_0, %c0_i32_1 : i32, i32, i32
  }
  func.func @transform_9(%arg0: i32, %arg1: i32) -> (i32, i32, i32) {
    %c0_i32 = arith.constant 0 : i32
    %c0_i32_0 = arith.constant 0 : i32
    %c0_i32_1 = arith.constant 0 : i32
    %c0_i32_2 = arith.constant 0 : i32
    return %c0_i32, %c0_i32_0, %c0_i32_1 : i32, i32, i32
  }
  func.func @transform_10(%arg0: i32, %arg1: i32) -> (i32, i32, i32) {
    %c0_i32 = arith.constant 0 : i32
    %c0_i32_0 = arith.constant 0 : i32
    %c0_i32_1 = arith.constant 0 : i32
    %c0_i32_2 = arith.constant 0 : i32
    return %c0_i32, %c0_i32_0, %c0_i32_1 : i32, i32, i32
  }
  func.func @transform_11(%arg0: i32, %arg1: i32) -> (i32, i32) {
    %c0_i32 = arith.constant 0 : i32
    %c0_i32_0 = arith.constant 0 : i32
    %c0_i32_1 = arith.constant 0 : i32
    return %c0_i32, %c0_i32_0 : i32, i32
  }
  func.func @transform_12(%arg0: i32, %arg1: i32) -> (i32, i32) {
    %c0_i32 = arith.constant 0 : i32
    %c0_i32_0 = arith.constant 0 : i32
    %c0_i32_1 = arith.constant 0 : i32
    return %c0_i32, %c0_i32_0 : i32, i32
  }
  func.func @transform_13(%arg0: i32, %arg1: i32) -> (i32, i32, i32) {
    %c0_i32 = arith.constant 0 : i32
    %c0_i32_0 = arith.constant 0 : i32
    return %arg0, %arg1, %c0_i32 : i32, i32, i32
  }
}

</mosaic_0001>

<llo_original>
// kernel: tpu_custom_call.1
$region0: #{tpu_custom_call.1}
  #allocation0 [shape = 'u32[]', space=smem, size = 0x4, offset = 0x4, fixed_abs, tag = 'smem constant byte address 0x4 - core index']
  #allocation1 [shape = 'u32[72,128]{1,0:T(1,128)}', space=vmem, size = 0x9000, scoped, tag = 'internal scratch']
  %s0 = inlined_call_operand.vmem [shape: bf16[2,2,256,3], index: 0, kind: input, shape index: {}]
  %s1 = inlined_call_operand.vmem [shape: bf16[2,3,64], index: 1, kind: input, shape index: {}]
  %s2 = inlined_call_operand.vmem [shape: f32[2,1,64], index: 2, kind: input, shape index: {}]
  %s3 = inlined_call_operand.vmem [shape: f32[2,1,64], index: 3, kind: input, shape index: {}]
  %s4 = inlined_call_operand.vmem [shape: bf16[2,64,128], index: 4, kind: input, shape index: {}]
  %s5 = inlined_call_operand.vmem [shape: f32[2,1,128], index: 5, kind: input, shape index: {}]
  %s6 = inlined_call_operand.vmem [shape: f32[2,1,128], index: 6, kind: input, shape index: {}]
  %s7 = inlined_call_operand.vmem [shape: bf16[2,128,1024], index: 7, kind: input, shape index: {}]
  %s8 = inlined_call_operand.vmem [shape: f32[2,1,1024], index: 8, kind: input, shape index: {}]
  %s9 = inlined_call_operand.vmem [shape: f32[2,1,1024], index: 9, kind: input, shape index: {}]
  %s10 = inlined_call_operand.vmem [shape: bf16[2,1024,64], index: 10, kind: input, shape index: {}]
  %s11 = inlined_call_operand.vmem [shape: f32[1,64], index: 11, kind: input, shape index: {}]
  %s12 = inlined_call_operand.vmem [shape: f32[1,64], index: 12, kind: input, shape index: {}]
  %s13 = inlined_call_operand.vmem [shape: bf16[2,256,64], index: 13, kind: output, shape index: {}]
  %s14 = sld [smem:[#allocation0]]
  $region126: #{tpu_custom_call.1} parent=0
    _
  %s16 = ssub.s32 1, %s14
  %s17 = scalar_select 0, %s16, %s14
  $region1: #{tpu_custom_call.1} parent=0
    #allocation2 [shape = 'u8[131072]{0}', space=vmem, size = 0x20000, scoped, tag = 'input window, operand 0']
    loop: start=0, step=1, limit=6
    $region2: #{tpu_custom_call.1} parent=1 // loop_pre_header
      _
    $region3: #{tpu_custom_call.1} parent=1 // loop_header
      %s19 = sphi 0, %s23
      %p20 = scmp.ge.s32.totalorder %s19, 6
      %s26 = sphi 0, %s38
      %s27 = sphi 0, %s34
      %s28 = sphi 0, %s26
      %s29 = sphi 0, %s27
      %s30 = sphi 0, %s28
      %s31 = sphi 0, %s29
      %s43 = sphi 0, %s45
      %s46 = sphi 0, %s43
      %s47 = sphi 0, %s46
      %s63 = sphi 0, %s47
      %s67 = sphi 0, %s67
      %s69 = sphi 0, %s67
      %s70 = sphi 0, %s69
      %s84 = sphi 0, %s70
      %s88 = sphi 0, %s88
      %s90 = sphi 0, %s88
      %s91 = sphi 0, %s90
      %s105 = sphi 0, %s91
      %s109 = sphi 0, %s109
      %s111 = sphi 0, %s109
      %s112 = sphi 0, %s111
      %s126 = sphi 0, %s112
      %s130 = sphi 0, %s130
      %s132 = sphi 0, %s130
      %s133 = sphi 0, %s132
      %s147 = sphi 0, %s133
      %s151 = sphi 0, %s151
      %s153 = sphi 0, %s151
      %s154 = sphi 0, %s153
      %s168 = sphi 0, %s154
      %s172 = sphi 0, %s172
      %s174 = sphi 0, %s172
      %s175 = sphi 0, %s174
      %s189 = sphi 0, %s175
      %s193 = sphi 0, %s193
      %s195 = sphi 0, %s193
      %s196 = sphi 0, %s195
      %s210 = sphi 0, %s196
      %s214 = sphi 0, %s214
      %s216 = sphi 0, %s214
      %s217 = sphi 0, %s216
      %s231 = sphi 0, %s217
      %s235 = sphi 0, %s235
      %s237 = sphi 0, %s235
      %s238 = sphi 0, %s237
      %s252 = sphi 0, %s238
      %s256 = sphi 0, %s256
      %s258 = sphi 0, %s256
      %s259 = sphi 0, %s258
      %s273 = sphi 0, %s259
      %s277 = sphi 0, %s277
      %s279 = sphi 0, %s277
      %s280 = sphi 0, %s279
      %s294 = sphi 0, %s280
      %s298 = sphi 0, %s298
      %s300 = sphi 0, %s298
      %s301 = sphi 0, %s300
      %s315 = sphi 0, %s301
      %s323 = sphi 0, %s325
      %s326 = sphi 0, %s323
      %s327 = sphi 0, %s326
      %s343 = sphi 0, %s327
    $region4: #{tpu_custom_call.1} parent=1 // loop_header_branch
      %22 = sbr.rel (%p20) target = $region8
    $region5: #{tpu_custom_call.1} parent=1 // loop_body
      %s24 = ssub.s32 %s19, 1
      %s25 = ssub.s32 %s19, 2
      %s32 = sadd.s32 1, %s27
      %p33 = scmp.ge.s32.totalorder %s32, 2
      %s34 = scalar_select %p33, 0, %s32
      %s35 = sadd.s32 1, %s26
      %s36 = scalar_select %p33, %s35, %s26
      %p37 = scmp.ge.s32.totalorder %s36, 2
      %s38 = scalar_select %p37, 0, %s36
      %s39 = ssub.s32 %s26, %s38
      %s40 = ssub.s32 %s27, %s34
      %s41 = sor.u32 %s39, %s40
      %p42 = scmp.eq.s32.totalorder %s41, 0
      %s44 = sadd.s32 %s43, 1
      %s45 = scalar_select %p42, %s43, %s44
      %p48 = pneg %p42
      %p49 = scmp.eq.s32.totalorder %s19, 3
      %p50 = por %p48, %p49
      %p51 = scmp.ne.s32.totalorder %s43, %s46
      %p52 = scmp.eq.s32.totalorder %s19, 0
      %p53 = por %p51, %p52
      %p54 = scmp.ne.s32.totalorder %s43, %s46
      %p55 = scmp.eq.s32.totalorder %s24, 3
      %p56 = por %p54, %p55
      %p57 = scmp.ne.s32.totalorder %s46, %s47
      %p58 = scmp.eq.s32.totalorder %s24, 0
      %p59 = por %p57, %p58
      %p60 = scmp.ne.s32.totalorder %s46, %s47
      %p61 = scmp.eq.s32.totalorder %s25, 3
      %p62 = por %p60, %p61
      %p64 = scmp.ne.s32.totalorder %s47, %s63
      %p65 = scmp.eq.s32.totalorder %s25, 0
      %p66 = por %p64, %p65
      %s68 = sadd.s32 %s67, 1
      %p71 = scmp.eq.s32.totalorder %s19, 3
      %p72 = scmp.ne.s32.totalorder %s67, %s69
      %p73 = scmp.eq.s32.totalorder %s19, 0
      %p74 = por %p72, %p73
      %p75 = scmp.ne.s32.totalorder %s67, %s69
      %p76 = scmp.eq.s32.totalorder %s24, 3
      %p77 = por %p75, %p76
      %p78 = scmp.ne.s32.totalorder %s69, %s70
      %p79 = scmp.eq.s32.totalorder %s24, 0
      %p80 = por %p78, %p79
      %p81 = scmp.ne.s32.totalorder %s69, %s70
      %p82 = scmp.eq.s32.totalorder %s25, 3
      %p83 = por %p81, %p82
      %p85 = scmp.ne.s32.totalorder %s70, %s84
      %p86 = scmp.eq.s32.totalorder %s25, 0
      %p87 = por %p85, %p86
      %s89 = sadd.s32 %s88, 1
      %p92 = scmp.eq.s32.totalorder %s19, 3
      %p93 = scmp.ne.s32.totalorder %s88, %s90
      %p94 = scmp.eq.s32.totalorder %s19, 0
      %p95 = por %p93, %p94
      %p96 = scmp.ne.s32.totalorder %s88, %s90
      %p97 = scmp.eq.s32.totalorder %s24, 3
      %p98 = por %p96, %p97
      %p99 = scmp.ne.s32.totalorder %s90, %s91
      %p100 = scmp.eq.s32.totalorder %s24, 0
      %p101 = por %p99, %p100
      %p102 = scmp.ne.s32.totalorder %s90, %s91
      %p103 = scmp.eq.s32.totalorder %s25, 3
      %p104 = por %p102, %p103
      %p106 = scmp.ne.s32.totalorder %s91, %s105
      %p107 = scmp.eq.s32.totalorder %s25, 0
      %p108 = por %p106, %p107
      %s110 = sadd.s32 %s109, 1
      %p113 = scmp.eq.s32.totalorder %s19, 3
      %p114 = scmp.ne.s32.totalorder %s109, %s111
      %p115 = scmp.eq.s32.totalorder %s19, 0
      %p116 = por %p114, %p115
      %p117 = scmp.ne.s32.totalorder %s109, %s111
      %p118 = scmp.eq.s32.totalorder %s24, 3
      %p119 = por %p117, %p118
      %p120 = scmp.ne.s32.totalorder %s111, %s112
      %p121 = scmp.eq.s32.totalorder %s24, 0
      %p122 = por %p120, %p121
      %p123 = scmp.ne.s32.totalorder %s111, %s112
      %p124 = scmp.eq.s32.totalorder %s25, 3
      %p125 = por %p123, %p124
      %p127 = scmp.ne.s32.totalorder %s112, %s126
      %p128 = scmp.eq.s32.totalorder %s25, 0
      %p129 = por %p127, %p128
      %s131 = sadd.s32 %s130, 1
      %p134 = scmp.eq.s32.totalorder %s19, 3
      %p135 = scmp.ne.s32.totalorder %s130, %s132
      %p136 = scmp.eq.s32.totalorder %s19, 0
      %p137 = por %p135, %p136
      %p138 = scmp.ne.s32.totalorder %s130, %s132
      %p139 = scmp.eq.s32.totalorder %s24, 3
      %p140 = por %p138, %p139
      %p141 = scmp.ne.s32.totalorder %s132, %s133
      %p142 = scmp.eq.s32.totalorder %s24, 0
      %p143 = por %p141, %p142
      %p144 = scmp.ne.s32.totalorder %s132, %s133
      %p145 = scmp.eq.s32.totalorder %s25, 3
      %p146 = por %p144, %p145
      %p148 = scmp.ne.s32.totalorder %s133, %s147
      %p149 = scmp.eq.s32.totalorder %s25, 0
      %p150 = por %p148, %p149
      %s152 = sadd.s32 %s151, 1
      %p155 = scmp.eq.s32.totalorder %s19, 3
      %p156 = scmp.ne.s32.totalorder %s151, %s153
      %p157 = scmp.eq.s32.totalorder %s19, 0
      %p158 = por %p156, %p157
      %p159 = scmp.ne.s32.totalorder %s151, %s153
      %p160 = scmp.eq.s32.totalorder %s24, 3
      %p161 = por %p159, %p160
      %p162 = scmp.ne.s32.totalorder %s153, %s154
      %p163 = scmp.eq.s32.totalorder %s24, 0
      %p164 = por %p162, %p163
      %p165 = scmp.ne.s32.totalorder %s153, %s154
      %p166 = scmp.eq.s32.totalorder %s25, 3
      %p167 = por %p165, %p166
      %p169 = scmp.ne.s32.totalorder %s154, %s168
      %p170 = scmp.eq.s32.totalorder %s25, 0
      %p171 = por %p169, %p170
      %s173 = sadd.s32 %s172, 1
      %p176 = scmp.eq.s32.totalorder %s19, 3
      %p177 = scmp.ne.s32.totalorder %s172, %s174
      %p178 = scmp.eq.s32.totalorder %s19, 0
      %p179 = por %p177, %p178
      %p180 = scmp.ne.s32.totalorder %s172, %s174
      %p181 = scmp.eq.s32.totalorder %s24, 3
      %p182 = por %p180, %p181
      %p183 = scmp.ne.s32.totalorder %s174, %s175
      %p184 = scmp.eq.s32.totalorder %s24, 0
      %p185 = por %p183, %p184
      %p186 = scmp.ne.s32.totalorder %s174, %s175
      %p187 = scmp.eq.s32.totalorder %s25, 3
      %p188 = por %p186, %p187
      %p190 = scmp.ne.s32.totalorder %s175, %s189
      %p191 = scmp.eq.s32.totalorder %s25, 0
      %p192 = por %p190, %p191
      %s194 = sadd.s32 %s193, 1
      %p197 = scmp.eq.s32.totalorder %s19, 3
      %p198 = scmp.ne.s32.totalorder %s193, %s195
      %p199 = scmp.eq.s32.totalorder %s19, 0
      %p200 = por %p198, %p199
      %p201 = scmp.ne.s32.totalorder %s193, %s195
      %p202 = scmp.eq.s32.totalorder %s24, 3
      %p203 = por %p201, %p202
      %p204 = scmp.ne.s32.totalorder %s195, %s196
      %p205 = scmp.eq.s32.totalorder %s24, 0
      %p206 = por %p204, %p205
      %p207 = scmp.ne.s32.totalorder %s195, %s196
      %p208 = scmp.eq.s32.totalorder %s25, 3
      %p209 = por %p207, %p208
      %p211 = scmp.ne.s32.totalorder %s196, %s210
      %p212 = scmp.eq.s32.totalorder %s25, 0
      %p213 = por %p211, %p212
      %s215 = sadd.s32 %s214, 1
      %p218 = scmp.eq.s32.totalorder %s19, 3
      %p219 = scmp.ne.s32.totalorder %s214, %s216
      %p220 = scmp.eq.s32.totalorder %s19, 0
      %p221 = por %p219, %p220
      %p222 = scmp.ne.s32.totalorder %s214, %s216
      %p223 = scmp.eq.s32.totalorder %s24, 3
      %p224 = por %p222, %p223
      %p225 = scmp.ne.s32.totalorder %s216, %s217
      %p226 = scmp.eq.s32.totalorder %s24, 0
      %p227 = por %p225, %p226
      %p228 = scmp.ne.s32.totalorder %s216, %s217
      %p229 = scmp.eq.s32.totalorder %s25, 3
      %p230 = por %p228, %p229
      %p232 = scmp.ne.s32.totalorder %s217, %s231
      %p233 = scmp.eq.s32.totalorder %s25, 0
      %p234 = por %p232, %p233
      %s236 = sadd.s32 %s235, 1
      %p239 = scmp.eq.s32.totalorder %s19, 3
      %p240 = scmp.ne.s32.totalorder %s235, %s237
      %p241 = scmp.eq.s32.totalorder %s19, 0
      %p242 = por %p240, %p241
      %p243 = scmp.ne.s32.totalorder %s235, %s237
      %p244 = scmp.eq.s32.totalorder %s24, 3
      %p245 = por %p243, %p244
      %p246 = scmp.ne.s32.totalorder %s237, %s238
      %p247 = scmp.eq.s32.totalorder %s24, 0
      %p248 = por %p246, %p247
      %p249 = scmp.ne.s32.totalorder %s237, %s238
      %p250 = scmp.eq.s32.totalorder %s25, 3
      %p251 = por %p249, %p250
      %p253 = scmp.ne.s32.totalorder %s238, %s252
      %p254 = scmp.eq.s32.totalorder %s25, 0
      %p255 = por %p253, %p254
      %s257 = sadd.s32 %s256, 1
      %p260 = scmp.eq.s32.totalorder %s19, 3
      %p261 = scmp.ne.s32.totalorder %s256, %s258
      %p262 = scmp.eq.s32.totalorder %s19, 0
      %p263 = por %p261, %p262
      %p264 = scmp.ne.s32.totalorder %s256, %s258
      %p265 = scmp.eq.s32.totalorder %s24, 3
      %p266 = por %p264, %p265
      %p267 = scmp.ne.s32.totalorder %s258, %s259
      %p268 = scmp.eq.s32.totalorder %s24, 0
      %p269 = por %p267, %p268
      %p270 = scmp.ne.s32.totalorder %s258, %s259
      %p271 = scmp.eq.s32.totalorder %s25, 3
      %p272 = por %p270, %p271
      %p274 = scmp.ne.s32.totalorder %s259, %s273
      %p275 = scmp.eq.s32.totalorder %s25, 0
      %p276 = por %p274, %p275
      %s278 = sadd.s32 %s277, 1
      %p281 = scmp.eq.s32.totalorder %s19, 3
      %p282 = scmp.ne.s32.totalorder %s277, %s279
      %p283 = scmp.eq.s32.totalorder %s19, 0
      %p284 = por %p282, %p283
      %p285 = scmp.ne.s32.totalorder %s277, %s279
      %p286 = scmp.eq.s32.totalorder %s24, 3
      %p287 = por %p285, %p286
      %p288 = scmp.ne.s32.totalorder %s279, %s280
      %p289 = scmp.eq.s32.totalorder %s24, 0
      %p290 = por %p288, %p289
      %p291 = scmp.ne.s32.totalorder %s279, %s280
      %p292 = scmp.eq.s32.totalorder %s25, 3
      %p293 = por %p291, %p292
      %p295 = scmp.ne.s32.totalorder %s280, %s294
      %p296 = scmp.eq.s32.totalorder %s25, 0
      %p297 = por %p295, %p296
      %s299 = sadd.s32 %s298, 1
      %p302 = scmp.eq.s32.totalorder %s19, 3
      %p303 = scmp.ne.s32.totalorder %s298, %s300
      %p304 = scmp.eq.s32.totalorder %s19, 0
      %p305 = por %p303, %p304
      %p306 = scmp.ne.s32.totalorder %s298, %s300
      %p307 = scmp.eq.s32.totalorder %s24, 3
      %p308 = por %p306, %p307
      %p309 = scmp.ne.s32.totalorder %s300, %s301
      %p310 = scmp.eq.s32.totalorder %s24, 0
      %p311 = por %p309, %p310
      %p312 = scmp.ne.s32.totalorder %s300, %s301
      %p313 = scmp.eq.s32.totalorder %s25, 3
      %p314 = por %p312, %p313
      %p316 = scmp.ne.s32.totalorder %s301, %s315
      %p317 = scmp.eq.s32.totalorder %s25, 0
      %p318 = por %p316, %p317
      %s319 = ssub.s32 %s26, %s38
      %s320 = ssub.s32 %s27, %s34
      %s321 = sor.u32 %s319, %s320
      %p322 = scmp.eq.s32.totalorder %s321, 0
      %s324 = sadd.s32 %s323, 1
      %s325 = scalar_select %p322, %s323, %s324
      %p328 = pneg %p322
      %p329 = scmp.eq.s32.totalorder %s19, 3
      %p330 = por %p328, %p329
      %p331 = scmp.ne.s32.totalorder %s323, %s326
      %p332 = scmp.eq.s32.totalorder %s19, 0
      %p333 = por %p331, %p332
      %p334 = scmp.ne.s32.totalorder %s323, %s326
      %p335 = scmp.eq.s32.totalorder %s24, 3
      %p336 = por %p334, %p335
      %p337 = scmp.ne.s32.totalorder %s326, %s327
      %p338 = scmp.eq.s32.totalorder %s24, 0
      %p339 = por %p337, %p338
      %p340 = scmp.ne.s32.totalorder %s326, %s327
      %p341 = scmp.eq.s32.totalorder %s25, 3
      %p342 = por %p340, %p341
      %p344 = scmp.ne.s32.totalorder %s327, %s343
      %p345 = scmp.eq.s32.totalorder %s25, 0
      %p346 = por %p344, %p345
      %p347 = scmp.le.s32.totalorder 1, %s19
      %p348 = scmp.lt.s32.totalorder %s19, 5
      %p349 = pnand %p347, %p348
      %p350 = pneg %p349
      // Predicated region
      $region9: #{tpu_custom_call.1} parent=5 // pred_check
        _
      $region10: #{tpu_custom_call.1} parent=5 // pred_check_branch
        %352 = sbr.rel (%p349) target = $region12
      $region11: #{tpu_custom_call.1} parent=5 // pred_region
        %s353 = ssub.s32 %s19, 1
        // Predicated region
        $region13: #{tpu_custom_call.1} parent=11 // pred_check
          %p354 = pneg %p80
        $region14: #{tpu_custom_call.1} parent=11 // pred_check_branch
          %356 = sbr.rel (%p354) target = $region16
        $region15: #{tpu_custom_call.1} parent=11 // pred_region
          _
        $region16: #{tpu_custom_call.1} parent=11 // pred_fallthru
          _
        // Predicated region
        $region17: #{tpu_custom_call.1} parent=11 // pred_check
          %p357 = pneg %p101
        $region18: #{tpu_custom_call.1} parent=11 // pred_check_branch
          %359 = sbr.rel (%p357) target = $region20
        $region19: #{tpu_custom_call.1} parent=11 // pred_region
          _
        $region20: #{tpu_custom_call.1} parent=11 // pred_fallthru
          _
        // Predicated region
        $region21: #{tpu_custom_call.1} parent=11 // pred_check
          %p360 = pneg %p122
        $region22: #{tpu_custom_call.1} parent=11 // pred_check_branch
          %362 = sbr.rel (%p360) target = $region24
        $region23: #{tpu_custom_call.1} parent=11 // pred_region
          _
        $region24: #{tpu_custom_call.1} parent=11 // pred_fallthru
          _
        // Predicated region
        $region25: #{tpu_custom_call.1} parent=11 // pred_check
          %p363 = pneg %p143
        $region26: #{tpu_custom_call.1} parent=11 // pred_check_branch
          %365 = sbr.rel (%p363) target = $region28
        $region27: #{tpu_custom_call.1} parent=11 // pred_region
          _
        $region28: #{tpu_custom_call.1} parent=11 // pred_fallthru
          _
        // Predicated region
        $region29: #{tpu_custom_call.1} parent=11 // pred_check
          %p366 = pneg %p164
        $region30: #{tpu_custom_call.1} parent=11 // pred_check_branch
          %368 = sbr.rel (%p366) target = $region32
        $region31: #{tpu_custom_call.1} parent=11 // pred_region
          _
        $region32: #{tpu_custom_call.1} parent=11 // pred_fallthru
          _
        // Predicated region
        $region33: #{tpu_custom_call.1} parent=11 // pred_check
          %p369 = pneg %p185
        $region34: #{tpu_custom_call.1} parent=11 // pred_check_branch
          %371 = sbr.rel (%p369) target = $region36
        $region35: #{tpu_custom_call.1} parent=11 // pred_region
          _
        $region36: #{tpu_custom_call.1} parent=11 // pred_fallthru
          _
        // Predicated region
        $region37: #{tpu_custom_call.1} parent=11 // pred_check
          %p372 = pneg %p206
        $region38: #{tpu_custom_call.1} parent=11 // pred_check_branch
          %374 = sbr.rel (%p372) target = $region40
        $region39: #{tpu_custom_call.1} parent=11 // pred_region
          _
        $region40: #{tpu_custom_call.1} parent=11 // pred_fallthru
          _
        // Predicated region
        $region41: #{tpu_custom_call.1} parent=11 // pred_check
          %p375 = pneg %p227
        $region42: #{tpu_custom_call.1} parent=11 // pred_check_branch
          %377 = sbr.rel (%p375) target = $region44
        $region43: #{tpu_custom_call.1} parent=11 // pred_region
          _
        $region44: #{tpu_custom_call.1} parent=11 // pred_fallthru
          _
        // Predicated region
        $region45: #{tpu_custom_call.1} parent=11 // pred_check
          %p378 = pneg %p248
        $region46: #{tpu_custom_call.1} parent=11 // pred_check_branch
          %380 = sbr.rel (%p378) target = $region48
        $region47: #{tpu_custom_call.1} parent=11 // pred_region
          _
        $region48: #{tpu_custom_call.1} parent=11 // pred_fallthru
          _
        // Predicated region
        $region49: #{tpu_custom_call.1} parent=11 // pred_check
          %p381 = pneg %p269
        $region50: #{tpu_custom_call.1} parent=11 // pred_check_branch
          %383 = sbr.rel (%p381) target = $region52
        $region51: #{tpu_custom_call.1} parent=11 // pred_region
          _
        $region52: #{tpu_custom_call.1} parent=11 // pred_fallthru
          _
        // Predicated region
        $region53: #{tpu_custom_call.1} parent=11 // pred_check
          %p384 = pneg %p290
        $region54: #{tpu_custom_call.1} parent=11 // pred_check_branch
          %386 = sbr.rel (%p384) target = $region56
        $region55: #{tpu_custom_call.1} parent=11 // pred_region
          _
        $region56: #{tpu_custom_call.1} parent=11 // pred_fallthru
          _
        // Predicated region
        $region57: #{tpu_custom_call.1} parent=11 // pred_check
          %p387 = pneg %p311
        $region58: #{tpu_custom_call.1} parent=11 // pred_check_branch
          %389 = sbr.rel (%p387) target = $region60
        $region59: #{tpu_custom_call.1} parent=11 // pred_region
          _
        $region60: #{tpu_custom_call.1} parent=11 // pred_fallthru
          _
      $region12: #{tpu_custom_call.1} parent=5 // pred_fallthru
        _
      %p390 = scmp.lt.s32.totalorder %s19, 4
      // Predicated region
      $region61: #{tpu_custom_call.1} parent=5 // pred_check
        %p391 = pneg %p390
      $region62: #{tpu_custom_call.1} parent=5 // pred_check_branch
        %393 = sbr.rel (%p391) target = $region64
      $region63: #{tpu_custom_call.1} parent=5 // pred_region
        // Predicated region
        $region65: #{tpu_custom_call.1} parent=63 // pred_check
          %p394 = pneg %p53
        $region66: #{tpu_custom_call.1} parent=63 // pred_check_branch
          %396 = sbr.rel (%p394) target = $region68
        $region67: #{tpu_custom_call.1} parent=63 // pred_region
          %s397 = sand.u32 %s43, 1
          %s398 = sand.u32 %s43, 1
          %s399 = smul.addr %s398, 128
          %s400 = scalar_lea.vmem [#allocation2], %s399
          %s401 = smul.u32 16, %s27
          %s402 = smul.addr %s26, 64
          %s403 = sadd.s32 %s401, %s402
          %s404 = smul.addr %s403, 4
          %s405 = scalar_lea.vmem %s0, %s404
          // Predicated region
          $region69: #{tpu_custom_call.1} parent=67 // pred_check
            _
          $region70: #{tpu_custom_call.1} parent=67 // pred_check_branch
            %407 = sbr.rel (0) target = $region72
          $region71: #{tpu_custom_call.1} parent=67 // pred_region
            // Predicated region
            $region73: #{tpu_custom_call.1} parent=71 // pred_check
              _
            $region74: #{tpu_custom_call.1} parent=71 // pred_check_branch
              %409 = sbr.rel target = $region76
            $region75: #{tpu_custom_call.1} parent=71 // pred_region
              // Predicated region
              $region88: #{tpu_custom_call.1} parent=75 // pred_check
                _
              $region89: #{tpu_custom_call.1} parent=75 // pred_check_branch
                %487 = sbr.rel (0) target = $region91
              $region90: #{tpu_custom_call.1} parent=75 // pred_region
                loop: start=0, step=1, limit=1
                $region92: #{tpu_custom_call.1} parent=90 // loop_pre_header
                  _
                $region93: #{tpu_custom_call.1} parent=90 // loop_header
                  %s489 = sphi 0, %s493
                  %p490 = scmp.ge.s32.totalorder %s489, 1
                  %s494 = sphi %s405, %s405
                  %s495 = sphi %s400, %s400
                $region94: #{tpu_custom_call.1} parent=90 // loop_header_branch
                  %492 = sbr.rel (%p490) target = $region98
                $region95: #{tpu_custom_call.1} parent=90 // loop_body
                  _
                $region96: #{tpu_custom_call.1} parent=90 // loop_footer
                  %s493 = sadd.s32 1, %s489
                $region97: #{tpu_custom_call.1} parent=90 // loop_footer_branch
                  %488 = sbr.rel target = $region93
                $region98: #{tpu_custom_call.1} parent=90 // loop_exit
                  _
                %s497 = ssub.s32 16, 1
                loop: start=0, step=1, limit=1
                $region99: #{tpu_custom_call.1} parent=90 // loop_pre_header
                  _
                $region100: #{tpu_custom_call.1} parent=90 // loop_header
                  %s499 = sphi 0, %s503
                  %p500 = scmp.ge.s32.totalorder %s499, 1
                  %s504 = sphi %s405, %s405
                  %s505 = sphi %s400, %s400
                $region101: #{tpu_custom_call.1} parent=90 // loop_header_branch
                  %502 = sbr.rel (%p500) target = $region105
                $region102: #{tpu_custom_call.1} parent=90 // loop_body
                  %v506 = vld [vmem:[%s504] sm:%s497]
                  %507 = vst [vmem:[%s505] sm:%s497] %v506
                  %v508 = vld [vmem:[%s504 + $0x4] sm:%s497]
                  %509 = vst [vmem:[%s505 + $0x4] sm:%s497] %v508
                  %v510 = vld [vmem:[%s504 + $0x8] sm:%s497]
                  %511 = vst [vmem:[%s505 + $0x8] sm:%s497] %v510
                  %v512 = vld [vmem:[%s504 + $0xc] sm:%s497]
                  %513 = vst [vmem:[%s505 + $0xc] sm:%s497] %v512
                  %v514 = vld [vmem:[%s504 + $0x10] sm:%s497]
                  %515 = vst [vmem:[%s505 + $0x10] sm:%s497] %v514
                  %v516 = vld [vmem:[%s504 + $0x14] sm:%s497]
                  %517 = vst [vmem:[%s505 + $0x14] sm:%s497] %v516
                  %v518 = vld [vmem:[%s504 + $0x18] sm:%s497]
                  %519 = vst [vmem:[%s505 + $0x18] sm:%s497] %v518
                  %v520 = vld [vmem:[%s504 + $0x1c] sm:%s497]
                  %521 = vst [vmem:[%s505 + $0x1c] sm:%s497] %v520
                  %v522 = vld [vmem:[%s504 + $0x20] sm:%s497]
                  %523 = vst [vmem:[%s505 + $0x20] sm:%s497] %v522
                  %v524 = vld [vmem:[%s504 + $0x24] sm:%s497]
                  %525 = vst [vmem:[%s505 + $0x24] sm:%s497] %v524
                  %v526 = vld [vmem:[%s504 + $0x28] sm:%s497]
                  %527 = vst [vmem:[%s505 + $0x28] sm:%s497] %v526
                  %v528 = vld [vmem:[%s504 + $0x2c] sm:%s497]
                  %529 = vst [vmem:[%s505 + $0x2c] sm:%s497] %v528
                  %v530 = vld [vmem:[%s504 + $0x30] sm:%s497]
                  %531 = vst [vmem:[%s505 + $0x30] sm:%s497] %v530
                  %v532 = vld [vmem:[%s504 + $0x34] sm:%s497]
                  %533 = vst [vmem:[%s505 + $0x34] sm:%s497] %v532
                  %v534 = vld [vmem:[%s504 + $0x38] sm:%s497]
                  %535 = vst [vmem:[%s505 + $0x38] sm:%s497] %v534
                  %v536 = vld [vmem:[%s504 + $0x3c] sm:%s497]
                  %537 = vst [vmem:[%s505 + $0x3c] sm:%s497] %v536
                  %v538 = vld [vmem:[%s504 + $0x80] sm:%s497]
                  %539 = vst [vmem:[%s505 + $0x40] sm:%s497] %v538
                  %v540 = vld [vmem:[%s504 + $0x84] sm:%s497]
                  %541 = vst [vmem:[%s505 + $0x44] sm:%s497] %v540
                  %v542 = vld [vmem:[%s504 + $0x88] sm:%s497]
                  %543 = vst [vmem:[%s505 + $0x48] sm:%s497] %v542
                  %v544 = vld [vmem:[%s504 + $0x8c] sm:%s497]
                  %545 = vst [vmem:[%s505 + $0x4c] sm:%s497] %v544
                  %v546 = vld [vmem:[%s504 + $0x90] sm:%s497]
                  %547 = vst [vmem:[%s505 + $0x50] sm:%s497] %v546
                  %v548 = vld [vmem:[%s504 + $0x94] sm:%s497]
                  %549 = vst [vmem:[%s505 + $0x54] sm:%s497] %v548
                  %v550 = vld [vmem:[%s504 + $0x98] sm:%s497]
                  %551 = vst [vmem:[%s505 + $0x58] sm:%s497] %v550
                  %v552 = vld [vmem:[%s504 + $0x9c] sm:%s497]
                  %553 = vst [vmem:[%s505 + $0x5c] sm:%s497] %v552
                  %v554 = vld [vmem:[%s504 + $0xa0] sm:%s497]
                  %555 = vst [vmem:[%s505 + $0x60] sm:%s497] %v554
                  %v556 = vld [vmem:[%s504 + $0xa4] sm:%s497]
                  %557 = vst [vmem:[%s505 + $0x64] sm:%s497] %v556
                  %v558 = vld [vmem:[%s504 + $0xa8] sm:%s497]
                  %559 = vst [vmem:[%s505 + $0x68] sm:%s497] %v558
                  %v560 = vld [vmem:[%s504 + $0xac] sm:%s497]
                  %561 = vst [vmem:[%s505 + $0x6c] sm:%s497] %v560
                  %v562 = vld [vmem:[%s504 + $0xb0] sm:%s497]
                  %563 = vst [vmem:[%s505 + $0x70] sm:%s497] %v562
                  %v564 = vld [vmem:[%s504 + $0xb4] sm:%s497]
                  %565 = vst [vmem:[%s505 + $0x74] sm:%s497] %v564
                  %v566 = vld [vmem:[%s504 + $0xb8] sm:%s497]
                  %567 = vst [vmem:[%s505 + $0x78] sm:%s497] %v566
                  %v568 = vld [vmem:[%s504 + $0xbc] sm:%s497]
                  %569 = vst [vmem:[%s505 + $0x7c] sm:%s497] %v568
                $region103: #{tpu_custom_call.1} parent=90 // loop_footer
                  %s503 = sadd.s32 1, %s499
                $region104: #{tpu_custom_call.1} parent=90 // loop_footer_branch
                  %498 = sbr.rel target = $region100
                $region105: #{tpu_custom_call.1} parent=90 // loop_exit
                  _
              $region91: #{tpu_custom_call.1} parent=75 // pred_fallthru
                _
            $region76: #{tpu_custom_call.1} parent=71 // pred_fallthru
              _
            // Predicated region
            $region77: #{tpu_custom_call.1} parent=71 // pred_check
              _
            $region78: #{tpu_custom_call.1} parent=71 // pred_check_branch
              %411 = sbr.rel (0) target = $region80
            $region79: #{tpu_custom_call.1} parent=71 // pred_region
              %s413 = ssub.s32 16, 1
              loop: start=0, step=1, limit=1
              $region81: #{tpu_custom_call.1} parent=79 // loop_pre_header
                _
              $region82: #{tpu_custom_call.1} parent=79 // loop_header
                %s415 = sphi 0, %s419
                %p416 = scmp.ge.s32.totalorder %s415, 1
                %s420 = sphi %s405, %s405
                %s421 = sphi %s400, %s400
              $region83: #{tpu_custom_call.1} parent=79 // loop_header_branch
                %418 = sbr.rel (%p416) target = $region87
              $region84: #{tpu_custom_call.1} parent=79 // loop_body
                %v422 = vld [vmem:[%s420] sm:%s413]
                %423 = vst [vmem:[%s421] sm:%s413] %v422
                %v424 = vld [vmem:[%s420 + $0x4] sm:%s413]
                %425 = vst [vmem:[%s421 + $0x4] sm:%s413] %v424
                %v426 = vld [vmem:[%s420 + $0x8] sm:%s413]
                %427 = vst [vmem:[%s421 + $0x8] sm:%s413] %v426
                %v428 = vld [vmem:[%s420 + $0xc] sm:%s413]
                %429 = vst [vmem:[%s421 + $0xc] sm:%s413] %v428
                %v430 = vld [vmem:[%s420 + $0x10] sm:%s413]
                %431 = vst [vmem:[%s421 + $0x10] sm:%s413] %v430
                %v432 = vld [vmem:[%s420 + $0x14] sm:%s413]
                %433 = vst [vmem:[%s421 + $0x14] sm:%s413] %v432
                %v434 = vld [vmem:[%s420 + $0x18] sm:%s413]
                %435 = vst [vmem:[%s421 + $0x18] sm:%s413] %v434
                %v436 = vld [vmem:[%s420 + $0x1c] sm:%s413]
                %437 = vst [vmem:[%s421 + $0x1c] sm:%s413] %v436
                %v438 = vld [vmem:[%s420 + $0x20] sm:%s413]
                %439 = vst [vmem:[%s421 + $0x20] sm:%s413] %v438
                %v440 = vld [vmem:[%s420 + $0x24] sm:%s413]
                %441 = vst [vmem:[%s421 + $0x24] sm:%s413] %v440
                %v442 = vld [vmem:[%s420 + $0x28] sm:%s413]
                %443 = vst [vmem:[%s421 + $0x28] sm:%s413] %v442
                %v444 = vld [vmem:[%s420 + $0x2c] sm:%s413]
                %445 = vst [vmem:[%s421 + $0x2c] sm:%s413] %v444
                %v446 = vld [vmem:[%s420 + $0x30] sm:%s413]
                %447 = vst [vmem:[%s421 + $0x30] sm:%s413] %v446
                %v448 = vld [vmem:[%s420 + $0x34] sm:%s413]
                %449 = vst [vmem:[%s421 + $0x34] sm:%s413] %v448
                %v450 = vld [vmem:[%s420 + $0x38] sm:%s413]
                %451 = vst [vmem:[%s421 + $0x38] sm:%s413] %v450
                %v452 = vld [vmem:[%s420 + $0x3c] sm:%s413]
                %453 = vst [vmem:[%s421 + $0x3c] sm:%s413] %v452
                %v454 = vld [vmem:[%s420 + $0x80] sm:%s413]
                %455 = vst [vmem:[%s421 + $0x40] sm:%s413] %v454
                %v456 = vld [vmem:[%s420 + $0x84] sm:%s413]
                %457 = vst [vmem:[%s421 + $0x44] sm:%s413] %v456
                %v458 = vld [vmem:[%s420 + $0x88] sm:%s413]
                %459 = vst [vmem:[%s421 + $0x48] sm:%s413] %v458
                %v460 = vld [vmem:[%s420 + $0x8c] sm:%s413]
                %461 = vst [vmem:[%s421 + $0x4c] sm:%s413] %v460
                %v462 = vld [vmem:[%s420 + $0x90] sm:%s413]
                %463 = vst [vmem:[%s421 + $0x50] sm:%s413] %v462
                %v464 = vld [vmem:[%s420 + $0x94] sm:%s413]
                %465 = vst [vmem:[%s421 + $0x54] sm:%s413] %v464
                %v466 = vld [vmem:[%s420 + $0x98] sm:%s413]
                %467 = vst [vmem:[%s421 + $0x58] sm:%s413] %v466
                %v468 = vld [vmem:[%s420 + $0x9c] sm:%s413]
                %469 = vst [vmem:[%s421 + $0x5c] sm:%s413] %v468
                %v470 = vld [vmem:[%s420 + $0xa0] sm:%s413]
                %471 = vst [vmem:[%s421 + $0x60] sm:%s413] %v470
                %v472 = vld [vmem:[%s420 + $0xa4] sm:%s413]
                %473 = vst [vmem:[%s421 + $0x64] sm:%s413] %v472
                %v474 = vld [vmem:[%s420 + $0xa8] sm:%s413]
                %475 = vst [vmem:[%s421 + $0x68] sm:%s413] %v474
                %v476 = vld [vmem:[%s420 + $0xac] sm:%s413]
                %477 = vst [vmem:[%s421 + $0x6c] sm:%s413] %v476
                %v478 = vld [vmem:[%s420 + $0xb0] sm:%s413]
                %479 = vst [vmem:[%s421 + $0x70] sm:%s413] %v478
                %v480 = vld [vmem:[%s420 + $0xb4] sm:%s413]
                %481 = vst [vmem:[%s421 + $0x74] sm:%s413] %v480
                %v482 = vld [vmem:[%s420 + $0xb8] sm:%s413]
                %483 = vst [vmem:[%s421 + $0x78] sm:%s413] %v482
                %v484 = vld [vmem:[%s420 + $0xbc] sm:%s413]
                %485 = vst [vmem:[%s421 + $0x7c] sm:%s413] %v484
              $region85: #{tpu_custom_call.1} parent=79 // loop_footer
                %s419 = sadd.s32 1, %s415
              $region86: #{tpu_custom_call.1} parent=79 // loop_footer_branch
                %414 = sbr.rel target = $region82
              $region87: #{tpu_custom_call.1} parent=79 // loop_exit
                _
            $region80: #{tpu_custom_call.1} parent=71 // pred_fallthru
              _
          $region72: #{tpu_custom_call.1} parent=67 // pred_fallthru
            _
          %570 = vnop
        $region68: #{tpu_custom_call.1} parent=63 // pred_fallthru
          _
      $region64: #{tpu_custom_call.1} parent=5 // pred_fallthru
        _
      %p571 = scmp.le.s32.totalorder 1, %s19
      %p572 = scmp.lt.s32.totalorder %s19, 5
      %p573 = pnand %p571, %p572
      %p574 = pneg %p573
      // Predicated region
      $region106: #{tpu_custom_call.1} parent=5 // pred_check
        _
      $region107: #{tpu_custom_call.1} parent=5 // pred_check_branch
        %576 = sbr.rel (%p573) target = $region109
      $region108: #{tpu_custom_call.1} parent=5 // pred_region
        %s577 = ssub.s32 %s19, 1
        %s578 = sand.u32 %s46, 1
        %s579 = sand.u32 %s46, 1
        %s580 = smul.addr %s579, 128
        %s581 = scalar_lea.vmem [#allocation2], %s580
        // Predicated region
        $region110: #{tpu_custom_call.1} parent=108 // pred_check
          %p582 = pneg %p59
        $region111: #{tpu_custom_call.1} parent=108 // pred_check_branch
          %584 = sbr.rel (%p582) target = $region113
        $region112: #{tpu_custom_call.1} parent=108 // pred_region
          _
        $region113: #{tpu_custom_call.1} parent=108 // pred_fallthru
          _
        %s585 = sand.u32 %s46, 1
        %s586 = sand.u32 %s46, 1
        %s587 = smul.addr %s586, 128
        %s588 = scalar_lea.vmem [#allocation2], %s587
        %p589 = pneg %p59
        %p590 = pneg %p56
        %p591 = pneg %p80
        %p592 = pneg %p77
        %p593 = pneg %p101
        %p594 = pneg %p98
        %p595 = pneg %p122
        %p596 = pneg %p119
        %p597 = pneg %p143
        %p598 = pneg %p140
        %p599 = pneg %p164
        %p600 = pneg %p161
        %p601 = pneg %p185
        %p602 = pneg %p182
        %p603 = pneg %p206
        %p604 = pneg %p203
        %p605 = pneg %p227
        %p606 = pneg %p224
        %p607 = pneg %p248
        %p608 = pneg %p245
        %p609 = pneg %p269
        %p610 = pneg %p266
        %p611 = pneg %p290
        %p612 = pneg %p287
        %p613 = pneg %p311
        %p614 = pneg %p308
        %p615 = pneg %p339
        %p616 = pneg %p336
        %s617 = smul.u32 16, %s29
        %p618 = scmp.lt.s32.totalorder %s28, 1
        %s619 = scalar_select %p618, %s28, 1
        %p620 = scmp.lt.s32.totalorder %s617, 31
        %s621 = scalar_select %p620, %s617, 31
        %s622 = smul.addr %s619, 32
        %s623 = sadd.s32 %s621, %s622
        %s624 = smul.addr %s623, 4
        %s625 = scalar_lea.vmem %s13, %s624
        %s626 = smul.u32 16, %s29
        %s627 = smul.u32 16, %s29
        %p628 = scmp.lt.s32.totalorder %s28, 1
        %s629 = scalar_select %p628, %s28, 1
        %p630 = scmp.lt.s32.totalorder %s627, 31
        %s631 = scalar_select %p630, %s627, 31
        %s632 = smul.addr %s629, 32
        %s633 = sadd.s32 %s631, %s632
        %s634 = smul.addr %s633, 4
        %s635 = scalar_lea.vmem %s13, %s634
        %s636 = smul.u32 16, %s29
        %v638 = vld [vmem:[%s581] sm:$0xf]
        %v639 = vld [vmem:[%s581 + $0x4] sm:$0xf]
        %v640 = vld [vmem:[%s581 + $0x8] sm:$0xf]
        %v641 = vld [vmem:[%s581 + $0xc] sm:$0xf]
        %v642 = vld [vmem:[%s581 + $0x10] sm:$0xf]
        %v643 = vld [vmem:[%s581 + $0x14] sm:$0xf]
        %v644 = vld [vmem:[%s581 + $0x18] sm:$0xf]
        %v645 = vld [vmem:[%s581 + $0x1c] sm:$0xf]
        %v646 = vld [vmem:[%s581 + $0x20] sm:$0xf]
        %v647 = vld [vmem:[%s581 + $0x24] sm:$0xf]
        %v648 = vld [vmem:[%s581 + $0x28] sm:$0xf]
        %v649 = vld [vmem:[%s581 + $0x2c] sm:$0xf]
        %v650 = vld [vmem:[%s581 + $0x30] sm:$0xf]
        %v651 = vld [vmem:[%s581 + $0x34] sm:$0xf]
        %v652 = vld [vmem:[%s581 + $0x38] sm:$0xf]
        %v653 = vld [vmem:[%s581 + $0x3c] sm:$0xf]
        %v654 = vld [vmem:[%s1] sm:$0x3]
        %v671 = vunpack.c.l.b16 %v638
        %v672 = vunpack.c.l.b16 %v639
        %v673 = vunpack.c.l.b16 %v640
        %v674 = vunpack.c.l.b16 %v641
        %v675 = vunpack.c.l.b16 %v642
        %v676 = vunpack.c.l.b16 %v643
        %v677 = vunpack.c.l.b16 %v644
        %v678 = vunpack.c.l.b16 %v645
        %v679 = vunpack.c.l.b16 %v646
        %v680 = vunpack.c.l.b16 %v647
        %v681 = vunpack.c.l.b16 %v648
        %v682 = vunpack.c.l.b16 %v649
        %v683 = vunpack.c.l.b16 %v650
        %v684 = vunpack.c.l.b16 %v651
        %v685 = vunpack.c.l.b16 %v652
        %v686 = vunpack.c.l.b16 %v653
        %v687 = vpack.c.b16 %v672, %v671
        %v688 = vpack.c.b16 %v674, %v673
        %v689 = vpack.c.b16 %v676, %v675
        %v690 = vpack.c.b16 %v678, %v677
        %v691 = vpack.c.b16 %v680, %v679
        %v692 = vpack.c.b16 %v682, %v681
        %v693 = vpack.c.b16 %v684, %v683
        %v694 = vpack.c.b16 %v686, %v685
        %vm695 = vcmask 23552
        %v697 = vsel %vm695, %v687, 0
        %v700 = vsel %vm695, %v688, 0
        %v703 = vsel %vm695, %v689, 0
        %v706 = vsel %vm695, %v690, 0
        %v709 = vsel %vm695, %v691, 0
        %v712 = vsel %vm695, %v692, 0
        %v715 = vsel %vm695, %v693, 0
        %v718 = vsel %vm695, %v694, 0
        %vm720 = vcmask 1040384
        %vm721 = vcmask 1041408
        %v722 = vsel %vm720, 4294967295, 65535
        %v723 = vsel %vm721, %v722, 0
        %v725 = vand.u32 %v654, %v723
        %727 = vmatpush.bf16.msra.mxu0 0
        %728 = vmatpush.bf16.msra.mxu0 0
        %729 = vmatpush.bf16.msra.mxu0 0
        %730 = vmatpush.bf16.msra.mxu0 0
        %731 = vmatpush.bf16.msra.mxu0 0
        %732 = vmatpush.bf16.msra.mxu0 0
        %733 = vmatpush.bf16.msra.mxu0 0
        %734 = vmatpush.bf16.msra.mxu0 %v725
        %735 = vmatmul.bf16.gmra.mxu0 %v697
        %v736 = vpop.f32.mrf.mxu0
        %v737 = vadd.f32 0.0, %v736
        %v738 = vpop.f32.mrf.mxu0
        %v739 = vadd.f32 0.0, %v738
        %740 = vmatmul.bf16.gmra.mxu0 %v700
        %v741 = vpop.f32.mrf.mxu0
        %v742 = vadd.f32 0.0, %v741
        %v743 = vpop.f32.mrf.mxu0
        %v744 = vadd.f32 0.0, %v743
        %745 = vmatmul.bf16.gmra.mxu0 %v703
        %v746 = vpop.f32.mrf.mxu0
        %v747 = vadd.f32 0.0, %v746
        %v748 = vpop.f32.mrf.mxu0
        %v749 = vadd.f32 0.0, %v748
        %750 = vmatmul.bf16.gmra.mxu0 %v706
        %v751 = vpop.f32.mrf.mxu0
        %v752 = vadd.f32 0.0, %v751
        %v753 = vpop.f32.mrf.mxu0
        %v754 = vadd.f32 0.0, %v753
        %755 = vmatmul.bf16.gmra.mxu0 %v709
        %v756 = vpop.f32.mrf.mxu0
        %v757 = vadd.f32 0.0, %v756
        %v758 = vpop.f32.mrf.mxu0
        %v759 = vadd.f32 0.0, %v758
        %760 = vmatmul.bf16.gmra.mxu0 %v712
        %v761 = vpop.f32.mrf.mxu0
        %v762 = vadd.f32 0.0, %v761
        %v763 = vpop.f32.mrf.mxu0
        %v764 = vadd.f32 0.0, %v763
        %765 = vmatmul.bf16.gmra.mxu0 %v715
        %v766 = vpop.f32.mrf.mxu0
        %v767 = vadd.f32 0.0, %v766
        %v768 = vpop.f32.mrf.mxu0
        %v769 = vadd.f32 0.0, %v768
        %770 = vmatmul.bf16.gmra.mxu0 %v718
        %v771 = vpop.f32.mrf.mxu0
        %v772 = vadd.f32 0.0, %v771
        %v773 = vpop.f32.mrf.mxu0
        %v774 = vadd.f32 0.0, %v773
        %775 = vdwg.mxu0
        %v776 = vld [vmem:[%s2] sm:$0x1]
        %v778 = vperm.slane %v776, 0
        %v780 = vmul.f32 %v737, %v778
        %v781 = vmul.f32 %v739, %v778
        %v782 = vmul.f32 %v742, %v778
        %v783 = vmul.f32 %v744, %v778
        %v784 = vmul.f32 %v747, %v778
        %v785 = vmul.f32 %v749, %v778
        %v786 = vmul.f32 %v752, %v778
        %v787 = vmul.f32 %v754, %v778
        %v788 = vmul.f32 %v757, %v778
        %v789 = vmul.f32 %v759, %v778
        %v790 = vmul.f32 %v762, %v778
        %v791 = vmul.f32 %v764, %v778
        %v792 = vmul.f32 %v767, %v778
        %v793 = vmul.f32 %v769, %v778
        %v794 = vmul.f32 %v772, %v778
        %v795 = vmul.f32 %v774, %v778
        %v796 = vld [vmem:[%s3] sm:$0x1]
        %v798 = vperm.slane %v796, 0
        %v800 = vadd.f32 %v780, %v798
        %v801 = vadd.f32 %v781, %v798
        %v802 = vadd.f32 %v782, %v798
        %v803 = vadd.f32 %v783, %v798
        %v804 = vadd.f32 %v784, %v798
        %v805 = vadd.f32 %v785, %v798
        %v806 = vadd.f32 %v786, %v798
        %v807 = vadd.f32 %v787, %v798
        %v808 = vadd.f32 %v788, %v798
        %v809 = vadd.f32 %v789, %v798
        %v810 = vadd.f32 %v790, %v798
        %v811 = vadd.f32 %v791, %v798
        %v812 = vadd.f32 %v792, %v798
        %v813 = vadd.f32 %v793, %v798
        %v814 = vadd.f32 %v794, %v798
        %v815 = vadd.f32 %v795, %v798
        %v816 = vmax.f32 %v800, 0.0
        %v817 = vmax.f32 %v801, 0.0
        %v818 = vmax.f32 %v802, 0.0
        %v819 = vmax.f32 %v803, 0.0
        %v820 = vmax.f32 %v804, 0.0
        %v821 = vmax.f32 %v805, 0.0
        %v822 = vmax.f32 %v806, 0.0
        %v823 = vmax.f32 %v807, 0.0
        %v824 = vmax.f32 %v808, 0.0
        %v825 = vmax.f32 %v809, 0.0
        %v826 = vmax.f32 %v810, 0.0
        %v827 = vmax.f32 %v811, 0.0
        %v828 = vmax.f32 %v812, 0.0
        %v829 = vmax.f32 %v813, 0.0
        %v830 = vmax.f32 %v814, 0.0
        %v831 = vmax.f32 %v815, 0.0
        %v832 = vpack.c.bf16 %v817, %v816
        %v833 = vpack.c.bf16 %v819, %v818
        %v834 = vpack.c.bf16 %v821, %v820
        %v835 = vpack.c.bf16 %v823, %v822
        %v836 = vpack.c.bf16 %v825, %v824
        %v837 = vpack.c.bf16 %v827, %v826
        %v838 = vpack.c.bf16 %v829, %v828
        %v839 = vpack.c.bf16 %v831, %v830
        %v840 = vld [vmem:[%s4] sm:$0xf]
        %v841 = vld [vmem:[%s4 + $0x4] sm:$0xf]
        %v842 = vld [vmem:[%s4 + $0x8] sm:$0xf]
        %v843 = vld [vmem:[%s4 + $0xc] sm:$0xf]
        %v844 = vld [vmem:[%s4 + $0x10] sm:$0xf]
        %v845 = vld [vmem:[%s4 + $0x14] sm:$0xf]
        %v846 = vld [vmem:[%s4 + $0x18] sm:$0xf]
        %v847 = vld [vmem:[%s4 + $0x1c] sm:$0xf]
        %v856 = vunpack.c.l.b16 %v840
        %v857 = vunpack.c.l.b16 %v841
        %v858 = vunpack.c.l.b16 %v842
        %v859 = vunpack.c.l.b16 %v843
        %v860 = vunpack.c.l.b16 %v844
        %v861 = vunpack.c.l.b16 %v845
        %v862 = vunpack.c.l.b16 %v846
        %v863 = vunpack.c.l.b16 %v847
        %v864 = vpack.c.b16 %v857, %v856
        %v865 = vpack.c.b16 %v859, %v858
        %v866 = vpack.c.b16 %v861, %v860
        %v867 = vpack.c.b16 %v863, %v862
        %vm872 = vcmask 523264
        %v874 = vsel %vm872, %v832, 0
        %v877 = vsel %vm872, %v833, 0
        %v880 = vsel %vm872, %v834, 0
        %v883 = vsel %vm872, %v835, 0
        %v886 = vsel %vm872, %v836, 0
        %v889 = vsel %vm872, %v837, 0
        %v892 = vsel %vm872, %v838, 0
        %v895 = vsel %vm872, %v839, 0
        %897 = vmatpush.bf16.msra.mxu0 0
        %898 = vmatpush.bf16.msra.mxu0 0
        %899 = vmatpush.bf16.msra.mxu0 0
        %900 = vmatpush.bf16.msra.mxu0 0
        %901 = vmatpush.bf16.msra.mxu0 %v867
        %902 = vmatpush.bf16.msra.mxu0 %v866
        %903 = vmatpush.bf16.msra.mxu0 %v865
        %904 = vmatpush.bf16.msra.mxu0 %v864
        %905 = vmatmul.bf16.gmra.mxu0 %v874
        %v906 = vpop.f32.mrf.mxu0
        %v907 = vadd.f32 0.0, %v906
        %v908 = vpop.f32.mrf.mxu0
        %v909 = vadd.f32 0.0, %v908
        %910 = vmatmul.bf16.gmra.mxu0 %v877
        %v911 = vpop.f32.mrf.mxu0
        %v912 = vadd.f32 0.0, %v911
        %v913 = vpop.f32.mrf.mxu0
        %v914 = vadd.f32 0.0, %v913
        %915 = vmatmul.bf16.gmra.mxu0 %v880
        %v916 = vpop.f32.mrf.mxu0
        %v917 = vadd.f32 0.0, %v916
        %v918 = vpop.f32.mrf.mxu0
        %v919 = vadd.f32 0.0, %v918
        %920 = vmatmul.bf16.gmra.mxu0 %v883
        %v921 = vpop.f32.mrf.mxu0
        %v922 = vadd.f32 0.0, %v921
        %v923 = vpop.f32.mrf.mxu0
        %v924 = vadd.f32 0.0, %v923
        %925 = vmatmul.bf16.gmra.mxu0 %v886
        %v926 = vpop.f32.mrf.mxu0
        %v927 = vadd.f32 0.0, %v926
        %v928 = vpop.f32.mrf.mxu0
        %v929 = vadd.f32 0.0, %v928
        %930 = vmatmul.bf16.gmra.mxu0 %v889
        %v931 = vpop.f32.mrf.mxu0
        %v932 = vadd.f32 0.0, %v931
        %v933 = vpop.f32.mrf.mxu0
        %v934 = vadd.f32 0.0, %v933
        %935 = vmatmul.bf16.gmra.mxu0 %v892
        %v936 = vpop.f32.mrf.mxu0
        %v937 = vadd.f32 0.0, %v936
        %v938 = vpop.f32.mrf.mxu0
        %v939 = vadd.f32 0.0, %v938
        %940 = vmatmul.bf16.gmra.mxu0 %v895
        %v941 = vpop.f32.mrf.mxu0
        %v942 = vadd.f32 0.0, %v941
        %v943 = vpop.f32.mrf.mxu0
        %v944 = vadd.f32 0.0, %v943
        %945 = vdwg.mxu0
        %v946 = vld [vmem:[%s5] sm:$0x1]
        %v948 = vperm.slane %v946, 0
        %v950 = vmul.f32 %v907, %v948
        %v951 = vmul.f32 %v909, %v948
        %v952 = vmul.f32 %v912, %v948
        %v953 = vmul.f32 %v914, %v948
        %v954 = vmul.f32 %v917, %v948
        %v955 = vmul.f32 %v919, %v948
        %v956 = vmul.f32 %v922, %v948
        %v957 = vmul.f32 %v924, %v948
        %v958 = vmul.f32 %v927, %v948
        %v959 = vmul.f32 %v929, %v948
        %v960 = vmul.f32 %v932, %v948
        %v961 = vmul.f32 %v934, %v948
        %v962 = vmul.f32 %v937, %v948
        %v963 = vmul.f32 %v939, %v948
        %v964 = vmul.f32 %v942, %v948
        %v965 = vmul.f32 %v944, %v948
        %v966 = vld [vmem:[%s6] sm:$0x1]
        %v968 = vperm.slane %v966, 0
        %v970 = vadd.f32 %v950, %v968
        %v971 = vadd.f32 %v951, %v968
        %v972 = vadd.f32 %v952, %v968
        %v973 = vadd.f32 %v953, %v968
        %v974 = vadd.f32 %v954, %v968
        %v975 = vadd.f32 %v955, %v968
        %v976 = vadd.f32 %v956, %v968
        %v977 = vadd.f32 %v957, %v968
        %v978 = vadd.f32 %v958, %v968
        %v979 = vadd.f32 %v959, %v968
        %v980 = vadd.f32 %v960, %v968
        %v981 = vadd.f32 %v961, %v968
        %v982 = vadd.f32 %v962, %v968
        %v983 = vadd.f32 %v963, %v968
        %v984 = vadd.f32 %v964, %v968
        %v985 = vadd.f32 %v965, %v968
        %v986 = vmax.f32 %v970, 0.0
        %v987 = vmax.f32 %v971, 0.0
        %v988 = vmax.f32 %v972, 0.0
        %v989 = vmax.f32 %v973, 0.0
        %v990 = vmax.f32 %v974, 0.0
        %v991 = vmax.f32 %v975, 0.0
        %v992 = vmax.f32 %v976, 0.0
        %v993 = vmax.f32 %v977, 0.0
        %v994 = vmax.f32 %v978, 0.0
        %v995 = vmax.f32 %v979, 0.0
        %v996 = vmax.f32 %v980, 0.0
        %v997 = vmax.f32 %v981, 0.0
        %v998 = vmax.f32 %v982, 0.0
        %v999 = vmax.f32 %v983, 0.0
        %v1000 = vmax.f32 %v984, 0.0
        %v1001 = vmax.f32 %v985, 0.0
        %v1002 = vpack.c.bf16 %v987, %v986
        %v1003 = vpack.c.bf16 %v989, %v988
        %v1004 = vpack.c.bf16 %v991, %v990
        %v1005 = vpack.c.bf16 %v993, %v992
        %v1006 = vpack.c.bf16 %v995, %v994
        %v1007 = vpack.c.bf16 %v997, %v996
        %v1008 = vpack.c.bf16 %v999, %v998
        %v1009 = vpack.c.bf16 %v1001, %v1000
        %v1010 = vld [vmem:[%s7] sm:$0xff]
        %v1011 = vld [vmem:[%s7 + $0x8] sm:$0xff]
        %v1012 = vld [vmem:[%s7 + $0x10] sm:$0xff]
        %v1013 = vld [vmem:[%s7 + $0x18] sm:$0xff]
        %v1014 = vld [vmem:[%s7 + $0x20] sm:$0xff]
        %v1015 = vld [vmem:[%s7 + $0x28] sm:$0xff]
        %v1016 = vld [vmem:[%s7 + $0x30] sm:$0xff]
        %v1017 = vld [vmem:[%s7 + $0x38] sm:$0xff]
        %v1018 = vld [vmem:[%s7 + $0x40] sm:$0xff]
        %v1019 = vld [vmem:[%s7 + $0x48] sm:$0xff]
        %v1020 = vld [vmem:[%s7 + $0x50] sm:$0xff]
        %v1021 = vld [vmem:[%s7 + $0x58] sm:$0xff]
        %v1022 = vld [vmem:[%s7 + $0x60] sm:$0xff]
        %v1023 = vld [vmem:[%s7 + $0x68] sm:$0xff]
        %v1024 = vld [vmem:[%s7 + $0x70] sm:$0xff]
        %v1025 = vld [vmem:[%s7 + $0x78] sm:$0xff]
        %v1026 = vld [vmem:[%s7 + $0x80] sm:$0xff]
        %v1027 = vld [vmem:[%s7 + $0x88] sm:$0xff]
        %v1028 = vld [vmem:[%s7 + $0x90] sm:$0xff]
        %v1029 = vld [vmem:[%s7 + $0x98] sm:$0xff]
        %v1030 = vld [vmem:[%s7 + $0xa0] sm:$0xff]
        %v1031 = vld [vmem:[%s7 + $0xa8] sm:$0xff]
        %v1032 = vld [vmem:[%s7 + $0xb0] sm:$0xff]
        %v1033 = vld [vmem:[%s7 + $0xb8] sm:$0xff]
        %v1034 = vld [vmem:[%s7 + $0xc0] sm:$0xff]
        %v1035 = vld [vmem:[%s7 + $0xc8] sm:$0xff]
        %v1036 = vld [vmem:[%s7 + $0xd0] sm:$0xff]
        %v1037 = vld [vmem:[%s7 + $0xd8] sm:$0xff]
        %v1038 = vld [vmem:[%s7 + $0xe0] sm:$0xff]
        %v1039 = vld [vmem:[%s7 + $0xe8] sm:$0xff]
        %v1040 = vld [vmem:[%s7 + $0xf0] sm:$0xff]
        %v1041 = vld [vmem:[%s7 + $0xf8] sm:$0xff]
        %v1042 = vld [vmem:[%s7 + $0x100] sm:$0xff]
        %v1043 = vld [vmem:[%s7 + $0x108] sm:$0xff]
        %v1044 = vld [vmem:[%s7 + $0x110] sm:$0xff]
        %v1045 = vld [vmem:[%s7 + $0x118] sm:$0xff]
        %v1046 = vld [vmem:[%s7 + $0x120] sm:$0xff]
        %v1047 = vld [vmem:[%s7 + $0x128] sm:$0xff]
        %v1048 = vld [vmem:[%s7 + $0x130] sm:$0xff]
        %v1049 = vld [vmem:[%s7 + $0x138] sm:$0xff]
        %v1050 = vld [vmem:[%s7 + $0x140] sm:$0xff]
        %v1051 = vld [vmem:[%s7 + $0x148] sm:$0xff]
        %v1052 = vld [vmem:[%s7 + $0x150] sm:$0xff]
        %v1053 = vld [vmem:[%s7 + $0x158] sm:$0xff]
        %v1054 = vld [vmem:[%s7 + $0x160] sm:$0xff]
        %v1055 = vld [vmem:[%s7 + $0x168] sm:$0xff]
        %v1056 = vld [vmem:[%s7 + $0x170] sm:$0xff]
        %v1057 = vld [vmem:[%s7 + $0x178] sm:$0xff]
        %v1058 = vld [vmem:[%s7 + $0x180] sm:$0xff]
        %v1059 = vld [vmem:[%s7 + $0x188] sm:$0xff]
        %v1060 = vld [vmem:[%s7 + $0x190] sm:$0xff]
        %v1061 = vld [vmem:[%s7 + $0x198] sm:$0xff]
        %v1062 = vld [vmem:[%s7 + $0x1a0] sm:$0xff]
        %v1063 = vld [vmem:[%s7 + $0x1a8] sm:$0xff]
        %v1064 = vld [vmem:[%s7 + $0x1b0] sm:$0xff]
        %v1065 = vld [vmem:[%s7 + $0x1b8] sm:$0xff]
        %v1066 = vld [vmem:[%s7 + $0x1c0] sm:$0xff]
        %v1067 = vld [vmem:[%s7 + $0x1c8] sm:$0xff]
        %v1068 = vld [vmem:[%s7 + $0x1d0] sm:$0xff]
        %v1069 = vld [vmem:[%s7 + $0x1d8] sm:$0xff]
        %v1070 = vld [vmem:[%s7 + $0x1e0] sm:$0xff]
        %v1071 = vld [vmem:[%s7 + $0x1e8] sm:$0xff]
        %v1072 = vld [vmem:[%s7 + $0x1f0] sm:$0xff]
        %v1073 = vld [vmem:[%s7 + $0x1f8] sm:$0xff]
        %v1138 = vunpack.c.l.b16 %v1010
        %v1139 = vunpack.c.h.b16 %v1010
        %v1140 = vunpack.c.l.b16 %v1011
        %v1141 = vunpack.c.h.b16 %v1011
        %v1142 = vunpack.c.l.b16 %v1012
        %v1143 = vunpack.c.h.b16 %v1012
        %v1144 = vunpack.c.l.b16 %v1013
        %v1145 = vunpack.c.h.b16 %v1013
        %v1146 = vunpack.c.l.b16 %v1014
        %v1147 = vunpack.c.h.b16 %v1014
        %v1148 = vunpack.c.l.b16 %v1015
        %v1149 = vunpack.c.h.b16 %v1015
        %v1150 = vunpack.c.l.b16 %v1016
        %v1151 = vunpack.c.h.b16 %v1016
        %v1152 = vunpack.c.l.b16 %v1017
        %v1153 = vunpack.c.h.b16 %v1017
        %v1154 = vunpack.c.l.b16 %v1018
        %v1155 = vunpack.c.h.b16 %v1018
        %v1156 = vunpack.c.l.b16 %v1019
        %v1157 = vunpack.c.h.b16 %v1019
        %v1158 = vunpack.c.l.b16 %v1020
        %v1159 = vunpack.c.h.b16 %v1020
        %v1160 = vunpack.c.l.b16 %v1021
        %v1161 = vunpack.c.h.b16 %v1021
        %v1162 = vunpack.c.l.b16 %v1022
        %v1163 = vunpack.c.h.b16 %v1022
        %v1164 = vunpack.c.l.b16 %v1023
        %v1165 = vunpack.c.h.b16 %v1023
        %v1166 = vunpack.c.l.b16 %v1024
        %v1167 = vunpack.c.h.b16 %v1024
        %v1168 = vunpack.c.l.b16 %v1025
        %v1169 = vunpack.c.h.b16 %v1025
        %v1170 = vunpack.c.l.b16 %v1026
        %v1171 = vunpack.c.h.b16 %v1026
        %v1172 = vunpack.c.l.b16 %v1027
        %v1173 = vunpack.c.h.b16 %v1027
        %v1174 = vunpack.c.l.b16 %v1028
        %v1175 = vunpack.c.h.b16 %v1028
        %v1176 = vunpack.c.l.b16 %v1029
        %v1177 = vunpack.c.h.b16 %v1029
        %v1178 = vunpack.c.l.b16 %v1030
        %v1179 = vunpack.c.h.b16 %v1030
        %v1180 = vunpack.c.l.b16 %v1031
        %v1181 = vunpack.c.h.b16 %v1031
        %v1182 = vunpack.c.l.b16 %v1032
        %v1183 = vunpack.c.h.b16 %v1032
        %v1184 = vunpack.c.l.b16 %v1033
        %v1185 = vunpack.c.h.b16 %v1033
        %v1186 = vunpack.c.l.b16 %v1034
        %v1187 = vunpack.c.h.b16 %v1034
        %v1188 = vunpack.c.l.b16 %v1035
        %v1189 = vunpack.c.h.b16 %v1035
        %v1190 = vunpack.c.l.b16 %v1036
        %v1191 = vunpack.c.h.b16 %v1036
        %v1192 = vunpack.c.l.b16 %v1037
        %v1193 = vunpack.c.h.b16 %v1037
        %v1194 = vunpack.c.l.b16 %v1038
        %v1195 = vunpack.c.h.b16 %v1038
        %v1196 = vunpack.c.l.b16 %v1039
        %v1197 = vunpack.c.h.b16 %v1039
        %v1198 = vunpack.c.l.b16 %v1040
        %v1199 = vunpack.c.h.b16 %v1040
        %v1200 = vunpack.c.l.b16 %v1041
        %v1201 = vunpack.c.h.b16 %v1041
        %v1202 = vunpack.c.l.b16 %v1042
        %v1203 = vunpack.c.h.b16 %v1042
        %v1204 = vunpack.c.l.b16 %v1043
        %v1205 = vunpack.c.h.b16 %v1043
        %v1206 = vunpack.c.l.b16 %v1044
        %v1207 = vunpack.c.h.b16 %v1044
        %v1208 = vunpack.c.l.b16 %v1045
        %v1209 = vunpack.c.h.b16 %v1045
        %v1210 = vunpack.c.l.b16 %v1046
        %v1211 = vunpack.c.h.b16 %v1046
        %v1212 = vunpack.c.l.b16 %v1047
        %v1213 = vunpack.c.h.b16 %v1047
        %v1214 = vunpack.c.l.b16 %v1048
        %v1215 = vunpack.c.h.b16 %v1048
        %v1216 = vunpack.c.l.b16 %v1049
        %v1217 = vunpack.c.h.b16 %v1049
        %v1218 = vunpack.c.l.b16 %v1050
        %v1219 = vunpack.c.h.b16 %v1050
        %v1220 = vunpack.c.l.b16 %v1051
        %v1221 = vunpack.c.h.b16 %v1051
        %v1222 = vunpack.c.l.b16 %v1052
        %v1223 = vunpack.c.h.b16 %v1052
        %v1224 = vunpack.c.l.b16 %v1053
        %v1225 = vunpack.c.h.b16 %v1053
        %v1226 = vunpack.c.l.b16 %v1054
        %v1227 = vunpack.c.h.b16 %v1054
        %v1228 = vunpack.c.l.b16 %v1055
        %v1229 = vunpack.c.h.b16 %v1055
        %v1230 = vunpack.c.l.b16 %v1056
        %v1231 = vunpack.c.h.b16 %v1056
        %v1232 = vunpack.c.l.b16 %v1057
        %v1233 = vunpack.c.h.b16 %v1057
        %v1234 = vunpack.c.l.b16 %v1058
        %v1235 = vunpack.c.h.b16 %v1058
        %v1236 = vunpack.c.l.b16 %v1059
        %v1237 = vunpack.c.h.b16 %v1059
        %v1238 = vunpack.c.l.b16 %v1060
        %v1239 = vunpack.c.h.b16 %v1060
        %v1240 = vunpack.c.l.b16 %v1061
        %v1241 = vunpack.c.h.b16 %v1061
        %v1242 = vunpack.c.l.b16 %v1062
        %v1243 = vunpack.c.h.b16 %v1062
        %v1244 = vunpack.c.l.b16 %v1063
        %v1245 = vunpack.c.h.b16 %v1063
        %v1246 = vunpack.c.l.b16 %v1064
        %v1247 = vunpack.c.h.b16 %v1064
        %v1248 = vunpack.c.l.b16 %v1065
        %v1249 = vunpack.c.h.b16 %v1065
        %v1250 = vunpack.c.l.b16 %v1066
        %v1251 = vunpack.c.h.b16 %v1066
        %v1252 = vunpack.c.l.b16 %v1067
        %v1253 = vunpack.c.h.b16 %v1067
        %v1254 = vunpack.c.l.b16 %v1068
        %v1255 = vunpack.c.h.b16 %v1068
        %v1256 = vunpack.c.l.b16 %v1069
        %v1257 = vunpack.c.h.b16 %v1069
        %v1258 = vunpack.c.l.b16 %v1070
        %v1259 = vunpack.c.h.b16 %v1070
        %v1260 = vunpack.c.l.b16 %v1071
        %v1261 = vunpack.c.h.b16 %v1071
        %v1262 = vunpack.c.l.b16 %v1072
        %v1263 = vunpack.c.h.b16 %v1072
        %v1264 = vunpack.c.l.b16 %v1073
        %v1265 = vunpack.c.h.b16 %v1073
        %v1266 = vpack.c.b16 %v1146, %v1138
        %v1267 = vpack.c.b16 %v1147, %v1139
        %v1268 = vpack.c.b16 %v1148, %v1140
        %v1269 = vpack.c.b16 %v1149, %v1141
        %v1270 = vpack.c.b16 %v1150, %v1142
        %v1271 = vpack.c.b16 %v1151, %v1143
        %v1272 = vpack.c.b16 %v1152, %v1144
        %v1273 = vpack.c.b16 %v1153, %v1145
        %v1274 = vpack.c.b16 %v1162, %v1154
        %v1275 = vpack.c.b16 %v1163, %v1155
        %v1276 = vpack.c.b16 %v1164, %v1156
        %v1277 = vpack.c.b16 %v1165, %v1157
        %v1278 = vpack.c.b16 %v1166, %v1158
        %v1279 = vpack.c.b16 %v1167, %v1159
        %v1280 = vpack.c.b16 %v1168, %v1160
        %v1281 = vpack.c.b16 %v1169, %v1161
        %v1282 = vpack.c.b16 %v1178, %v1170
        %v1283 = vpack.c.b16 %v1179, %v1171
        %v1284 = vpack.c.b16 %v1180, %v1172
        %v1285 = vpack.c.b16 %v1181, %v1173
        %v1286 = vpack.c.b16 %v1182, %v1174
        %v1287 = vpack.c.b16 %v1183, %v1175
        %v1288 = vpack.c.b16 %v1184, %v1176
        %v1289 = vpack.c.b16 %v1185, %v1177
        %v1290 = vpack.c.b16 %v1194, %v1186
        %v1291 = vpack.c.b16 %v1195, %v1187
        %v1292 = vpack.c.b16 %v1196, %v1188
        %v1293 = vpack.c.b16 %v1197, %v1189
        %v1294 = vpack.c.b16 %v1198, %v1190
        %v1295 = vpack.c.b16 %v1199, %v1191
        %v1296 = vpack.c.b16 %v1200, %v1192
        %v1297 = vpack.c.b16 %v1201, %v1193
        %v1298 = vpack.c.b16 %v1210, %v1202
        %v1299 = vpack.c.b16 %v1211, %v1203
        %v1300 = vpack.c.b16 %v1212, %v1204
        %v1301 = vpack.c.b16 %v1213, %v1205
        %v1302 = vpack.c.b16 %v1214, %v1206
        %v1303 = vpack.c.b16 %v1215, %v1207
        %v1304 = vpack.c.b16 %v1216, %v1208
        %v1305 = vpack.c.b16 %v1217, %v1209
        %v1306 = vpack.c.b16 %v1226, %v1218
        %v1307 = vpack.c.b16 %v1227, %v1219
        %v1308 = vpack.c.b16 %v1228, %v1220
        %v1309 = vpack.c.b16 %v1229, %v1221
        %v1310 = vpack.c.b16 %v1230, %v1222
        %v1311 = vpack.c.b16 %v1231, %v1223
        %v1312 = vpack.c.b16 %v1232, %v1224
        %v1313 = vpack.c.b16 %v1233, %v1225
        %v1314 = vpack.c.b16 %v1242, %v1234
        %v1315 = vpack.c.b16 %v1243, %v1235
        %v1316 = vpack.c.b16 %v1244, %v1236
        %v1317 = vpack.c.b16 %v1245, %v1237
        %v1318 = vpack.c.b16 %v1246, %v1238
        %v1319 = vpack.c.b16 %v1247, %v1239
        %v1320 = vpack.c.b16 %v1248, %v1240
        %v1321 = vpack.c.b16 %v1249, %v1241
        %v1322 = vpack.c.b16 %v1258, %v1250
        %v1323 = vpack.c.b16 %v1259, %v1251
        %v1324 = vpack.c.b16 %v1260, %v1252
        %v1325 = vpack.c.b16 %v1261, %v1253
        %v1326 = vpack.c.b16 %v1262, %v1254
        %v1327 = vpack.c.b16 %v1263, %v1255
        %v1328 = vpack.c.b16 %v1264, %v1256
        %v1329 = vpack.c.b16 %v1265, %v1257
        %1394 = vmatpush.bf16.msra.mxu0 %v1322
        %1395 = vmatpush.bf16.msra.mxu0 %v1314
        %1396 = vmatpush.bf16.msra.mxu0 %v1306
        %1397 = vmatpush.bf16.msra.mxu0 %v1298
        %1398 = vmatpush.bf16.msra.mxu0 %v1290
        %1399 = vmatpush.bf16.msra.mxu0 %v1282
        %1400 = vmatpush.bf16.msra.mxu0 %v1274
        %1401 = vmatpush.bf16.msra.mxu0 %v1266
        %1402 = vmatmul.bf16.gmra.mxu0 %v1002
        %v1403 = vpop.f32.mrf.mxu0
        %v1404 = vadd.f32 0.0, %v1403
        %v1405 = vpop.f32.mrf.mxu0
        %v1406 = vadd.f32 0.0, %v1405
        %1407 = vmatmul.bf16.gmra.mxu0 %v1003
        %v1408 = vpop.f32.mrf.mxu0
        %v1409 = vadd.f32 0.0, %v1408
        %v1410 = vpop.f32.mrf.mxu0
        %v1411 = vadd.f32 0.0, %v1410
        %1412 = vmatmul.bf16.gmra.mxu0 %v1004
        %v1413 = vpop.f32.mrf.mxu0
        %v1414 = vadd.f32 0.0, %v1413
        %v1415 = vpop.f32.mrf.mxu0
        %v1416 = vadd.f32 0.0, %v1415
        %1417 = vmatmul.bf16.gmra.mxu0 %v1005
        %v1418 = vpop.f32.mrf.mxu0
        %v1419 = vadd.f32 0.0, %v1418
        %v1420 = vpop.f32.mrf.mxu0
        %v1421 = vadd.f32 0.0, %v1420
        %1422 = vmatmul.bf16.gmra.mxu0 %v1006
        %v1423 = vpop.f32.mrf.mxu0
        %v1424 = vadd.f32 0.0, %v1423
        %v1425 = vpop.f32.mrf.mxu0
        %v1426 = vadd.f32 0.0, %v1425
        %1427 = vmatmul.bf16.gmra.mxu0 %v1007
        %v1428 = vpop.f32.mrf.mxu0
        %v1429 = vadd.f32 0.0, %v1428
        %v1430 = vpop.f32.mrf.mxu0
        %v1431 = vadd.f32 0.0, %v1430
        %1432 = vmatmul.bf16.gmra.mxu0 %v1008
        %v1433 = vpop.f32.mrf.mxu0
        %v1434 = vadd.f32 0.0, %v1433
        %v1435 = vpop.f32.mrf.mxu0
        %v1436 = vadd.f32 0.0, %v1435
        %1437 = vmatmul.bf16.gmra.mxu0 %v1009
        %v1438 = vpop.f32.mrf.mxu0
        %v1439 = vadd.f32 0.0, %v1438
        %v1440 = vpop.f32.mrf.mxu0
        %v1441 = vadd.f32 0.0, %v1440
        %1442 = vdwg.mxu0
        %1443 = vmatpush.bf16.msra.mxu0 %v1323
        %1444 = vmatpush.bf16.msra.mxu0 %v1315
        %1445 = vmatpush.bf16.msra.mxu0 %v1307
        %1446 = vmatpush.bf16.msra.mxu0 %v1299
        %1447 = vmatpush.bf16.msra.mxu0 %v1291
        %1448 = vmatpush.bf16.msra.mxu0 %v1283
        %1449 = vmatpush.bf16.msra.mxu0 %v1275
        %1450 = vmatpush.bf16.msra.mxu0 %v1267
        %1451 = vmatmul.bf16.gmra.mxu0 %v1002
        %v1452 = vpop.f32.mrf.mxu0
        %v1453 = vadd.f32 0.0, %v1452
        %v1454 = vpop.f32.mrf.mxu0
        %v1455 = vadd.f32 0.0, %v1454
        %1456 = vmatmul.bf16.gmra.mxu0 %v1003
        %v1457 = vpop.f32.mrf.mxu0
        %v1458 = vadd.f32 0.0, %v1457
        %v1459 = vpop.f32.mrf.mxu0
        %v1460 = vadd.f32 0.0, %v1459
        %1461 = vmatmul.bf16.gmra.mxu0 %v1004
        %v1462 = vpop.f32.mrf.mxu0
        %v1463 = vadd.f32 0.0, %v1462
        %v1464 = vpop.f32.mrf.mxu0
        %v1465 = vadd.f32 0.0, %v1464
        %1466 = vmatmul.bf16.gmra.mxu0 %v1005
        %v1467 = vpop.f32.mrf.mxu0
        %v1468 = vadd.f32 0.0, %v1467
        %v1469 = vpop.f32.mrf.mxu0
        %v1470 = vadd.f32 0.0, %v1469
        %1471 = vmatmul.bf16.gmra.mxu0 %v1006
        %v1472 = vpop.f32.mrf.mxu0
        %v1473 = vadd.f32 0.0, %v1472
        %v1474 = vpop.f32.mrf.mxu0
        %v1475 = vadd.f32 0.0, %v1474
        %1476 = vmatmul.bf16.gmra.mxu0 %v1007
        %v1477 = vpop.f32.mrf.mxu0
        %v1478 = vadd.f32 0.0, %v1477
        %v1479 = vpop.f32.mrf.mxu0
        %v1480 = vadd.f32 0.0, %v1479
        %1481 = vmatmul.bf16.gmra.mxu0 %v1008
        %v1482 = vpop.f32.mrf.mxu0
        %v1483 = vadd.f32 0.0, %v1482
        %v1484 = vpop.f32.mrf.mxu0
        %v1485 = vadd.f32 0.0, %v1484
        %1486 = vmatmul.bf16.gmra.mxu0 %v1009
        %v1487 = vpop.f32.mrf.mxu0
        %v1488 = vadd.f32 0.0, %v1487
        %v1489 = vpop.f32.mrf.mxu0
        %v1490 = vadd.f32 0.0, %v1489
        %1491 = vdwg.mxu0
        %1492 = vmatpush.bf16.msra.mxu0 %v1324
        %1493 = vmatpush.bf16.msra.mxu0 %v1316
        %1494 = vmatpush.bf16.msra.mxu0 %v1308
        %1495 = vmatpush.bf16.msra.mxu0 %v1300
        %1496 = vmatpush.bf16.msra.mxu0 %v1292
        %1497 = vmatpush.bf16.msra.mxu0 %v1284
        %1498 = vmatpush.bf16.msra.mxu0 %v1276
        %1499 = vmatpush.bf16.msra.mxu0 %v1268
        %1500 = vmatmul.bf16.gmra.mxu0 %v1002
        %v1501 = vpop.f32.mrf.mxu0
        %v1502 = vadd.f32 0.0, %v1501
        %v1503 = vpop.f32.mrf.mxu0
        %v1504 = vadd.f32 0.0, %v1503
        %1505 = vmatmul.bf16.gmra.mxu0 %v1003
        %v1506 = vpop.f32.mrf.mxu0
        %v1507 = vadd.f32 0.0, %v1506
        %v1508 = vpop.f32.mrf.mxu0
        %v1509 = vadd.f32 0.0, %v1508
        %1510 = vmatmul.bf16.gmra.mxu0 %v1004
        %v1511 = vpop.f32.mrf.mxu0
        %v1512 = vadd.f32 0.0, %v1511
        %v1513 = vpop.f32.mrf.mxu0
        %v1514 = vadd.f32 0.0, %v1513
        %1515 = vmatmul.bf16.gmra.mxu0 %v1005
        %v1516 = vpop.f32.mrf.mxu0
        %v1517 = vadd.f32 0.0, %v1516
        %v1518 = vpop.f32.mrf.mxu0
        %v1519 = vadd.f32 0.0, %v1518
        %1520 = vmatmul.bf16.gmra.mxu0 %v1006
        %v1521 = vpop.f32.mrf.mxu0
        %v1522 = vadd.f32 0.0, %v1521
        %v1523 = vpop.f32.mrf.mxu0
        %v1524 = vadd.f32 0.0, %v1523
        %1525 = vmatmul.bf16.gmra.mxu0 %v1007
        %v1526 = vpop.f32.mrf.mxu0
        %v1527 = vadd.f32 0.0, %v1526
        %v1528 = vpop.f32.mrf.mxu0
        %v1529 = vadd.f32 0.0, %v1528
        %1530 = vmatmul.bf16.gmra.mxu0 %v1008
        %v1531 = vpop.f32.mrf.mxu0
        %v1532 = vadd.f32 0.0, %v1531
        %v1533 = vpop.f32.mrf.mxu0
        %v1534 = vadd.f32 0.0, %v1533
        %1535 = vmatmul.bf16.gmra.mxu0 %v1009
        %v1536 = vpop.f32.mrf.mxu0
        %v1537 = vadd.f32 0.0, %v1536
        %v1538 = vpop.f32.mrf.mxu0
        %v1539 = vadd.f32 0.0, %v1538
        %1540 = vdwg.mxu0
        %1541 = vmatpush.bf16.msra.mxu0 %v1325
        %1542 = vmatpush.bf16.msra.mxu0 %v1317
        %1543 = vmatpush.bf16.msra.mxu0 %v1309
        %1544 = vmatpush.bf16.msra.mxu0 %v1301
        %1545 = vmatpush.bf16.msra.mxu0 %v1293
        %1546 = vmatpush.bf16.msra.mxu0 %v1285
        %1547 = vmatpush.bf16.msra.mxu0 %v1277
        %1548 = vmatpush.bf16.msra.mxu0 %v1269
        %1549 = vmatmul.bf16.gmra.mxu0 %v1002
        %v1550 = vpop.f32.mrf.mxu0
        %v1551 = vadd.f32 0.0, %v1550
        %v1552 = vpop.f32.mrf.mxu0
        %v1553 = vadd.f32 0.0, %v1552
        %1554 = vmatmul.bf16.gmra.mxu0 %v1003
        %v1555 = vpop.f32.mrf.mxu0
        %v1556 = vadd.f32 0.0, %v1555
        %v1557 = vpop.f32.mrf.mxu0
        %v1558 = vadd.f32 0.0, %v1557
        %1559 = vmatmul.bf16.gmra.mxu0 %v1004
        %v1560 = vpop.f32.mrf.mxu0
        %v1561 = vadd.f32 0.0, %v1560
        %v1562 = vpop.f32.mrf.mxu0
        %v1563 = vadd.f32 0.0, %v1562
        %1564 = vmatmul.bf16.gmra.mxu0 %v1005
        %v1565 = vpop.f32.mrf.mxu0
        %v1566 = vadd.f32 0.0, %v1565
        %v1567 = vpop.f32.mrf.mxu0
        %v1568 = vadd.f32 0.0, %v1567
        %1569 = vmatmul.bf16.gmra.mxu0 %v1006
        %v1570 = vpop.f32.mrf.mxu0
        %v1571 = vadd.f32 0.0, %v1570
        %v1572 = vpop.f32.mrf.mxu0
        %v1573 = vadd.f32 0.0, %v1572
        %1574 = vmatmul.bf16.gmra.mxu0 %v1007
        %v1575 = vpop.f32.mrf.mxu0
        %v1576 = vadd.f32 0.0, %v1575
        %v1577 = vpop.f32.mrf.mxu0
        %v1578 = vadd.f32 0.0, %v1577
        %1579 = vmatmul.bf16.gmra.mxu0 %v1008
        %v1580 = vpop.f32.mrf.mxu0
        %v1581 = vadd.f32 0.0, %v1580
        %v1582 = vpop.f32.mrf.mxu0
        %v1583 = vadd.f32 0.0, %v1582
        %1584 = vmatmul.bf16.gmra.mxu0 %v1009
        %v1585 = vpop.f32.mrf.mxu0
        %v1586 = vadd.f32 0.0, %v1585
        %v1587 = vpop.f32.mrf.mxu0
        %v1588 = vadd.f32 0.0, %v1587
        %1589 = vdwg.mxu0
        %1590 = vmatpush.bf16.msra.mxu0 %v1326
        %1591 = vmatpush.bf16.msra.mxu0 %v1318
        %1592 = vmatpush.bf16.msra.mxu0 %v1310
        %1593 = vmatpush.bf16.msra.mxu0 %v1302
        %1594 = vmatpush.bf16.msra.mxu0 %v1294
        %1595 = vmatpush.bf16.msra.mxu0 %v1286
        %1596 = vmatpush.bf16.msra.mxu0 %v1278
        %1597 = vmatpush.bf16.msra.mxu0 %v1270
        %1598 = vmatmul.bf16.gmra.mxu0 %v1002
        %v1599 = vpop.f32.mrf.mxu0
        %v1600 = vadd.f32 0.0, %v1599
        %v1601 = vpop.f32.mrf.mxu0
        %v1602 = vadd.f32 0.0, %v1601
        %1603 = vmatmul.bf16.gmra.mxu0 %v1003
        %v1604 = vpop.f32.mrf.mxu0
        %v1605 = vadd.f32 0.0, %v1604
        %v1606 = vpop.f32.mrf.mxu0
        %v1607 = vadd.f32 0.0, %v1606
        %1608 = vmatmul.bf16.gmra.mxu0 %v1004
        %v1609 = vpop.f32.mrf.mxu0
        %v1610 = vadd.f32 0.0, %v1609
        %v1611 = vpop.f32.mrf.mxu0
        %v1612 = vadd.f32 0.0, %v1611
        %1613 = vmatmul.bf16.gmra.mxu0 %v1005
        %v1614 = vpop.f32.mrf.mxu0
        %v1615 = vadd.f32 0.0, %v1614
        %v1616 = vpop.f32.mrf.mxu0
        %v1617 = vadd.f32 0.0, %v1616
        %1618 = vmatmul.bf16.gmra.mxu0 %v1006
        %v1619 = vpop.f32.mrf.mxu0
        %v1620 = vadd.f32 0.0, %v1619
        %v1621 = vpop.f32.mrf.mxu0
        %v1622 = vadd.f32 0.0, %v1621
        %1623 = vmatmul.bf16.gmra.mxu0 %v1007
        %v1624 = vpop.f32.mrf.mxu0
        %v1625 = vadd.f32 0.0, %v1624
        %v1626 = vpop.f32.mrf.mxu0
        %v1627 = vadd.f32 0.0, %v1626
        %1628 = vmatmul.bf16.gmra.mxu0 %v1008
        %v1629 = vpop.f32.mrf.mxu0
        %v1630 = vadd.f32 0.0, %v1629
        %v1631 = vpop.f32.mrf.mxu0
        %v1632 = vadd.f32 0.0, %v1631
        %1633 = vmatmul.bf16.gmra.mxu0 %v1009
        %v1634 = vpop.f32.mrf.mxu0
        %v1635 = vadd.f32 0.0, %v1634
        %v1636 = vpop.f32.mrf.mxu0
        %v1637 = vadd.f32 0.0, %v1636
        %1638 = vdwg.mxu0
        %1639 = vmatpush.bf16.msra.mxu0 %v1327
        %1640 = vmatpush.bf16.msra.mxu0 %v1319
        %1641 = vmatpush.bf16.msra.mxu0 %v1311
        %1642 = vmatpush.bf16.msra.mxu0 %v1303
        %1643 = vmatpush.bf16.msra.mxu0 %v1295
        %1644 = vmatpush.bf16.msra.mxu0 %v1287
        %1645 = vmatpush.bf16.msra.mxu0 %v1279
        %1646 = vmatpush.bf16.msra.mxu0 %v1271
        %1647 = vmatmul.bf16.gmra.mxu0 %v1002
        %v1648 = vpop.f32.mrf.mxu0
        %v1649 = vadd.f32 0.0, %v1648
        %v1650 = vpop.f32.mrf.mxu0
        %v1651 = vadd.f32 0.0, %v1650
        %1652 = vmatmul.bf16.gmra.mxu0 %v1003
        %v1653 = vpop.f32.mrf.mxu0
        %v1654 = vadd.f32 0.0, %v1653
        %v1655 = vpop.f32.mrf.mxu0
        %v1656 = vadd.f32 0.0, %v1655
        %1657 = vmatmul.bf16.gmra.mxu0 %v1004
        %v1658 = vpop.f32.mrf.mxu0
        %v1659 = vadd.f32 0.0, %v1658
        %v1660 = vpop.f32.mrf.mxu0
        %v1661 = vadd.f32 0.0, %v1660
        %1662 = vmatmul.bf16.gmra.mxu0 %v1005
        %v1663 = vpop.f32.mrf.mxu0
        %v1664 = vadd.f32 0.0, %v1663
        %v1665 = vpop.f32.mrf.mxu0
        %v1666 = vadd.f32 0.0, %v1665
        %1667 = vmatmul.bf16.gmra.mxu0 %v1006
        %v1668 = vpop.f32.mrf.mxu0
        %v1669 = vadd.f32 0.0, %v1668
        %v1670 = vpop.f32.mrf.mxu0
        %v1671 = vadd.f32 0.0, %v1670
        %1672 = vmatmul.bf16.gmra.mxu0 %v1007
        %v1673 = vpop.f32.mrf.mxu0
        %v1674 = vadd.f32 0.0, %v1673
        %v1675 = vpop.f32.mrf.mxu0
        %v1676 = vadd.f32 0.0, %v1675
        %1677 = vmatmul.bf16.gmra.mxu0 %v1008
        %v1678 = vpop.f32.mrf.mxu0
        %v1679 = vadd.f32 0.0, %v1678
        %v1680 = vpop.f32.mrf.mxu0
        %v1681 = vadd.f32 0.0, %v1680
        %1682 = vmatmul.bf16.gmra.mxu0 %v1009
        %v1683 = vpop.f32.mrf.mxu0
        %v1684 = vadd.f32 0.0, %v1683
        %v1685 = vpop.f32.mrf.mxu0
        %v1686 = vadd.f32 0.0, %v1685
        %1687 = vdwg.mxu0
        %1688 = vmatpush.bf16.msra.mxu0 %v1328
        %1689 = vmatpush.bf16.msra.mxu0 %v1320
        %1690 = vmatpush.bf16.msra.mxu0 %v1312
        %1691 = vmatpush.bf16.msra.mxu0 %v1304
        %1692 = vmatpush.bf16.msra.mxu0 %v1296
        %1693 = vmatpush.bf16.msra.mxu0 %v1288
        %1694 = vmatpush.bf16.msra.mxu0 %v1280
        %1695 = vmatpush.bf16.msra.mxu0 %v1272
        %1696 = vmatmul.bf16.gmra.mxu0 %v1002
        %v1697 = vpop.f32.mrf.mxu0
        %v1698 = vadd.f32 0.0, %v1697
        %v1699 = vpop.f32.mrf.mxu0
        %v1700 = vadd.f32 0.0, %v1699
        %1701 = vmatmul.bf16.gmra.mxu0 %v1003
        %v1702 = vpop.f32.mrf.mxu0
        %v1703 = vadd.f32 0.0, %v1702
        %v1704 = vpop.f32.mrf.mxu0
        %v1705 = vadd.f32 0.0, %v1704
        %1706 = vmatmul.bf16.gmra.mxu0 %v1004
        %v1707 = vpop.f32.mrf.mxu0
        %v1708 = vadd.f32 0.0, %v1707
        %v1709 = vpop.f32.mrf.mxu0
        %v1710 = vadd.f32 0.0, %v1709
        %1711 = vmatmul.bf16.gmra.mxu0 %v1005
        %v1712 = vpop.f32.mrf.mxu0
        %v1713 = vadd.f32 0.0, %v1712
        %v1714 = vpop.f32.mrf.mxu0
        %v1715 = vadd.f32 0.0, %v1714
        %1716 = vmatmul.bf16.gmra.mxu0 %v1006
        %v1717 = vpop.f32.mrf.mxu0
        %v1718 = vadd.f32 0.0, %v1717
        %v1719 = vpop.f32.mrf.mxu0
        %v1720 = vadd.f32 0.0, %v1719
        %1721 = vmatmul.bf16.gmra.mxu0 %v1007
        %v1722 = vpop.f32.mrf.mxu0
        %v1723 = vadd.f32 0.0, %v1722
        %v1724 = vpop.f32.mrf.mxu0
        %v1725 = vadd.f32 0.0, %v1724
        %1726 = vmatmul.bf16.gmra.mxu0 %v1008
        %v1727 = vpop.f32.mrf.mxu0
        %v1728 = vadd.f32 0.0, %v1727
        %v1729 = vpop.f32.mrf.mxu0
        %v1730 = vadd.f32 0.0, %v1729
        %1731 = vmatmul.bf16.gmra.mxu0 %v1009
        %v1732 = vpop.f32.mrf.mxu0
        %v1733 = vadd.f32 0.0, %v1732
        %v1734 = vpop.f32.mrf.mxu0
        %v1735 = vadd.f32 0.0, %v1734
        %1736 = vdwg.mxu0
        %1737 = vmatpush.bf16.msra.mxu0 %v1329
        %1738 = vmatpush.bf16.msra.mxu0 %v1321
        %1739 = vmatpush.bf16.msra.mxu0 %v1313
        %1740 = vmatpush.bf16.msra.mxu0 %v1305
        %1741 = vmatpush.bf16.msra.mxu0 %v1297
        %1742 = vmatpush.bf16.msra.mxu0 %v1289
        %1743 = vmatpush.bf16.msra.mxu0 %v1281
        %1744 = vmatpush.bf16.msra.mxu0 %v1273
        %1745 = vmatmul.bf16.gmra.mxu0 %v1002
        %v1746 = vpop.f32.mrf.mxu0
        %v1747 = vadd.f32 0.0, %v1746
        %v1748 = vpop.f32.mrf.mxu0
        %v1749 = vadd.f32 0.0, %v1748
        %1750 = vmatmul.bf16.gmra.mxu0 %v1003
        %v1751 = vpop.f32.mrf.mxu0
        %v1752 = vadd.f32 0.0, %v1751
        %v1753 = vpop.f32.mrf.mxu0
        %v1754 = vadd.f32 0.0, %v1753
        %1755 = vmatmul.bf16.gmra.mxu0 %v1004
        %v1756 = vpop.f32.mrf.mxu0
        %v1757 = vadd.f32 0.0, %v1756
        %v1758 = vpop.f32.mrf.mxu0
        %v1759 = vadd.f32 0.0, %v1758
        %1760 = vmatmul.bf16.gmra.mxu0 %v1005
        %v1761 = vpop.f32.mrf.mxu0
        %v1762 = vadd.f32 0.0, %v1761
        %v1763 = vpop.f32.mrf.mxu0
        %v1764 = vadd.f32 0.0, %v1763
        %1765 = vmatmul.bf16.gmra.mxu0 %v1006
        %v1766 = vpop.f32.mrf.mxu0
        %v1767 = vadd.f32 0.0, %v1766
        %v1768 = vpop.f32.mrf.mxu0
        %v1769 = vadd.f32 0.0, %v1768
        %1770 = vmatmul.bf16.gmra.mxu0 %v1007
        %v1771 = vpop.f32.mrf.mxu0
        %v1772 = vadd.f32 0.0, %v1771
        %v1773 = vpop.f32.mrf.mxu0
        %v1774 = vadd.f32 0.0, %v1773
        %1775 = vmatmul.bf16.gmra.mxu0 %v1008
        %v1776 = vpop.f32.mrf.mxu0
        %v1777 = vadd.f32 0.0, %v1776
        %v1778 = vpop.f32.mrf.mxu0
        %v1779 = vadd.f32 0.0, %v1778
        %1780 = vmatmul.bf16.gmra.mxu0 %v1009
        %v1781 = vpop.f32.mrf.mxu0
        %v1782 = vadd.f32 0.0, %v1781
        %v1783 = vpop.f32.mrf.mxu0
        %v1784 = vadd.f32 0.0, %v1783
        %1785 = vdwg.mxu0
        %v1786 = vld [vmem:[%s8] sm:$0xff]
        %v1788 = vperm.slane %v1786, 0
        %v1789 = vperm.slane %v1786, 1
        %v1790 = vperm.slane %v1786, 2
        %v1791 = vperm.slane %v1786, 3
        %v1792 = vperm.slane %v1786, 4
        %v1793 = vperm.slane %v1786, 5
        %v1794 = vperm.slane %v1786, 6
        %v1795 = vperm.slane %v1786, 7
        %v1804 = vmul.f32 %v1404, %v1788
        %v1805 = vmul.f32 %v1453, %v1789
        %v1806 = vmul.f32 %v1502, %v1790
        %v1807 = vmul.f32 %v1551, %v1791
        %v1808 = vmul.f32 %v1600, %v1792
        %v1809 = vmul.f32 %v1649, %v1793
        %v1810 = vmul.f32 %v1698, %v1794
        %v1811 = vmul.f32 %v1747, %v1795
        %v1812 = vmul.f32 %v1406, %v1788
        %v1813 = vmul.f32 %v1455, %v1789
        %v1814 = vmul.f32 %v1504, %v1790
        %v1815 = vmul.f32 %v1553, %v1791
        %v1816 = vmul.f32 %v1602, %v1792
        %v1817 = vmul.f32 %v1651, %v1793
        %v1818 = vmul.f32 %v1700, %v1794
        %v1819 = vmul.f32 %v1749, %v1795
        %v1820 = vmul.f32 %v1409, %v1788
        %v1821 = vmul.f32 %v1458, %v1789
        %v1822 = vmul.f32 %v1507, %v1790
        %v1823 = vmul.f32 %v1556, %v1791
        %v1824 = vmul.f32 %v1605, %v1792
        %v1825 = vmul.f32 %v1654, %v1793
        %v1826 = vmul.f32 %v1703, %v1794
        %v1827 = vmul.f32 %v1752, %v1795
        %v1828 = vmul.f32 %v1411, %v1788
        %v1829 = vmul.f32 %v1460, %v1789
        %v1830 = vmul.f32 %v1509, %v1790
        %v1831 = vmul.f32 %v1558, %v1791
        %v1832 = vmul.f32 %v1607, %v1792
        %v1833 = vmul.f32 %v1656, %v1793
        %v1834 = vmul.f32 %v1705, %v1794
        %v1835 = vmul.f32 %v1754, %v1795
        %v1836 = vmul.f32 %v1414, %v1788
        %v1837 = vmul.f32 %v1463, %v1789
        %v1838 = vmul.f32 %v1512, %v1790
        %v1839 = vmul.f32 %v1561, %v1791
        %v1840 = vmul.f32 %v1610, %v1792
        %v1841 = vmul.f32 %v1659, %v1793
        %v1842 = vmul.f32 %v1708, %v1794
        %v1843 = vmul.f32 %v1757, %v1795
        %v1844 = vmul.f32 %v1416, %v1788
        %v1845 = vmul.f32 %v1465, %v1789
        %v1846 = vmul.f32 %v1514, %v1790
        %v1847 = vmul.f32 %v1563, %v1791
        %v1848 = vmul.f32 %v1612, %v1792
        %v1849 = vmul.f32 %v1661, %v1793
        %v1850 = vmul.f32 %v1710, %v1794
        %v1851 = vmul.f32 %v1759, %v1795
        %v1852 = vmul.f32 %v1419, %v1788
        %v1853 = vmul.f32 %v1468, %v1789
        %v1854 = vmul.f32 %v1517, %v1790
        %v1855 = vmul.f32 %v1566, %v1791
        %v1856 = vmul.f32 %v1615, %v1792
        %v1857 = vmul.f32 %v1664, %v1793
        %v1858 = vmul.f32 %v1713, %v1794
        %v1859 = vmul.f32 %v1762, %v1795
        %v1860 = vmul.f32 %v1421, %v1788
        %v1861 = vmul.f32 %v1470, %v1789
        %v1862 = vmul.f32 %v1519, %v1790
        %v1863 = vmul.f32 %v1568, %v1791
        %v1864 = vmul.f32 %v1617, %v1792
        %v1865 = vmul.f32 %v1666, %v1793
        %v1866 = vmul.f32 %v1715, %v1794
        %v1867 = vmul.f32 %v1764, %v1795
        %v1868 = vmul.f32 %v1424, %v1788
        %v1869 = vmul.f32 %v1473, %v1789
        %v1870 = vmul.f32 %v1522, %v1790
        %v1871 = vmul.f32 %v1571, %v1791
        %v1872 = vmul.f32 %v1620, %v1792
        %v1873 = vmul.f32 %v1669, %v1793
        %v1874 = vmul.f32 %v1718, %v1794
        %v1875 = vmul.f32 %v1767, %v1795
        %v1876 = vmul.f32 %v1426, %v1788
        %v1877 = vmul.f32 %v1475, %v1789
        %v1878 = vmul.f32 %v1524, %v1790
        %v1879 = vmul.f32 %v1573, %v1791
        %v1880 = vmul.f32 %v1622, %v1792
        %v1881 = vmul.f32 %v1671, %v1793
        %v1882 = vmul.f32 %v1720, %v1794
        %v1883 = vmul.f32 %v1769, %v1795
        %v1884 = vmul.f32 %v1429, %v1788
        %v1885 = vmul.f32 %v1478, %v1789
        %v1886 = vmul.f32 %v1527, %v1790
        %v1887 = vmul.f32 %v1576, %v1791
        %v1888 = vmul.f32 %v1625, %v1792
        %v1889 = vmul.f32 %v1674, %v1793
        %v1890 = vmul.f32 %v1723, %v1794
        %v1891 = vmul.f32 %v1772, %v1795
        %v1892 = vmul.f32 %v1431, %v1788
        %v1893 = vmul.f32 %v1480, %v1789
        %v1894 = vmul.f32 %v1529, %v1790
        %v1895 = vmul.f32 %v1578, %v1791
        %v1896 = vmul.f32 %v1627, %v1792
        %v1897 = vmul.f32 %v1676, %v1793
        %v1898 = vmul.f32 %v1725, %v1794
        %v1899 = vmul.f32 %v1774, %v1795
        %v1900 = vmul.f32 %v1434, %v1788
        %v1901 = vmul.f32 %v1483, %v1789
        %v1902 = vmul.f32 %v1532, %v1790
        %v1903 = vmul.f32 %v1581, %v1791
        %v1904 = vmul.f32 %v1630, %v1792
        %v1905 = vmul.f32 %v1679, %v1793
        %v1906 = vmul.f32 %v1728, %v1794
        %v1907 = vmul.f32 %v1777, %v1795
        %v1908 = vmul.f32 %v1436, %v1788
        %v1909 = vmul.f32 %v1485, %v1789
        %v1910 = vmul.f32 %v1534, %v1790
        %v1911 = vmul.f32 %v1583, %v1791
        %v1912 = vmul.f32 %v1632, %v1792
        %v1913 = vmul.f32 %v1681, %v1793
        %v1914 = vmul.f32 %v1730, %v1794
        %v1915 = vmul.f32 %v1779, %v1795
        %v1916 = vmul.f32 %v1439, %v1788
        %v1917 = vmul.f32 %v1488, %v1789
        %v1918 = vmul.f32 %v1537, %v1790
        %v1919 = vmul.f32 %v1586, %v1791
        %v1920 = vmul.f32 %v1635, %v1792
        %v1921 = vmul.f32 %v1684, %v1793
        %v1922 = vmul.f32 %v1733, %v1794
        %v1923 = vmul.f32 %v1782, %v1795
        %v1924 = vmul.f32 %v1441, %v1788
        %v1925 = vmul.f32 %v1490, %v1789
        %v1926 = vmul.f32 %v1539, %v1790
        %v1927 = vmul.f32 %v1588, %v1791
        %v1928 = vmul.f32 %v1637, %v1792
        %v1929 = vmul.f32 %v1686, %v1793
        %v1930 = vmul.f32 %v1735, %v1794
        %v1931 = vmul.f32 %v1784, %v1795
        %v1932 = vld [vmem:[%s9] sm:$0xff]
        %v1934 = vperm.slane %v1932, 0
        %v1935 = vperm.slane %v1932, 1
        %v1936 = vperm.slane %v1932, 2
        %v1937 = vperm.slane %v1932, 3
        %v1938 = vperm.slane %v1932, 4
        %v1939 = vperm.slane %v1932, 5
        %v1940 = vperm.slane %v1932, 6
        %v1941 = vperm.slane %v1932, 7
        %v1950 = vadd.f32 %v1804, %v1934
        %v1951 = vadd.f32 %v1805, %v1935
        %v1952 = vadd.f32 %v1806, %v1936
        %v1953 = vadd.f32 %v1807, %v1937
        %v1954 = vadd.f32 %v1808, %v1938
        %v1955 = vadd.f32 %v1809, %v1939
        %v1956 = vadd.f32 %v1810, %v1940
        %v1957 = vadd.f32 %v1811, %v1941
        %v1958 = vadd.f32 %v1812, %v1934
        %v1959 = vadd.f32 %v1813, %v1935
        %v1960 = vadd.f32 %v1814, %v1936
        %v1961 = vadd.f32 %v1815, %v1937
        %v1962 = vadd.f32 %v1816, %v1938
        %v1963 = vadd.f32 %v1817, %v1939
        %v1964 = vadd.f32 %v1818, %v1940
        %v1965 = vadd.f32 %v1819, %v1941
        %v1966 = vadd.f32 %v1820, %v1934
        %v1967 = vadd.f32 %v1821, %v1935
        %v1968 = vadd.f32 %v1822, %v1936
        %v1969 = vadd.f32 %v1823, %v1937
        %v1970 = vadd.f32 %v1824, %v1938
        %v1971 = vadd.f32 %v1825, %v1939
        %v1972 = vadd.f32 %v1826, %v1940
        %v1973 = vadd.f32 %v1827, %v1941
        %v1974 = vadd.f32 %v1828, %v1934
        %v1975 = vadd.f32 %v1829, %v1935
        %v1976 = vadd.f32 %v1830, %v1936
        %v1977 = vadd.f32 %v1831, %v1937
        %v1978 = vadd.f32 %v1832, %v1938
        %v1979 = vadd.f32 %v1833, %v1939
        %v1980 = vadd.f32 %v1834, %v1940
        %v1981 = vadd.f32 %v1835, %v1941
        %v1982 = vadd.f32 %v1836, %v1934
        %v1983 = vadd.f32 %v1837, %v1935
        %v1984 = vadd.f32 %v1838, %v1936
        %v1985 = vadd.f32 %v1839, %v1937
        %v1986 = vadd.f32 %v1840, %v1938
        %v1987 = vadd.f32 %v1841, %v1939
        %v1988 = vadd.f32 %v1842, %v1940
        %v1989 = vadd.f32 %v1843, %v1941
        %v1990 = vadd.f32 %v1844, %v1934
        %v1991 = vadd.f32 %v1845, %v1935
        %v1992 = vadd.f32 %v1846, %v1936
        %v1993 = vadd.f32 %v1847, %v1937
        %v1994 = vadd.f32 %v1848, %v1938
        %v1995 = vadd.f32 %v1849, %v1939
        %v1996 = vadd.f32 %v1850, %v1940
        %v1997 = vadd.f32 %v1851, %v1941
        %v1998 = vadd.f32 %v1852, %v1934
        %v1999 = vadd.f32 %v1853, %v1935
        %v2000 = vadd.f32 %v1854, %v1936
        %v2001 = vadd.f32 %v1855, %v1937
        %v2002 = vadd.f32 %v1856, %v1938
        %v2003 = vadd.f32 %v1857, %v1939
        %v2004 = vadd.f32 %v1858, %v1940
        %v2005 = vadd.f32 %v1859, %v1941
        %v2006 = vadd.f32 %v1860, %v1934
        %v2007 = vadd.f32 %v1861, %v1935
        %v2008 = vadd.f32 %v1862, %v1936
        %v2009 = vadd.f32 %v1863, %v1937
        %v2010 = vadd.f32 %v1864, %v1938
        %v2011 = vadd.f32 %v1865, %v1939
        %v2012 = vadd.f32 %v1866, %v1940
        %v2013 = vadd.f32 %v1867, %v1941
        %v2014 = vadd.f32 %v1868, %v1934
        %v2015 = vadd.f32 %v1869, %v1935
        %v2016 = vadd.f32 %v1870, %v1936
        %v2017 = vadd.f32 %v1871, %v1937
        %v2018 = vadd.f32 %v1872, %v1938
        %v2019 = vadd.f32 %v1873, %v1939
        %v2020 = vadd.f32 %v1874, %v1940
        %v2021 = vadd.f32 %v1875, %v1941
        %v2022 = vadd.f32 %v1876, %v1934
        %v2023 = vadd.f32 %v1877, %v1935
        %v2024 = vadd.f32 %v1878, %v1936
        %v2025 = vadd.f32 %v1879, %v1937
        %v2026 = vadd.f32 %v1880, %v1938
        %v2027 = vadd.f32 %v1881, %v1939
        %v2028 = vadd.f32 %v1882, %v1940
        %v2029 = vadd.f32 %v1883, %v1941
        %v2030 = vadd.f32 %v1884, %v1934
        %v2031 = vadd.f32 %v1885, %v1935
        %v2032 = vadd.f32 %v1886, %v1936
        %v2033 = vadd.f32 %v1887, %v1937
        %v2034 = vadd.f32 %v1888, %v1938
        %v2035 = vadd.f32 %v1889, %v1939
        %v2036 = vadd.f32 %v1890, %v1940
        %v2037 = vadd.f32 %v1891, %v1941
        %v2038 = vadd.f32 %v1892, %v1934
        %v2039 = vadd.f32 %v1893, %v1935
        %v2040 = vadd.f32 %v1894, %v1936
        %v2041 = vadd.f32 %v1895, %v1937
        %v2042 = vadd.f32 %v1896, %v1938
        %v2043 = vadd.f32 %v1897, %v1939
        %v2044 = vadd.f32 %v1898, %v1940
        %v2045 = vadd.f32 %v1899, %v1941
        %v2046 = vadd.f32 %v1900, %v1934
        %v2047 = vadd.f32 %v1901, %v1935
        %v2048 = vadd.f32 %v1902, %v1936
        %v2049 = vadd.f32 %v1903, %v1937
        %v2050 = vadd.f32 %v1904, %v1938
        %v2051 = vadd.f32 %v1905, %v1939
        %v2052 = vadd.f32 %v1906, %v1940
        %v2053 = vadd.f32 %v1907, %v1941
        %v2054 = vadd.f32 %v1908, %v1934
        %v2055 = vadd.f32 %v1909, %v1935
        %v2056 = vadd.f32 %v1910, %v1936
        %v2057 = vadd.f32 %v1911, %v1937
        %v2058 = vadd.f32 %v1912, %v1938
        %v2059 = vadd.f32 %v1913, %v1939
        %v2060 = vadd.f32 %v1914, %v1940
        %v2061 = vadd.f32 %v1915, %v1941
        %v2062 = vadd.f32 %v1916, %v1934
        %v2063 = vadd.f32 %v1917, %v1935
        %v2064 = vadd.f32 %v1918, %v1936
        %v2065 = vadd.f32 %v1919, %v1937
        %v2066 = vadd.f32 %v1920, %v1938
        %v2067 = vadd.f32 %v1921, %v1939
        %v2068 = vadd.f32 %v1922, %v1940
        %v2069 = vadd.f32 %v1923, %v1941
        %v2070 = vadd.f32 %v1924, %v1934
        %v2071 = vadd.f32 %v1925, %v1935
        %v2072 = vadd.f32 %v1926, %v1936
        %v2073 = vadd.f32 %v1927, %v1937
        %v2074 = vadd.f32 %v1928, %v1938
        %v2075 = vadd.f32 %v1929, %v1939
        %v2076 = vadd.f32 %v1930, %v1940
        %v2077 = vadd.f32 %v1931, %v1941
        %v2078 = vpack.c.bf16 %v1958, %v1950
        %v2079 = vpack.c.bf16 %v1959, %v1951
        %v2080 = vpack.c.bf16 %v1960, %v1952
        %v2081 = vpack.c.bf16 %v1961, %v1953
        %v2082 = vpack.c.bf16 %v1962, %v1954
        %v2083 = vpack.c.bf16 %v1963, %v1955
        %v2084 = vpack.c.bf16 %v1964, %v1956
        %v2085 = vpack.c.bf16 %v1965, %v1957
        %v2086 = vpack.c.bf16 %v1974, %v1966
        %v2087 = vpack.c.bf16 %v1975, %v1967
        %v2088 = vpack.c.bf16 %v1976, %v1968
        %v2089 = vpack.c.bf16 %v1977, %v1969
        %v2090 = vpack.c.bf16 %v1978, %v1970
        %v2091 = vpack.c.bf16 %v1979, %v1971
        %v2092 = vpack.c.bf16 %v1980, %v1972
        %v2093 = vpack.c.bf16 %v1981, %v1973
        %v2094 = vpack.c.bf16 %v1990, %v1982
        %v2095 = vpack.c.bf16 %v1991, %v1983
        %v2096 = vpack.c.bf16 %v1992, %v1984
        %v2097 = vpack.c.bf16 %v1993, %v1985
        %v2098 = vpack.c.bf16 %v1994, %v1986
        %v2099 = vpack.c.bf16 %v1995, %v1987
        %v2100 = vpack.c.bf16 %v1996, %v1988
        %v2101 = vpack.c.bf16 %v1997, %v1989
        %v2102 = vpack.c.bf16 %v2006, %v1998
        %v2103 = vpack.c.bf16 %v2007, %v1999
        %v2104 = vpack.c.bf16 %v2008, %v2000
        %v2105 = vpack.c.bf16 %v2009, %v2001
        %v2106 = vpack.c.bf16 %v2010, %v2002
        %v2107 = vpack.c.bf16 %v2011, %v2003
        %v2108 = vpack.c.bf16 %v2012, %v2004
        %v2109 = vpack.c.bf16 %v2013, %v2005
        %v2110 = vpack.c.bf16 %v2022, %v2014
        %v2111 = vpack.c.bf16 %v2023, %v2015
        %v2112 = vpack.c.bf16 %v2024, %v2016
        %v2113 = vpack.c.bf16 %v2025, %v2017
        %v2114 = vpack.c.bf16 %v2026, %v2018
        %v2115 = vpack.c.bf16 %v2027, %v2019
        %v2116 = vpack.c.bf16 %v2028, %v2020
        %v2117 = vpack.c.bf16 %v2029, %v2021
        %v2118 = vpack.c.bf16 %v2038, %v2030
        %v2119 = vpack.c.bf16 %v2039, %v2031
        %v2120 = vpack.c.bf16 %v2040, %v2032
        %v2121 = vpack.c.bf16 %v2041, %v2033
        %v2122 = vpack.c.bf16 %v2042, %v2034
        %v2123 = vpack.c.bf16 %v2043, %v2035
        %v2124 = vpack.c.bf16 %v2044, %v2036
        %v2125 = vpack.c.bf16 %v2045, %v2037
        %v2126 = vpack.c.bf16 %v2054, %v2046
        %v2127 = vpack.c.bf16 %v2055, %v2047
        %v2128 = vpack.c.bf16 %v2056, %v2048
        %v2129 = vpack.c.bf16 %v2057, %v2049
        %v2130 = vpack.c.bf16 %v2058, %v2050
        %v2131 = vpack.c.bf16 %v2059, %v2051
        %v2132 = vpack.c.bf16 %v2060, %v2052
        %v2133 = vpack.c.bf16 %v2061, %v2053
        %v2134 = vpack.c.bf16 %v2070, %v2062
        %v2135 = vpack.c.bf16 %v2071, %v2063
        %v2136 = vpack.c.bf16 %v2072, %v2064
        %v2137 = vpack.c.bf16 %v2073, %v2065
        %v2138 = vpack.c.bf16 %v2074, %v2066
        %v2139 = vpack.c.bf16 %v2075, %v2067
        %v2140 = vpack.c.bf16 %v2076, %v2068
        %v2141 = vpack.c.bf16 %v2077, %v2069
        %v2142 = vld [vmem:[%s10] sm:$0xf]
        %v2143 = vld [vmem:[%s10 + $0x4] sm:$0xf]
        %v2144 = vld [vmem:[%s10 + $0x8] sm:$0xf]
        %v2145 = vld [vmem:[%s10 + $0xc] sm:$0xf]
        %v2146 = vld [vmem:[%s10 + $0x10] sm:$0xf]
        %v2147 = vld [vmem:[%s10 + $0x14] sm:$0xf]
        %v2148 = vld [vmem:[%s10 + $0x18] sm:$0xf]
        %v2149 = vld [vmem:[%s10 + $0x1c] sm:$0xf]
        %v2150 = vld [vmem:[%s10 + $0x20] sm:$0xf]
        %v2151 = vld [vmem:[%s10 + $0x24] sm:$0xf]
        %v2152 = vld [vmem:[%s10 + $0x28] sm:$0xf]
        %v2153 = vld [vmem:[%s10 + $0x2c] sm:$0xf]
        %v2154 = vld [vmem:[%s10 + $0x30] sm:$0xf]
        %v2155 = vld [vmem:[%s10 + $0x34] sm:$0xf]
        %v2156 = vld [vmem:[%s10 + $0x38] sm:$0xf]
        %v2157 = vld [vmem:[%s10 + $0x3c] sm:$0xf]
        %v2158 = vld [vmem:[%s10 + $0x40] sm:$0xf]
        %v2159 = vld [vmem:[%s10 + $0x44] sm:$0xf]
        %v2160 = vld [vmem:[%s10 + $0x48] sm:$0xf]
        %v2161 = vld [vmem:[%s10 + $0x4c] sm:$0xf]
        %v2162 = vld [vmem:[%s10 + $0x50] sm:$0xf]
        %v2163 = vld [vmem:[%s10 + $0x54] sm:$0xf]
        %v2164 = vld [vmem:[%s10 + $0x58] sm:$0xf]
        %v2165 = vld [vmem:[%s10 + $0x5c] sm:$0xf]
        %v2166 = vld [vmem:[%s10 + $0x60] sm:$0xf]
        %v2167 = vld [vmem:[%s10 + $0x64] sm:$0xf]
        %v2168 = vld [vmem:[%s10 + $0x68] sm:$0xf]
        %v2169 = vld [vmem:[%s10 + $0x6c] sm:$0xf]
        %v2170 = vld [vmem:[%s10 + $0x70] sm:$0xf]
        %v2171 = vld [vmem:[%s10 + $0x74] sm:$0xf]
        %v2172 = vld [vmem:[%s10 + $0x78] sm:$0xf]
        %v2173 = vld [vmem:[%s10 + $0x7c] sm:$0xf]
        %v2174 = vld [vmem:[%s10 + $0x80] sm:$0xf]
        %v2175 = vld [vmem:[%s10 + $0x84] sm:$0xf]
        %v2176 = vld [vmem:[%s10 + $0x88] sm:$0xf]
        %v2177 = vld [vmem:[%s10 + $0x8c] sm:$0xf]
        %v2178 = vld [vmem:[%s10 + $0x90] sm:$0xf]
        %v2179 = vld [vmem:[%s10 + $0x94] sm:$0xf]
        %v2180 = vld [vmem:[%s10 + $0x98] sm:$0xf]
        %v2181 = vld [vmem:[%s10 + $0x9c] sm:$0xf]
        %v2182 = vld [vmem:[%s10 + $0xa0] sm:$0xf]
        %v2183 = vld [vmem:[%s10 + $0xa4] sm:$0xf]
        %v2184 = vld [vmem:[%s10 + $0xa8] sm:$0xf]
        %v2185 = vld [vmem:[%s10 + $0xac] sm:$0xf]
        %v2186 = vld [vmem:[%s10 + $0xb0] sm:$0xf]
        %v2187 = vld [vmem:[%s10 + $0xb4] sm:$0xf]
        %v2188 = vld [vmem:[%s10 + $0xb8] sm:$0xf]
        %v2189 = vld [vmem:[%s10 + $0xbc] sm:$0xf]
        %v2190 = vld [vmem:[%s10 + $0xc0] sm:$0xf]
        %v2191 = vld [vmem:[%s10 + $0xc4] sm:$0xf]
        %v2192 = vld [vmem:[%s10 + $0xc8] sm:$0xf]
        %v2193 = vld [vmem:[%s10 + $0xcc] sm:$0xf]
        %v2194 = vld [vmem:[%s10 + $0xd0] sm:$0xf]
        %v2195 = vld [vmem:[%s10 + $0xd4] sm:$0xf]
        %v2196 = vld [vmem:[%s10 + $0xd8] sm:$0xf]
        %v2197 = vld [vmem:[%s10 + $0xdc] sm:$0xf]
        %v2198 = vld [vmem:[%s10 + $0xe0] sm:$0xf]
        %v2199 = vld [vmem:[%s10 + $0xe4] sm:$0xf]
        %v2200 = vld [vmem:[%s10 + $0xe8] sm:$0xf]
        %v2201 = vld [vmem:[%s10 + $0xec] sm:$0xf]
        %v2202 = vld [vmem:[%s10 + $0xf0] sm:$0xf]
        %v2203 = vld [vmem:[%s10 + $0xf4] sm:$0xf]
        %v2204 = vld [vmem:[%s10 + $0xf8] sm:$0xf]
        %v2205 = vld [vmem:[%s10 + $0xfc] sm:$0xf]
        %v2206 = vld [vmem:[%s10 + $0x100] sm:$0xf]
        %v2207 = vld [vmem:[%s10 + $0x104] sm:$0xf]
        %v2208 = vld [vmem:[%s10 + $0x108] sm:$0xf]
        %v2209 = vld [vmem:[%s10 + $0x10c] sm:$0xf]
        %v2210 = vld [vmem:[%s10 + $0x110] sm:$0xf]
        %v2211 = vld [vmem:[%s10 + $0x114] sm:$0xf]
        %v2212 = vld [vmem:[%s10 + $0x118] sm:$0xf]
        %v2213 = vld [vmem:[%s10 + $0x11c] sm:$0xf]
        %v2214 = vld [vmem:[%s10 + $0x120] sm:$0xf]
        %v2215 = vld [vmem:[%s10 + $0x124] sm:$0xf]
        %v2216 = vld [vmem:[%s10 + $0x128] sm:$0xf]
        %v2217 = vld [vmem:[%s10 + $0x12c] sm:$0xf]
        %v2218 = vld [vmem:[%s10 + $0x130] sm:$0xf]
        %v2219 = vld [vmem:[%s10 + $0x134] sm:$0xf]
        %v2220 = vld [vmem:[%s10 + $0x138] sm:$0xf]
        %v2221 = vld [vmem:[%s10 + $0x13c] sm:$0xf]
        %v2222 = vld [vmem:[%s10 + $0x140] sm:$0xf]
        %v2223 = vld [vmem:[%s10 + $0x144] sm:$0xf]
        %v2224 = vld [vmem:[%s10 + $0x148] sm:$0xf]
        %v2225 = vld [vmem:[%s10 + $0x14c] sm:$0xf]
        %v2226 = vld [vmem:[%s10 + $0x150] sm:$0xf]
        %v2227 = vld [vmem:[%s10 + $0x154] sm:$0xf]
        %v2228 = vld [vmem:[%s10 + $0x158] sm:$0xf]
        %v2229 = vld [vmem:[%s10 + $0x15c] sm:$0xf]
        %v2230 = vld [vmem:[%s10 + $0x160] sm:$0xf]
        %v2231 = vld [vmem:[%s10 + $0x164] sm:$0xf]
        %v2232 = vld [vmem:[%s10 + $0x168] sm:$0xf]
        %v2233 = vld [vmem:[%s10 + $0x16c] sm:$0xf]
        %v2234 = vld [vmem:[%s10 + $0x170] sm:$0xf]
        %v2235 = vld [vmem:[%s10 + $0x174] sm:$0xf]
        %v2236 = vld [vmem:[%s10 + $0x178] sm:$0xf]
        %v2237 = vld [vmem:[%s10 + $0x17c] sm:$0xf]
        %v2238 = vld [vmem:[%s10 + $0x180] sm:$0xf]
        %v2239 = vld [vmem:[%s10 + $0x184] sm:$0xf]
        %v2240 = vld [vmem:[%s10 + $0x188] sm:$0xf]
        %v2241 = vld [vmem:[%s10 + $0x18c] sm:$0xf]
        %v2242 = vld [vmem:[%s10 + $0x190] sm:$0xf]
        %v2243 = vld [vmem:[%s10 + $0x194] sm:$0xf]
        %v2244 = vld [vmem:[%s10 + $0x198] sm:$0xf]
        %v2245 = vld [vmem:[%s10 + $0x19c] sm:$0xf]
        %v2246 = vld [vmem:[%s10 + $0x1a0] sm:$0xf]
        %v2247 = vld [vmem:[%s10 + $0x1a4] sm:$0xf]
        %v2248 = vld [vmem:[%s10 + $0x1a8] sm:$0xf]
        %v2249 = vld [vmem:[%s10 + $0x1ac] sm:$0xf]
        %v2250 = vld [vmem:[%s10 + $0x1b0] sm:$0xf]
        %v2251 = vld [vmem:[%s10 + $0x1b4] sm:$0xf]
        %v2252 = vld [vmem:[%s10 + $0x1b8] sm:$0xf]
        %v2253 = vld [vmem:[%s10 + $0x1bc] sm:$0xf]
        %v2254 = vld [vmem:[%s10 + $0x1c0] sm:$0xf]
        %v2255 = vld [vmem:[%s10 + $0x1c4] sm:$0xf]
        %v2256 = vld [vmem:[%s10 + $0x1c8] sm:$0xf]
        %v2257 = vld [vmem:[%s10 + $0x1cc] sm:$0xf]
        %v2258 = vld [vmem:[%s10 + $0x1d0] sm:$0xf]
        %v2259 = vld [vmem:[%s10 + $0x1d4] sm:$0xf]
        %v2260 = vld [vmem:[%s10 + $0x1d8] sm:$0xf]
        %v2261 = vld [vmem:[%s10 + $0x1dc] sm:$0xf]
        %v2262 = vld [vmem:[%s10 + $0x1e0] sm:$0xf]
        %v2263 = vld [vmem:[%s10 + $0x1e4] sm:$0xf]
        %v2264 = vld [vmem:[%s10 + $0x1e8] sm:$0xf]
        %v2265 = vld [vmem:[%s10 + $0x1ec] sm:$0xf]
        %v2266 = vld [vmem:[%s10 + $0x1f0] sm:$0xf]
        %v2267 = vld [vmem:[%s10 + $0x1f4] sm:$0xf]
        %v2268 = vld [vmem:[%s10 + $0x1f8] sm:$0xf]
        %v2269 = vld [vmem:[%s10 + $0x1fc] sm:$0xf]
        %s2270 = scalar_lea.vmem %s581, 64 [#allocation2]
        %v2271 = vld [vmem:[%s2270] sm:$0xf]
        %v2272 = vld [vmem:[%s2270 + $0x4] sm:$0xf]
        %v2273 = vld [vmem:[%s2270 + $0x8] sm:$0xf]
        %v2274 = vld [vmem:[%s2270 + $0xc] sm:$0xf]
        %v2275 = vld [vmem:[%s2270 + $0x10] sm:$0xf]
        %v2276 = vld [vmem:[%s2270 + $0x14] sm:$0xf]
        %v2277 = vld [vmem:[%s2270 + $0x18] sm:$0xf]
        %v2278 = vld [vmem:[%s2270 + $0x1c] sm:$0xf]
        %v2279 = vld [vmem:[%s2270 + $0x20] sm:$0xf]
        %v2280 = vld [vmem:[%s2270 + $0x24] sm:$0xf]
        %v2281 = vld [vmem:[%s2270 + $0x28] sm:$0xf]
        %v2282 = vld [vmem:[%s2270 + $0x2c] sm:$0xf]
        %v2283 = vld [vmem:[%s2270 + $0x30] sm:$0xf]
        %v2284 = vld [vmem:[%s2270 + $0x34] sm:$0xf]
        %v2285 = vld [vmem:[%s2270 + $0x38] sm:$0xf]
        %v2286 = vld [vmem:[%s2270 + $0x3c] sm:$0xf]
        %s2287 = scalar_lea.vmem %s1, 2
        %v2288 = vld [vmem:[%s2287] sm:$0x3]
        %v2305 = vunpack.c.l.b16 %v2271
        %v2306 = vunpack.c.l.b16 %v2272
        %v2307 = vunpack.c.l.b16 %v2273
        %v2308 = vunpack.c.l.b16 %v2274
        %v2309 = vunpack.c.l.b16 %v2275
        %v2310 = vunpack.c.l.b16 %v2276
        %v2311 = vunpack.c.l.b16 %v2277
        %v2312 = vunpack.c.l.b16 %v2278
        %v2313 = vunpack.c.l.b16 %v2279
        %v2314 = vunpack.c.l.b16 %v2280
        %v2315 = vunpack.c.l.b16 %v2281
        %v2316 = vunpack.c.l.b16 %v2282
        %v2317 = vunpack.c.l.b16 %v2283
        %v2318 = vunpack.c.l.b16 %v2284
        %v2319 = vunpack.c.l.b16 %v2285
        %v2320 = vunpack.c.l.b16 %v2286
        %v2321 = vpack.c.b16 %v2306, %v2305
        %v2322 = vpack.c.b16 %v2308, %v2307
        %v2323 = vpack.c.b16 %v2310, %v2309
        %v2324 = vpack.c.b16 %v2312, %v2311
        %v2325 = vpack.c.b16 %v2314, %v2313
        %v2326 = vpack.c.b16 %v2316, %v2315
        %v2327 = vpack.c.b16 %v2318, %v2317
        %v2328 = vpack.c.b16 %v2320, %v2319
        %v2330 = vsel %vm695, %v2321, 0
        %v2333 = vsel %vm695, %v2322, 0
        %v2336 = vsel %vm695, %v2323, 0
        %v2339 = vsel %vm695, %v2324, 0
        %v2342 = vsel %vm695, %v2325, 0
        %v2345 = vsel %vm695, %v2326, 0
        %v2348 = vsel %vm695, %v2327, 0
        %v2351 = vsel %vm695, %v2328, 0
        %v2354 = vand.u32 %v2288, %v723
        %2356 = vmatpush.bf16.msra.mxu0 0
        %2357 = vmatpush.bf16.msra.mxu0 0
        %2358 = vmatpush.bf16.msra.mxu0 0
        %2359 = vmatpush.bf16.msra.mxu0 0
        %2360 = vmatpush.bf16.msra.mxu0 0
        %2361 = vmatpush.bf16.msra.mxu0 0
        %2362 = vmatpush.bf16.msra.mxu0 0
        %2363 = vmatpush.bf16.msra.mxu0 %v2354
        %2364 = vmatmul.bf16.gmra.mxu0 %v2330
        %v2365 = vpop.f32.mrf.mxu0
        %v2366 = vadd.f32 0.0, %v2365
        %v2367 = vpop.f32.mrf.mxu0
        %v2368 = vadd.f32 0.0, %v2367
        %2369 = vmatmul.bf16.gmra.mxu0 %v2333
        %v2370 = vpop.f32.mrf.mxu0
        %v2371 = vadd.f32 0.0, %v2370
        %v2372 = vpop.f32.mrf.mxu0
        %v2373 = vadd.f32 0.0, %v2372
        %2374 = vmatmul.bf16.gmra.mxu0 %v2336
        %v2375 = vpop.f32.mrf.mxu0
        %v2376 = vadd.f32 0.0, %v2375
        %v2377 = vpop.f32.mrf.mxu0
        %v2378 = vadd.f32 0.0, %v2377
        %2379 = vmatmul.bf16.gmra.mxu0 %v2339
        %v2380 = vpop.f32.mrf.mxu0
        %v2381 = vadd.f32 0.0, %v2380
        %v2382 = vpop.f32.mrf.mxu0
        %v2383 = vadd.f32 0.0, %v2382
        %2384 = vmatmul.bf16.gmra.mxu0 %v2342
        %v2385 = vpop.f32.mrf.mxu0
        %v2386 = vadd.f32 0.0, %v2385
        %v2387 = vpop.f32.mrf.mxu0
        %v2388 = vadd.f32 0.0, %v2387
        %2389 = vmatmul.bf16.gmra.mxu0 %v2345
        %v2390 = vpop.f32.mrf.mxu0
        %v2391 = vadd.f32 0.0, %v2390
        %v2392 = vpop.f32.mrf.mxu0
        %v2393 = vadd.f32 0.0, %v2392
        %2394 = vmatmul.bf16.gmra.mxu0 %v2348
        %v2395 = vpop.f32.mrf.mxu0
        %v2396 = vadd.f32 0.0, %v2395
        %v2397 = vpop.f32.mrf.mxu0
        %v2398 = vadd.f32 0.0, %v2397
        %2399 = vmatmul.bf16.gmra.mxu0 %v2351
        %v2400 = vpop.f32.mrf.mxu0
        %v2401 = vadd.f32 0.0, %v2400
        %v2402 = vpop.f32.mrf.mxu0
        %v2403 = vadd.f32 0.0, %v2402
        %2404 = vdwg.mxu0
        %s2405 = scalar_lea.vmem %s2, 1
        %v2406 = vld [vmem:[%s2405] sm:$0x1]
        %v2408 = vperm.slane %v2406, 0
        %v2410 = vmul.f32 %v2366, %v2408
        %v2411 = vmul.f32 %v2368, %v2408
        %v2412 = vmul.f32 %v2371, %v2408
        %v2413 = vmul.f32 %v2373, %v2408
        %v2414 = vmul.f32 %v2376, %v2408
        %v2415 = vmul.f32 %v2378, %v2408
        %v2416 = vmul.f32 %v2381, %v2408
        %v2417 = vmul.f32 %v2383, %v2408
        %v2418 = vmul.f32 %v2386, %v2408
        %v2419 = vmul.f32 %v2388, %v2408
        %v2420 = vmul.f32 %v2391, %v2408
        %v2421 = vmul.f32 %v2393, %v2408
        %v2422 = vmul.f32 %v2396, %v2408
        %v2423 = vmul.f32 %v2398, %v2408
        %v2424 = vmul.f32 %v2401, %v2408
        %v2425 = vmul.f32 %v2403, %v2408
        %s2426 = scalar_lea.vmem %s3, 1
        %v2427 = vld [vmem:[%s2426] sm:$0x1]
        %v2429 = vperm.slane %v2427, 0
        %v2431 = vadd.f32 %v2410, %v2429
        %v2432 = vadd.f32 %v2411, %v2429
        %v2433 = vadd.f32 %v2412, %v2429
        %v2434 = vadd.f32 %v2413, %v2429
        %v2435 = vadd.f32 %v2414, %v2429
        %v2436 = vadd.f32 %v2415, %v2429
        %v2437 = vadd.f32 %v2416, %v2429
        %v2438 = vadd.f32 %v2417, %v2429
        %v2439 = vadd.f32 %v2418, %v2429
        %v2440 = vadd.f32 %v2419, %v2429
        %v2441 = vadd.f32 %v2420, %v2429
        %v2442 = vadd.f32 %v2421, %v2429
        %v2443 = vadd.f32 %v2422, %v2429
        %v2444 = vadd.f32 %v2423, %v2429
        %v2445 = vadd.f32 %v2424, %v2429
        %v2446 = vadd.f32 %v2425, %v2429
        %v2447 = vmax.f32 %v2431, 0.0
        %v2448 = vmax.f32 %v2432, 0.0
        %v2449 = vmax.f32 %v2433, 0.0
        %v2450 = vmax.f32 %v2434, 0.0
        %v2451 = vmax.f32 %v2435, 0.0
        %v2452 = vmax.f32 %v2436, 0.0
        %v2453 = vmax.f32 %v2437, 0.0
        %v2454 = vmax.f32 %v2438, 0.0
        %v2455 = vmax.f32 %v2439, 0.0
        %v2456 = vmax.f32 %v2440, 0.0
        %v2457 = vmax.f32 %v2441, 0.0
        %v2458 = vmax.f32 %v2442, 0.0
        %v2459 = vmax.f32 %v2443, 0.0
        %v2460 = vmax.f32 %v2444, 0.0
        %v2461 = vmax.f32 %v2445, 0.0
        %v2462 = vmax.f32 %v2446, 0.0
        %v2463 = vpack.c.bf16 %v2448, %v2447
        %v2464 = vpack.c.bf16 %v2450, %v2449
        %v2465 = vpack.c.bf16 %v2452, %v2451
        %v2466 = vpack.c.bf16 %v2454, %v2453
        %v2467 = vpack.c.bf16 %v2456, %v2455
        %v2468 = vpack.c.bf16 %v2458, %v2457
        %v2469 = vpack.c.bf16 %v2460, %v2459
        %v2470 = vpack.c.bf16 %v2462, %v2461
        %s2471 = scalar_lea.vmem %s4, 32
        %v2472 = vld [vmem:[%s2471] sm:$0xf]
        %v2473 = vld [vmem:[%s2471 + $0x4] sm:$0xf]
        %v2474 = vld [vmem:[%s2471 + $0x8] sm:$0xf]
        %v2475 = vld [vmem:[%s2471 + $0xc] sm:$0xf]
        %v2476 = vld [vmem:[%s2471 + $0x10] sm:$0xf]
        %v2477 = vld [vmem:[%s2471 + $0x14] sm:$0xf]
        %v2478 = vld [vmem:[%s2471 + $0x18] sm:$0xf]
        %v2479 = vld [vmem:[%s2471 + $0x1c] sm:$0xf]
        %v2488 = vunpack.c.l.b16 %v2472
        %v2489 = vunpack.c.l.b16 %v2473
        %v2490 = vunpack.c.l.b16 %v2474
        %v2491 = vunpack.c.l.b16 %v2475
        %v2492 = vunpack.c.l.b16 %v2476
        %v2493 = vunpack.c.l.b16 %v2477
        %v2494 = vunpack.c.l.b16 %v2478
        %v2495 = vunpack.c.l.b16 %v2479
        %v2496 = vpack.c.b16 %v2489, %v2488
        %v2497 = vpack.c.b16 %v2491, %v2490
        %v2498 = vpack.c.b16 %v2493, %v2492
        %v2499 = vpack.c.b16 %v2495, %v2494
        %v2505 = vsel %vm872, %v2463, 0
        %v2508 = vsel %vm872, %v2464, 0
        %v2511 = vsel %vm872, %v2465, 0
        %v2514 = vsel %vm872, %v2466, 0
        %v2517 = vsel %vm872, %v2467, 0
        %v2520 = vsel %vm872, %v2468, 0
        %v2523 = vsel %vm872, %v2469, 0
        %v2526 = vsel %vm872, %v2470, 0
        %2528 = vmatpush.bf16.msra.mxu0 0
        %2529 = vmatpush.bf16.msra.mxu0 0
        %2530 = vmatpush.bf16.msra.mxu0 0
        %2531 = vmatpush.bf16.msra.mxu0 0
        %2532 = vmatpush.bf16.msra.mxu0 %v2499
        %2533 = vmatpush.bf16.msra.mxu0 %v2498
        %2534 = vmatpush.bf16.msra.mxu0 %v2497
        %2535 = vmatpush.bf16.msra.mxu0 %v2496
        %2536 = vmatmul.bf16.gmra.mxu0 %v2505
        %v2537 = vpop.f32.mrf.mxu0
        %v2538 = vadd.f32 0.0, %v2537
        %v2539 = vpop.f32.mrf.mxu0
        %v2540 = vadd.f32 0.0, %v2539
        %2541 = vmatmul.bf16.gmra.mxu0 %v2508
        %v2542 = vpop.f32.mrf.mxu0
        %v2543 = vadd.f32 0.0, %v2542
        %v2544 = vpop.f32.mrf.mxu0
        %v2545 = vadd.f32 0.0, %v2544
        %2546 = vmatmul.bf16.gmra.mxu0 %v2511
        %v2547 = vpop.f32.mrf.mxu0
        %v2548 = vadd.f32 0.0, %v2547
        %v2549 = vpop.f32.mrf.mxu0
        %v2550 = vadd.f32 0.0, %v2549
        %2551 = vmatmul.bf16.gmra.mxu0 %v2514
        %v2552 = vpop.f32.mrf.mxu0
        %v2553 = vadd.f32 0.0, %v2552
        %v2554 = vpop.f32.mrf.mxu0
        %v2555 = vadd.f32 0.0, %v2554
        %2556 = vmatmul.bf16.gmra.mxu0 %v2517
        %v2557 = vpop.f32.mrf.mxu0
        %v2558 = vadd.f32 0.0, %v2557
        %v2559 = vpop.f32.mrf.mxu0
        %v2560 = vadd.f32 0.0, %v2559
        %2561 = vmatmul.bf16.gmra.mxu0 %v2520
        %v2562 = vpop.f32.mrf.mxu0
        %v2563 = vadd.f32 0.0, %v2562
        %v2564 = vpop.f32.mrf.mxu0
        %v2565 = vadd.f32 0.0, %v2564
        %2566 = vmatmul.bf16.gmra.mxu0 %v2523
        %v2567 = vpop.f32.mrf.mxu0
        %v2568 = vadd.f32 0.0, %v2567
        %v2569 = vpop.f32.mrf.mxu0
        %v2570 = vadd.f32 0.0, %v2569
        %2571 = vmatmul.bf16.gmra.mxu0 %v2526
        %v2572 = vpop.f32.mrf.mxu0
        %v2573 = vadd.f32 0.0, %v2572
        %v2574 = vpop.f32.mrf.mxu0
        %v2575 = vadd.f32 0.0, %v2574
        %2576 = vdwg.mxu0
        %s2577 = scalar_lea.vmem %s5, 1
        %v2578 = vld [vmem:[%s2577] sm:$0x1]
        %v2580 = vperm.slane %v2578, 0
        %v2582 = vmul.f32 %v2538, %v2580
        %v2583 = vmul.f32 %v2540, %v2580
        %v2584 = vmul.f32 %v2543, %v2580
        %v2585 = vmul.f32 %v2545, %v2580
        %v2586 = vmul.f32 %v2548, %v2580
        %v2587 = vmul.f32 %v2550, %v2580
        %v2588 = vmul.f32 %v2553, %v2580
        %v2589 = vmul.f32 %v2555, %v2580
        %v2590 = vmul.f32 %v2558, %v2580
        %v2591 = vmul.f32 %v2560, %v2580
        %v2592 = vmul.f32 %v2563, %v2580
        %v2593 = vmul.f32 %v2565, %v2580
        %v2594 = vmul.f32 %v2568, %v2580
        %v2595 = vmul.f32 %v2570, %v2580
        %v2596 = vmul.f32 %v2573, %v2580
        %v2597 = vmul.f32 %v2575, %v2580
        %s2598 = scalar_lea.vmem %s6, 1
        %v2599 = vld [vmem:[%s2598] sm:$0x1]
        %v2601 = vperm.slane %v2599, 0
        %v2603 = vadd.f32 %v2582, %v2601
        %v2604 = vadd.f32 %v2583, %v2601
        %v2605 = vadd.f32 %v2584, %v2601
        %v2606 = vadd.f32 %v2585, %v2601
        %v2607 = vadd.f32 %v2586, %v2601
        %v2608 = vadd.f32 %v2587, %v2601
        %v2609 = vadd.f32 %v2588, %v2601
        %v2610 = vadd.f32 %v2589, %v2601
        %v2611 = vadd.f32 %v2590, %v2601
        %v2612 = vadd.f32 %v2591, %v2601
        %v2613 = vadd.f32 %v2592, %v2601
        %v2614 = vadd.f32 %v2593, %v2601
        %v2615 = vadd.f32 %v2594, %v2601
        %v2616 = vadd.f32 %v2595, %v2601
        %v2617 = vadd.f32 %v2596, %v2601
        %v2618 = vadd.f32 %v2597, %v2601
        %v2619 = vmax.f32 %v2603, 0.0
        %v2620 = vmax.f32 %v2604, 0.0
        %v2621 = vmax.f32 %v2605, 0.0
        %v2622 = vmax.f32 %v2606, 0.0
        %v2623 = vmax.f32 %v2607, 0.0
        %v2624 = vmax.f32 %v2608, 0.0
        %v2625 = vmax.f32 %v2609, 0.0
        %v2626 = vmax.f32 %v2610, 0.0
        %v2627 = vmax.f32 %v2611, 0.0
        %v2628 = vmax.f32 %v2612, 0.0
        %v2629 = vmax.f32 %v2613, 0.0
        %v2630 = vmax.f32 %v2614, 0.0
        %v2631 = vmax.f32 %v2615, 0.0
        %v2632 = vmax.f32 %v2616, 0.0
        %v2633 = vmax.f32 %v2617, 0.0
        %v2634 = vmax.f32 %v2618, 0.0
        %v2635 = vpack.c.bf16 %v2620, %v2619
        %v2636 = vpack.c.bf16 %v2622, %v2621
        %v2637 = vpack.c.bf16 %v2624, %v2623
        %v2638 = vpack.c.bf16 %v2626, %v2625
        %v2639 = vpack.c.bf16 %v2628, %v2627
        %v2640 = vpack.c.bf16 %v2630, %v2629
        %v2641 = vpack.c.bf16 %v2632, %v2631
        %v2642 = vpack.c.bf16 %v2634, %v2633
        %s2643 = scalar_lea.vmem %s7, 512
        %v2644 = vld [vmem:[%s2643] sm:$0xff]
        %v2645 = vld [vmem:[%s2643 + $0x8] sm:$0xff]
        %v2646 = vld [vmem:[%s2643 + $0x10] sm:$0xff]
        %v2647 = vld [vmem:[%s2643 + $0x18] sm:$0xff]
        %v2648 = vld [vmem:[%s2643 + $0x20] sm:$0xff]
        %v2649 = vld [vmem:[%s2643 + $0x28] sm:$0xff]
        %v2650 = vld [vmem:[%s2643 + $0x30] sm:$0xff]
        %v2651 = vld [vmem:[%s2643 + $0x38] sm:$0xff]
        %v2652 = vld [vmem:[%s2643 + $0x40] sm:$0xff]
        %v2653 = vld [vmem:[%s2643 + $0x48] sm:$0xff]
        %v2654 = vld [vmem:[%s2643 + $0x50] sm:$0xff]
        %v2655 = vld [vmem:[%s2643 + $0x58] sm:$0xff]
        %v2656 = vld [vmem:[%s2643 + $0x60] sm:$0xff]
        %v2657 = vld [vmem:[%s2643 + $0x68] sm:$0xff]
        %v2658 = vld [vmem:[%s2643 + $0x70] sm:$0xff]
        %v2659 = vld [vmem:[%s2643 + $0x78] sm:$0xff]
        %v2660 = vld [vmem:[%s2643 + $0x80] sm:$0xff]
        %v2661 = vld [vmem:[%s2643 + $0x88] sm:$0xff]
        %v2662 = vld [vmem:[%s2643 + $0x90] sm:$0xff]
        %v2663 = vld [vmem:[%s2643 + $0x98] sm:$0xff]
        %v2664 = vld [vmem:[%s2643 + $0xa0] sm:$0xff]
        %v2665 = vld [vmem:[%s2643 + $0xa8] sm:$0xff]
        %v2666 = vld [vmem:[%s2643 + $0xb0] sm:$0xff]
        %v2667 = vld [vmem:[%s2643 + $0xb8] sm:$0xff]
        %v2668 = vld [vmem:[%s2643 + $0xc0] sm:$0xff]
        %v2669 = vld [vmem:[%s2643 + $0xc8] sm:$0xff]
        %v2670 = vld [vmem:[%s2643 + $0xd0] sm:$0xff]
        %v2671 = vld [vmem:[%s2643 + $0xd8] sm:$0xff]
        %v2672 = vld [vmem:[%s2643 + $0xe0] sm:$0xff]
        %v2673 = vld [vmem:[%s2643 + $0xe8] sm:$0xff]
        %v2674 = vld [vmem:[%s2643 + $0xf0] sm:$0xff]
        %v2675 = vld [vmem:[%s2643 + $0xf8] sm:$0xff]
        %v2676 = vld [vmem:[%s2643 + $0x100] sm:$0xff]
        %v2677 = vld [vmem:[%s2643 + $0x108] sm:$0xff]
        %v2678 = vld [vmem:[%s2643 + $0x110] sm:$0xff]
        %v2679 = vld [vmem:[%s2643 + $0x118] sm:$0xff]
        %v2680 = vld [vmem:[%s2643 + $0x120] sm:$0xff]
        %v2681 = vld [vmem:[%s2643 + $0x128] sm:$0xff]
        %v2682 = vld [vmem:[%s2643 + $0x130] sm:$0xff]
        %v2683 = vld [vmem:[%s2643 + $0x138] sm:$0xff]
        %v2684 = vld [vmem:[%s2643 + $0x140] sm:$0xff]
        %v2685 = vld [vmem:[%s2643 + $0x148] sm:$0xff]
        %v2686 = vld [vmem:[%s2643 + $0x150] sm:$0xff]
        %v2687 = vld [vmem:[%s2643 + $0x158] sm:$0xff]
        %v2688 = vld [vmem:[%s2643 + $0x160] sm:$0xff]
        %v2689 = vld [vmem:[%s2643 + $0x168] sm:$0xff]
        %v2690 = vld [vmem:[%s2643 + $0x170] sm:$0xff]
        %v2691 = vld [vmem:[%s2643 + $0x178] sm:$0xff]
        %v2692 = vld [vmem:[%s2643 + $0x180] sm:$0xff]
        %v2693 = vld [vmem:[%s2643 + $0x188] sm:$0xff]
        %v2694 = vld [vmem:[%s2643 + $0x190] sm:$0xff]
        %v2695 = vld [vmem:[%s2643 + $0x198] sm:$0xff]
        %v2696 = vld [vmem:[%s2643 + $0x1a0] sm:$0xff]
        %v2697 = vld [vmem:[%s2643 + $0x1a8] sm:$0xff]
        %v2698 = vld [vmem:[%s2643 + $0x1b0] sm:$0xff]
        %v2699 = vld [vmem:[%s2643 + $0x1b8] sm:$0xff]
        %v2700 = vld [vmem:[%s2643 + $0x1c0] sm:$0xff]
        %v2701 = vld [vmem:[%s2643 + $0x1c8] sm:$0xff]
        %v2702 = vld [vmem:[%s2643 + $0x1d0] sm:$0xff]
        %v2703 = vld [vmem:[%s2643 + $0x1d8] sm:$0xff]
        %v2704 = vld [vmem:[%s2643 + $0x1e0] sm:$0xff]
        %v2705 = vld [vmem:[%s2643 + $0x1e8] sm:$0xff]
        %v2706 = vld [vmem:[%s2643 + $0x1f0] sm:$0xff]
        %v2707 = vld [vmem:[%s2643 + $0x1f8] sm:$0xff]
        %v2772 = vunpack.c.l.b16 %v2644
        %v2773 = vunpack.c.h.b16 %v2644
        %v2774 = vunpack.c.l.b16 %v2645
        %v2775 = vunpack.c.h.b16 %v2645
        %v2776 = vunpack.c.l.b16 %v2646
        %v2777 = vunpack.c.h.b16 %v2646
        %v2778 = vunpack.c.l.b16 %v2647
        %v2779 = vunpack.c.h.b16 %v2647
        %v2780 = vunpack.c.l.b16 %v2648
        %v2781 = vunpack.c.h.b16 %v2648
        %v2782 = vunpack.c.l.b16 %v2649
        %v2783 = vunpack.c.h.b16 %v2649
        %v2784 = vunpack.c.l.b16 %v2650
        %v2785 = vunpack.c.h.b16 %v2650
        %v2786 = vunpack.c.l.b16 %v2651
        %v2787 = vunpack.c.h.b16 %v2651
        %v2788 = vunpack.c.l.b16 %v2652
        %v2789 = vunpack.c.h.b16 %v2652
        %v2790 = vunpack.c.l.b16 %v2653
        %v2791 = vunpack.c.h.b16 %v2653
        %v2792 = vunpack.c.l.b16 %v2654
        %v2793 = vunpack.c.h.b16 %v2654
        %v2794 = vunpack.c.l.b16 %v2655
        %v2795 = vunpack.c.h.b16 %v2655
        %v2796 = vunpack.c.l.b16 %v2656
        %v2797 = vunpack.c.h.b16 %v2656
        %v2798 = vunpack.c.l.b16 %v2657
        %v2799 = vunpack.c.h.b16 %v2657
        %v2800 = vunpack.c.l.b16 %v2658
        %v2801 = vunpack.c.h.b16 %v2658
        %v2802 = vunpack.c.l.b16 %v2659
        %v2803 = vunpack.c.h.b16 %v2659
        %v2804 = vunpack.c.l.b16 %v2660
        %v2805 = vunpack.c.h.b16 %v2660
        %v2806 = vunpack.c.l.b16 %v2661
        %v2807 = vunpack.c.h.b16 %v2661
        %v2808 = vunpack.c.l.b16 %v2662
        %v2809 = vunpack.c.h.b16 %v2662
        %v2810 = vunpack.c.l.b16 %v2663
        %v2811 = vunpack.c.h.b16 %v2663
        %v2812 = vunpack.c.l.b16 %v2664
        %v2813 = vunpack.c.h.b16 %v2664
        %v2814 = vunpack.c.l.b16 %v2665
        %v2815 = vunpack.c.h.b16 %v2665
        %v2816 = vunpack.c.l.b16 %v2666
        %v2817 = vunpack.c.h.b16 %v2666
        %v2818 = vunpack.c.l.b16 %v2667
        %v2819 = vunpack.c.h.b16 %v2667
        %v2820 = vunpack.c.l.b16 %v2668
        %v2821 = vunpack.c.h.b16 %v2668
        %v2822 = vunpack.c.l.b16 %v2669
        %v2823 = vunpack.c.h.b16 %v2669
        %v2824 = vunpack.c.l.b16 %v2670
        %v2825 = vunpack.c.h.b16 %v2670
        %v2826 = vunpack.c.l.b16 %v2671
        %v2827 = vunpack.c.h.b16 %v2671
        %v2828 = vunpack.c.l.b16 %v2672
        %v2829 = vunpack.c.h.b16 %v2672
        %v2830 = vunpack.c.l.b16 %v2673
        %v2831 = vunpack.c.h.b16 %v2673
        %v2832 = vunpack.c.l.b16 %v2674
        %v2833 = vunpack.c.h.b16 %v2674
        %v2834 = vunpack.c.l.b16 %v2675
        %v2835 = vunpack.c.h.b16 %v2675
        %v2836 = vunpack.c.l.b16 %v2676
        %v2837 = vunpack.c.h.b16 %v2676
        %v2838 = vunpack.c.l.b16 %v2677
        %v2839 = vunpack.c.h.b16 %v2677
        %v2840 = vunpack.c.l.b16 %v2678
        %v2841 = vunpack.c.h.b16 %v2678
        %v2842 = vunpack.c.l.b16 %v2679
        %v2843 = vunpack.c.h.b16 %v2679
        %v2844 = vunpack.c.l.b16 %v2680
        %v2845 = vunpack.c.h.b16 %v2680
        %v2846 = vunpack.c.l.b16 %v2681
        %v2847 = vunpack.c.h.b16 %v2681
        %v2848 = vunpack.c.l.b16 %v2682
        %v2849 = vunpack.c.h.b16 %v2682
        %v2850 = vunpack.c.l.b16 %v2683
        %v2851 = vunpack.c.h.b16 %v2683
        %v2852 = vunpack.c.l.b16 %v2684
        %v2853 = vunpack.c.h.b16 %v2684
        %v2854 = vunpack.c.l.b16 %v2685
        %v2855 = vunpack.c.h.b16 %v2685
        %v2856 = vunpack.c.l.b16 %v2686
        %v2857 = vunpack.c.h.b16 %v2686
        %v2858 = vunpack.c.l.b16 %v2687
        %v2859 = vunpack.c.h.b16 %v2687
        %v2860 = vunpack.c.l.b16 %v2688
        %v2861 = vunpack.c.h.b16 %v2688
        %v2862 = vunpack.c.l.b16 %v2689
        %v2863 = vunpack.c.h.b16 %v2689
        %v2864 = vunpack.c.l.b16 %v2690
        %v2865 = vunpack.c.h.b16 %v2690
        %v2866 = vunpack.c.l.b16 %v2691
        %v2867 = vunpack.c.h.b16 %v2691
        %v2868 = vunpack.c.l.b16 %v2692
        %v2869 = vunpack.c.h.b16 %v2692
        %v2870 = vunpack.c.l.b16 %v2693
        %v2871 = vunpack.c.h.b16 %v2693
        %v2872 = vunpack.c.l.b16 %v2694
        %v2873 = vunpack.c.h.b16 %v2694
        %v2874 = vunpack.c.l.b16 %v2695
        %v2875 = vunpack.c.h.b16 %v2695
        %v2876 = vunpack.c.l.b16 %v2696
        %v2877 = vunpack.c.h.b16 %v2696
        %v2878 = vunpack.c.l.b16 %v2697
        %v2879 = vunpack.c.h.b16 %v2697
        %v2880 = vunpack.c.l.b16 %v2698
        %v2881 = vunpack.c.h.b16 %v2698
        %v2882 = vunpack.c.l.b16 %v2699
        %v2883 = vunpack.c.h.b16 %v2699
        %v2884 = vunpack.c.l.b16 %v2700
        %v2885 = vunpack.c.h.b16 %v2700
        %v2886 = vunpack.c.l.b16 %v2701
        %v2887 = vunpack.c.h.b16 %v2701
        %v2888 = vunpack.c.l.b16 %v2702
        %v2889 = vunpack.c.h.b16 %v2702
        %v2890 = vunpack.c.l.b16 %v2703
        %v2891 = vunpack.c.h.b16 %v2703
        %v2892 = vunpack.c.l.b16 %v2704
        %v2893 = vunpack.c.h.b16 %v2704
        %v2894 = vunpack.c.l.b16 %v2705
        %v2895 = vunpack.c.h.b16 %v2705
        %v2896 = vunpack.c.l.b16 %v2706
        %v2897 = vunpack.c.h.b16 %v2706
        %v2898 = vunpack.c.l.b16 %v2707
        %v2899 = vunpack.c.h.b16 %v2707
        %v2900 = vpack.c.b16 %v2780, %v2772
        %v2901 = vpack.c.b16 %v2781, %v2773
        %v2902 = vpack.c.b16 %v2782, %v2774
        %v2903 = vpack.c.b16 %v2783, %v2775
        %v2904 = vpack.c.b16 %v2784, %v2776
        %v2905 = vpack.c.b16 %v2785, %v2777
        %v2906 = vpack.c.b16 %v2786, %v2778
        %v2907 = vpack.c.b16 %v2787, %v2779
        %v2908 = vpack.c.b16 %v2796, %v2788
        %v2909 = vpack.c.b16 %v2797, %v2789
        %v2910 = vpack.c.b16 %v2798, %v2790
        %v2911 = vpack.c.b16 %v2799, %v2791
        %v2912 = vpack.c.b16 %v2800, %v2792
        %v2913 = vpack.c.b16 %v2801, %v2793
        %v2914 = vpack.c.b16 %v2802, %v2794
        %v2915 = vpack.c.b16 %v2803, %v2795
        %v2916 = vpack.c.b16 %v2812, %v2804
        %v2917 = vpack.c.b16 %v2813, %v2805
        %v2918 = vpack.c.b16 %v2814, %v2806
        %v2919 = vpack.c.b16 %v2815, %v2807
        %v2920 = vpack.c.b16 %v2816, %v2808
        %v2921 = vpack.c.b16 %v2817, %v2809
        %v2922 = vpack.c.b16 %v2818, %v2810
        %v2923 = vpack.c.b16 %v2819, %v2811
        %v2924 = vpack.c.b16 %v2828, %v2820
        %v2925 = vpack.c.b16 %v2829, %v2821
        %v2926 = vpack.c.b16 %v2830, %v2822
        %v2927 = vpack.c.b16 %v2831, %v2823
        %v2928 = vpack.c.b16 %v2832, %v2824
        %v2929 = vpack.c.b16 %v2833, %v2825
        %v2930 = vpack.c.b16 %v2834, %v2826
        %v2931 = vpack.c.b16 %v2835, %v2827
        %v2932 = vpack.c.b16 %v2844, %v2836
        %v2933 = vpack.c.b16 %v2845, %v2837
        %v2934 = vpack.c.b16 %v2846, %v2838
        %v2935 = vpack.c.b16 %v2847, %v2839
        %v2936 = vpack.c.b16 %v2848, %v2840
        %v2937 = vpack.c.b16 %v2849, %v2841
        %v2938 = vpack.c.b16 %v2850, %v2842
        %v2939 = vpack.c.b16 %v2851, %v2843
        %v2940 = vpack.c.b16 %v2860, %v2852
        %v2941 = vpack.c.b16 %v2861, %v2853
        %v2942 = vpack.c.b16 %v2862, %v2854
        %v2943 = vpack.c.b16 %v2863, %v2855
        %v2944 = vpack.c.b16 %v2864, %v2856
        %v2945 = vpack.c.b16 %v2865, %v2857
        %v2946 = vpack.c.b16 %v2866, %v2858
        %v2947 = vpack.c.b16 %v2867, %v2859
        %v2948 = vpack.c.b16 %v2876, %v2868
        %v2949 = vpack.c.b16 %v2877, %v2869
        %v2950 = vpack.c.b16 %v2878, %v2870
        %v2951 = vpack.c.b16 %v2879, %v2871
        %v2952 = vpack.c.b16 %v2880, %v2872
        %v2953 = vpack.c.b16 %v2881, %v2873
        %v2954 = vpack.c.b16 %v2882, %v2874
        %v2955 = vpack.c.b16 %v2883, %v2875
        %v2956 = vpack.c.b16 %v2892, %v2884
        %v2957 = vpack.c.b16 %v2893, %v2885
        %v2958 = vpack.c.b16 %v2894, %v2886
        %v2959 = vpack.c.b16 %v2895, %v2887
        %v2960 = vpack.c.b16 %v2896, %v2888
        %v2961 = vpack.c.b16 %v2897, %v2889
        %v2962 = vpack.c.b16 %v2898, %v2890
        %v2963 = vpack.c.b16 %v2899, %v2891
        %3028 = vmatpush.bf16.msra.mxu0 %v2956
        %3029 = vmatpush.bf16.msra.mxu0 %v2948
        %3030 = vmatpush.bf16.msra.mxu0 %v2940
        %3031 = vmatpush.bf16.msra.mxu0 %v2932
        %3032 = vmatpush.bf16.msra.mxu0 %v2924
        %3033 = vmatpush.bf16.msra.mxu0 %v2916
        %3034 = vmatpush.bf16.msra.mxu0 %v2908
        %3035 = vmatpush.bf16.msra.mxu0 %v2900
        %3036 = vmatmul.bf16.gmra.mxu0 %v2635
        %v3037 = vpop.f32.mrf.mxu0
        %v3038 = vadd.f32 0.0, %v3037
        %v3039 = vpop.f32.mrf.mxu0
        %v3040 = vadd.f32 0.0, %v3039
        %3041 = vmatmul.bf16.gmra.mxu0 %v2636
        %v3042 = vpop.f32.mrf.mxu0
        %v3043 = vadd.f32 0.0, %v3042
        %v3044 = vpop.f32.mrf.mxu0
        %v3045 = vadd.f32 0.0, %v3044
        %3046 = vmatmul.bf16.gmra.mxu0 %v2637
        %v3047 = vpop.f32.mrf.mxu0
        %v3048 = vadd.f32 0.0, %v3047
        %v3049 = vpop.f32.mrf.mxu0
        %v3050 = vadd.f32 0.0, %v3049
        %3051 = vmatmul.bf16.gmra.mxu0 %v2638
        %v3052 = vpop.f32.mrf.mxu0
        %v3053 = vadd.f32 0.0, %v3052
        %v3054 = vpop.f32.mrf.mxu0
        %v3055 = vadd.f32 0.0, %v3054
        %3056 = vmatmul.bf16.gmra.mxu0 %v2639
        %v3057 = vpop.f32.mrf.mxu0
        %v3058 = vadd.f32 0.0, %v3057
        %v3059 = vpop.f32.mrf.mxu0
        %v3060 = vadd.f32 0.0, %v3059
        %3061 = vmatmul.bf16.gmra.mxu0 %v2640
        %v3062 = vpop.f32.mrf.mxu0
        %v3063 = vadd.f32 0.0, %v3062
        %v3064 = vpop.f32.mrf.mxu0
        %v3065 = vadd.f32 0.0, %v3064
        %3066 = vmatmul.bf16.gmra.mxu0 %v2641
        %v3067 = vpop.f32.mrf.mxu0
        %v3068 = vadd.f32 0.0, %v3067
        %v3069 = vpop.f32.mrf.mxu0
        %v3070 = vadd.f32 0.0, %v3069
        %3071 = vmatmul.bf16.gmra.mxu0 %v2642
        %v3072 = vpop.f32.mrf.mxu0
        %v3073 = vadd.f32 0.0, %v3072
        %v3074 = vpop.f32.mrf.mxu0
        %v3075 = vadd.f32 0.0, %v3074
        %3076 = vdwg.mxu0
        %3077 = vmatpush.bf16.msra.mxu0 %v2957
        %3078 = vmatpush.bf16.msra.mxu0 %v2949
        %3079 = vmatpush.bf16.msra.mxu0 %v2941
        %3080 = vmatpush.bf16.msra.mxu0 %v2933
        %3081 = vmatpush.bf16.msra.mxu0 %v2925
        %3082 = vmatpush.bf16.msra.mxu0 %v2917
        %3083 = vmatpush.bf16.msra.mxu0 %v2909
        %3084 = vmatpush.bf16.msra.mxu0 %v2901
        %3085 = vmatmul.bf16.gmra.mxu0 %v2635
        %v3086 = vpop.f32.mrf.mxu0
        %v3087 = vadd.f32 0.0, %v3086
        %v3088 = vpop.f32.mrf.mxu0
        %v3089 = vadd.f32 0.0, %v3088
        %3090 = vmatmul.bf16.gmra.mxu0 %v2636
        %v3091 = vpop.f32.mrf.mxu0
        %v3092 = vadd.f32 0.0, %v3091
        %v3093 = vpop.f32.mrf.mxu0
        %v3094 = vadd.f32 0.0, %v3093
        %3095 = vmatmul.bf16.gmra.mxu0 %v2637
        %v3096 = vpop.f32.mrf.mxu0
        %v3097 = vadd.f32 0.0, %v3096
        %v3098 = vpop.f32.mrf.mxu0
        %v3099 = vadd.f32 0.0, %v3098
        %3100 = vmatmul.bf16.gmra.mxu0 %v2638
        %v3101 = vpop.f32.mrf.mxu0
        %v3102 = vadd.f32 0.0, %v3101
        %v3103 = vpop.f32.mrf.mxu0
        %v3104 = vadd.f32 0.0, %v3103
        %3105 = vmatmul.bf16.gmra.mxu0 %v2639
        %v3106 = vpop.f32.mrf.mxu0
        %v3107 = vadd.f32 0.0, %v3106
        %v3108 = vpop.f32.mrf.mxu0
        %v3109 = vadd.f32 0.0, %v3108
        %3110 = vmatmul.bf16.gmra.mxu0 %v2640
        %v3111 = vpop.f32.mrf.mxu0
        %v3112 = vadd.f32 0.0, %v3111
        %v3113 = vpop.f32.mrf.mxu0
        %v3114 = vadd.f32 0.0, %v3113
        %3115 = vmatmul.bf16.gmra.mxu0 %v2641
        %v3116 = vpop.f32.mrf.mxu0
        %v3117 = vadd.f32 0.0, %v3116
        %v3118 = vpop.f32.mrf.mxu0
        %v3119 = vadd.f32 0.0, %v3118
        %3120 = vmatmul.bf16.gmra.mxu0 %v2642
        %v3121 = vpop.f32.mrf.mxu0
        %v3122 = vadd.f32 0.0, %v3121
        %v3123 = vpop.f32.mrf.mxu0
        %v3124 = vadd.f32 0.0, %v3123
        %3125 = vdwg.mxu0
        %3126 = vmatpush.bf16.msra.mxu0 %v2958
        %3127 = vmatpush.bf16.msra.mxu0 %v2950
        %3128 = vmatpush.bf16.msra.mxu0 %v2942
        %3129 = vmatpush.bf16.msra.mxu0 %v2934
        %3130 = vmatpush.bf16.msra.mxu0 %v2926
        %3131 = vmatpush.bf16.msra.mxu0 %v2918
        %3132 = vmatpush.bf16.msra.mxu0 %v2910
        %3133 = vmatpush.bf16.msra.mxu0 %v2902
        %3134 = vmatmul.bf16.gmra.mxu0 %v2635
        %v3135 = vpop.f32.mrf.mxu0
        %v3136 = vadd.f32 0.0, %v3135
        %v3137 = vpop.f32.mrf.mxu0
        %v3138 = vadd.f32 0.0, %v3137
        %3139 = vmatmul.bf16.gmra.mxu0 %v2636
        %v3140 = vpop.f32.mrf.mxu0
        %v3141 = vadd.f32 0.0, %v3140
        %v3142 = vpop.f32.mrf.mxu0
        %v3143 = vadd.f32 0.0, %v3142
        %3144 = vmatmul.bf16.gmra.mxu0 %v2637
        %v3145 = vpop.f32.mrf.mxu0
        %v3146 = vadd.f32 0.0, %v3145
        %v3147 = vpop.f32.mrf.mxu0
        %v3148 = vadd.f32 0.0, %v3147
        %3149 = vmatmul.bf16.gmra.mxu0 %v2638
        %v3150 = vpop.f32.mrf.mxu0
        %v3151 = vadd.f32 0.0, %v3150
        %v3152 = vpop.f32.mrf.mxu0
        %v3153 = vadd.f32 0.0, %v3152
        %3154 = vmatmul.bf16.gmra.mxu0 %v2639
        %v3155 = vpop.f32.mrf.mxu0
        %v3156 = vadd.f32 0.0, %v3155
        %v3157 = vpop.f32.mrf.mxu0
        %v3158 = vadd.f32 0.0, %v3157
        %3159 = vmatmul.bf16.gmra.mxu0 %v2640
        %v3160 = vpop.f32.mrf.mxu0
        %v3161 = vadd.f32 0.0, %v3160
        %v3162 = vpop.f32.mrf.mxu0
        %v3163 = vadd.f32 0.0, %v3162
        %3164 = vmatmul.bf16.gmra.mxu0 %v2641
        %v3165 = vpop.f32.mrf.mxu0
        %v3166 = vadd.f32 0.0, %v3165
        %v3167 = vpop.f32.mrf.mxu0
        %v3168 = vadd.f32 0.0, %v3167
        %3169 = vmatmul.bf16.gmra.mxu0 %v2642
        %v3170 = vpop.f32.mrf.mxu0
        %v3171 = vadd.f32 0.0, %v3170
        %v3172 = vpop.f32.mrf.mxu0
        %v3173 = vadd.f32 0.0, %v3172
        %3174 = vdwg.mxu0
        %3175 = vmatpush.bf16.msra.mxu0 %v2959
        %3176 = vmatpush.bf16.msra.mxu0 %v2951
        %3177 = vmatpush.bf16.msra.mxu0 %v2943
        %3178 = vmatpush.bf16.msra.mxu0 %v2935
        %3179 = vmatpush.bf16.msra.mxu0 %v2927
        %3180 = vmatpush.bf16.msra.mxu0 %v2919
        %3181 = vmatpush.bf16.msra.mxu0 %v2911
        %3182 = vmatpush.bf16.msra.mxu0 %v2903
        %3183 = vmatmul.bf16.gmra.mxu0 %v2635
        %v3184 = vpop.f32.mrf.mxu0
        %v3185 = vadd.f32 0.0, %v3184
        %v3186 = vpop.f32.mrf.mxu0
        %v3187 = vadd.f32 0.0, %v3186
        %3188 = vmatmul.bf16.gmra.mxu0 %v2636
        %v3189 = vpop.f32.mrf.mxu0
        %v3190 = vadd.f32 0.0, %v3189
        %v3191 = vpop.f32.mrf.mxu0
        %v3192 = vadd.f32 0.0, %v3191
        %3193 = vmatmul.bf16.gmra.mxu0 %v2637
        %v3194 = vpop.f32.mrf.mxu0
        %v3195 = vadd.f32 0.0, %v3194
        %v3196 = vpop.f32.mrf.mxu0
        %v3197 = vadd.f32 0.0, %v3196
        %3198 = vmatmul.bf16.gmra.mxu0 %v2638
        %v3199 = vpop.f32.mrf.mxu0
        %v3200 = vadd.f32 0.0, %v3199
        %v3201 = vpop.f32.mrf.mxu0
        %v3202 = vadd.f32 0.0, %v3201
        %3203 = vmatmul.bf16.gmra.mxu0 %v2639
        %v3204 = vpop.f32.mrf.mxu0
        %v3205 = vadd.f32 0.0, %v3204
        %v3206 = vpop.f32.mrf.mxu0
        %v3207 = vadd.f32 0.0, %v3206
        %3208 = vmatmul.bf16.gmra.mxu0 %v2640
        %v3209 = vpop.f32.mrf.mxu0
        %v3210 = vadd.f32 0.0, %v3209
        %v3211 = vpop.f32.mrf.mxu0
        %v3212 = vadd.f32 0.0, %v3211
        %3213 = vmatmul.bf16.gmra.mxu0 %v2641
        %v3214 = vpop.f32.mrf.mxu0
        %v3215 = vadd.f32 0.0, %v3214
        %v3216 = vpop.f32.mrf.mxu0
        %v3217 = vadd.f32 0.0, %v3216
        %3218 = vmatmul.bf16.gmra.mxu0 %v2642
        %v3219 = vpop.f32.mrf.mxu0
        %v3220 = vadd.f32 0.0, %v3219
        %v3221 = vpop.f32.mrf.mxu0
        %v3222 = vadd.f32 0.0, %v3221
        %3223 = vdwg.mxu0
        %3224 = vmatpush.bf16.msra.mxu0 %v2960
        %3225 = vmatpush.bf16.msra.mxu0 %v2952
        %3226 = vmatpush.bf16.msra.mxu0 %v2944
        %3227 = vmatpush.bf16.msra.mxu0 %v2936
        %3228 = vmatpush.bf16.msra.mxu0 %v2928
        %3229 = vmatpush.bf16.msra.mxu0 %v2920
        %3230 = vmatpush.bf16.msra.mxu0 %v2912
        %3231 = vmatpush.bf16.msra.mxu0 %v2904
        %3232 = vmatmul.bf16.gmra.mxu0 %v2635
        %v3233 = vpop.f32.mrf.mxu0
        %v3234 = vadd.f32 0.0, %v3233
        %v3235 = vpop.f32.mrf.mxu0
        %v3236 = vadd.f32 0.0, %v3235
        %3237 = vmatmul.bf16.gmra.mxu0 %v2636
        %v3238 = vpop.f32.mrf.mxu0
        %v3239 = vadd.f32 0.0, %v3238
        %v3240 = vpop.f32.mrf.mxu0
        %v3241 = vadd.f32 0.0, %v3240
        %3242 = vmatmul.bf16.gmra.mxu0 %v2637
        %v3243 = vpop.f32.mrf.mxu0
        %v3244 = vadd.f32 0.0, %v3243
        %v3245 = vpop.f32.mrf.mxu0
        %v3246 = vadd.f32 0.0, %v3245
        %3247 = vmatmul.bf16.gmra.mxu0 %v2638
        %v3248 = vpop.f32.mrf.mxu0
        %v3249 = vadd.f32 0.0, %v3248
        %v3250 = vpop.f32.mrf.mxu0
        %v3251 = vadd.f32 0.0, %v3250
        %3252 = vmatmul.bf16.gmra.mxu0 %v2639
        %v3253 = vpop.f32.mrf.mxu0
        %v3254 = vadd.f32 0.0, %v3253
        %v3255 = vpop.f32.mrf.mxu0
        %v3256 = vadd.f32 0.0, %v3255
        %3257 = vmatmul.bf16.gmra.mxu0 %v2640
        %v3258 = vpop.f32.mrf.mxu0
        %v3259 = vadd.f32 0.0, %v3258
        %v3260 = vpop.f32.mrf.mxu0
        %v3261 = vadd.f32 0.0, %v3260
        %3262 = vmatmul.bf16.gmra.mxu0 %v2641
        %v3263 = vpop.f32.mrf.mxu0
        %v3264 = vadd.f32 0.0, %v3263
        %v3265 = vpop.f32.mrf.mxu0
        %v3266 = vadd.f32 0.0, %v3265
        %3267 = vmatmul.bf16.gmra.mxu0 %v2642
        %v3268 = vpop.f32.mrf.mxu0
        %v3269 = vadd.f32 0.0, %v3268
        %v3270 = vpop.f32.mrf.mxu0
        %v3271 = vadd.f32 0.0, %v3270
        %3272 = vdwg.mxu0
        %3273 = vmatpush.bf16.msra.mxu0 %v2961
        %3274 = vmatpush.bf16.msra.mxu0 %v2953
        %3275 = vmatpush.bf16.msra.mxu0 %v2945
        %3276 = vmatpush.bf16.msra.mxu0 %v2937
        %3277 = vmatpush.bf16.msra.mxu0 %v2929
        %3278 = vmatpush.bf16.msra.mxu0 %v2921
        %3279 = vmatpush.bf16.msra.mxu0 %v2913
        %3280 = vmatpush.bf16.msra.mxu0 %v2905
        %3281 = vmatmul.bf16.gmra.mxu0 %v2635
        %v3282 = vpop.f32.mrf.mxu0
        %v3283 = vadd.f32 0.0, %v3282
        %v3284 = vpop.f32.mrf.mxu0
        %v3285 = vadd.f32 0.0, %v3284
        %3286 = vmatmul.bf16.gmra.mxu0 %v2636
        %v3287 = vpop.f32.mrf.mxu0
        %v3288 = vadd.f32 0.0, %v3287
        %v3289 = vpop.f32.mrf.mxu0
        %v3290 = vadd.f32 0.0, %v3289
        %3291 = vmatmul.bf16.gmra.mxu0 %v2637
        %v3292 = vpop.f32.mrf.mxu0
        %v3293 = vadd.f32 0.0, %v3292
        %v3294 = vpop.f32.mrf.mxu0
        %v3295 = vadd.f32 0.0, %v3294
        %3296 = vmatmul.bf16.gmra.mxu0 %v2638
        %v3297 = vpop.f32.mrf.mxu0
        %v3298 = vadd.f32 0.0, %v3297
        %v3299 = vpop.f32.mrf.mxu0
        %v3300 = vadd.f32 0.0, %v3299
        %3301 = vmatmul.bf16.gmra.mxu0 %v2639
        %v3302 = vpop.f32.mrf.mxu0
        %v3303 = vadd.f32 0.0, %v3302
        %v3304 = vpop.f32.mrf.mxu0
        %v3305 = vadd.f32 0.0, %v3304
        %3306 = vmatmul.bf16.gmra.mxu0 %v2640
        %v3307 = vpop.f32.mrf.mxu0
        %v3308 = vadd.f32 0.0, %v3307
        %v3309 = vpop.f32.mrf.mxu0
        %v3310 = vadd.f32 0.0, %v3309
        %3311 = vmatmul.bf16.gmra.mxu0 %v2641
        %v3312 = vpop.f32.mrf.mxu0
        %v3313 = vadd.f32 0.0, %v3312
        %v3314 = vpop.f32.mrf.mxu0
        %v3315 = vadd.f32 0.0, %v3314
        %3316 = vmatmul.bf16.gmra.mxu0 %v2642
        %v3317 = vpop.f32.mrf.mxu0
        %v3318 = vadd.f32 0.0, %v3317
        %v3319 = vpop.f32.mrf.mxu0
        %v3320 = vadd.f32 0.0, %v3319
        %3321 = vdwg.mxu0
        %3322 = vmatpush.bf16.msra.mxu0 %v2962
        %3323 = vmatpush.bf16.msra.mxu0 %v2954
        %3324 = vmatpush.bf16.msra.mxu0 %v2946
        %3325 = vmatpush.bf16.msra.mxu0 %v2938
        %3326 = vmatpush.bf16.msra.mxu0 %v2930
        %3327 = vmatpush.bf16.msra.mxu0 %v2922
        %3328 = vmatpush.bf16.msra.mxu0 %v2914
        %3329 = vmatpush.bf16.msra.mxu0 %v2906
        %3330 = vmatmul.bf16.gmra.mxu0 %v2635
        %v3331 = vpop.f32.mrf.mxu0
        %v3332 = vadd.f32 0.0, %v3331
        %v3333 = vpop.f32.mrf.mxu0
        %v3334 = vadd.f32 0.0, %v3333
        %3335 = vmatmul.bf16.gmra.mxu0 %v2636
        %v3336 = vpop.f32.mrf.mxu0
        %v3337 = vadd.f32 0.0, %v3336
        %v3338 = vpop.f32.mrf.mxu0
        %v3339 = vadd.f32 0.0, %v3338
        %3340 = vmatmul.bf16.gmra.mxu0 %v2637
        %v3341 = vpop.f32.mrf.mxu0
        %v3342 = vadd.f32 0.0, %v3341
        %v3343 = vpop.f32.mrf.mxu0
        %v3344 = vadd.f32 0.0, %v3343
        %3345 = vmatmul.bf16.gmra.mxu0 %v2638
        %v3346 = vpop.f32.mrf.mxu0
        %v3347 = vadd.f32 0.0, %v3346
        %v3348 = vpop.f32.mrf.mxu0
        %v3349 = vadd.f32 0.0, %v3348
        %3350 = vmatmul.bf16.gmra.mxu0 %v2639
        %v3351 = vpop.f32.mrf.mxu0
        %v3352 = vadd.f32 0.0, %v3351
        %v3353 = vpop.f32.mrf.mxu0
        %v3354 = vadd.f32 0.0, %v3353
        %3355 = vmatmul.bf16.gmra.mxu0 %v2640
        %v3356 = vpop.f32.mrf.mxu0
        %v3357 = vadd.f32 0.0, %v3356
        %v3358 = vpop.f32.mrf.mxu0
        %v3359 = vadd.f32 0.0, %v3358
        %3360 = vmatmul.bf16.gmra.mxu0 %v2641
        %v3361 = vpop.f32.mrf.mxu0
        %v3362 = vadd.f32 0.0, %v3361
        %v3363 = vpop.f32.mrf.mxu0
        %v3364 = vadd.f32 0.0, %v3363
        %3365 = vmatmul.bf16.gmra.mxu0 %v2642
        %v3366 = vpop.f32.mrf.mxu0
        %v3367 = vadd.f32 0.0, %v3366
        %v3368 = vpop.f32.mrf.mxu0
        %v3369 = vadd.f32 0.0, %v3368
        %3370 = vdwg.mxu0
        %3371 = vmatpush.bf16.msra.mxu0 %v2963
        %3372 = vmatpush.bf16.msra.mxu0 %v2955
        %3373 = vmatpush.bf16.msra.mxu0 %v2947
        %3374 = vmatpush.bf16.msra.mxu0 %v2939
        %3375 = vmatpush.bf16.msra.mxu0 %v2931
        %3376 = vmatpush.bf16.msra.mxu0 %v2923
        %3377 = vmatpush.bf16.msra.mxu0 %v2915
        %3378 = vmatpush.bf16.msra.mxu0 %v2907
        %3379 = vmatmul.bf16.gmra.mxu0 %v2635
        %v3380 = vpop.f32.mrf.mxu0
        %v3381 = vadd.f32 0.0, %v3380
        %v3382 = vpop.f32.mrf.mxu0
        %v3383 = vadd.f32 0.0, %v3382
        %3384 = vmatmul.bf16.gmra.mxu0 %v2636
        %v3385 = vpop.f32.mrf.mxu0
        %v3386 = vadd.f32 0.0, %v3385
        %v3387 = vpop.f32.mrf.mxu0
        %v3388 = vadd.f32 0.0, %v3387
        %3389 = vmatmul.bf16.gmra.mxu0 %v2637
        %v3390 = vpop.f32.mrf.mxu0
        %v3391 = vadd.f32 0.0, %v3390
        %v3392 = vpop.f32.mrf.mxu0
        %v3393 = vadd.f32 0.0, %v3392
        %3394 = vmatmul.bf16.gmra.mxu0 %v2638
        %v3395 = vpop.f32.mrf.mxu0
        %v3396 = vadd.f32 0.0, %v3395
        %v3397 = vpop.f32.mrf.mxu0
        %v3398 = vadd.f32 0.0, %v3397
        %3399 = vmatmul.bf16.gmra.mxu0 %v2639
        %v3400 = vpop.f32.mrf.mxu0
        %v3401 = vadd.f32 0.0, %v3400
        %v3402 = vpop.f32.mrf.mxu0
        %v3403 = vadd.f32 0.0, %v3402
        %3404 = vmatmul.bf16.gmra.mxu0 %v2640
        %v3405 = vpop.f32.mrf.mxu0
        %v3406 = vadd.f32 0.0, %v3405
        %v3407 = vpop.f32.mrf.mxu0
        %v3408 = vadd.f32 0.0, %v3407
        %3409 = vmatmul.bf16.gmra.mxu0 %v2641
        %v3410 = vpop.f32.mrf.mxu0
        %v3411 = vadd.f32 0.0, %v3410
        %v3412 = vpop.f32.mrf.mxu0
        %v3413 = vadd.f32 0.0, %v3412
        %3414 = vmatmul.bf16.gmra.mxu0 %v2642
        %v3415 = vpop.f32.mrf.mxu0
        %v3416 = vadd.f32 0.0, %v3415
        %v3417 = vpop.f32.mrf.mxu0
        %v3418 = vadd.f32 0.0, %v3417
        %3419 = vdwg.mxu0
        %s3420 = scalar_lea.vmem %s8, 8
        %v3421 = vld [vmem:[%s3420] sm:$0xff]
        %v3423 = vperm.slane %v3421, 0
        %v3424 = vperm.slane %v3421, 1
        %v3425 = vperm.slane %v3421, 2
        %v3426 = vperm.slane %v3421, 3
        %v3427 = vperm.slane %v3421, 4
        %v3428 = vperm.slane %v3421, 5
        %v3429 = vperm.slane %v3421, 6
        %v3430 = vperm.slane %v3421, 7
        %v3439 = vmul.f32 %v3038, %v3423
        %v3440 = vmul.f32 %v3087, %v3424
        %v3441 = vmul.f32 %v3136, %v3425
        %v3442 = vmul.f32 %v3185, %v3426
        %v3443 = vmul.f32 %v3234, %v3427
        %v3444 = vmul.f32 %v3283, %v3428
        %v3445 = vmul.f32 %v3332, %v3429
        %v3446 = vmul.f32 %v3381, %v3430
        %v3447 = vmul.f32 %v3040, %v3423
        %v3448 = vmul.f32 %v3089, %v3424
        %v3449 = vmul.f32 %v3138, %v3425
        %v3450 = vmul.f32 %v3187, %v3426
        %v3451 = vmul.f32 %v3236, %v3427
        %v3452 = vmul.f32 %v3285, %v3428
        %v3453 = vmul.f32 %v3334, %v3429
        %v3454 = vmul.f32 %v3383, %v3430
        %v3455 = vmul.f32 %v3043, %v3423
        %v3456 = vmul.f32 %v3092, %v3424
        %v3457 = vmul.f32 %v3141, %v3425
        %v3458 = vmul.f32 %v3190, %v3426
        %v3459 = vmul.f32 %v3239, %v3427
        %v3460 = vmul.f32 %v3288, %v3428
        %v3461 = vmul.f32 %v3337, %v3429
        %v3462 = vmul.f32 %v3386, %v3430
        %v3463 = vmul.f32 %v3045, %v3423
        %v3464 = vmul.f32 %v3094, %v3424
        %v3465 = vmul.f32 %v3143, %v3425
        %v3466 = vmul.f32 %v3192, %v3426
        %v3467 = vmul.f32 %v3241, %v3427
        %v3468 = vmul.f32 %v3290, %v3428
        %v3469 = vmul.f32 %v3339, %v3429
        %v3470 = vmul.f32 %v3388, %v3430
        %v3471 = vmul.f32 %v3048, %v3423
        %v3472 = vmul.f32 %v3097, %v3424
        %v3473 = vmul.f32 %v3146, %v3425
        %v3474 = vmul.f32 %v3195, %v3426
        %v3475 = vmul.f32 %v3244, %v3427
        %v3476 = vmul.f32 %v3293, %v3428
        %v3477 = vmul.f32 %v3342, %v3429
        %v3478 = vmul.f32 %v3391, %v3430
        %v3479 = vmul.f32 %v3050, %v3423
        %v3480 = vmul.f32 %v3099, %v3424
        %v3481 = vmul.f32 %v3148, %v3425
        %v3482 = vmul.f32 %v3197, %v3426
        %v3483 = vmul.f32 %v3246, %v3427
        %v3484 = vmul.f32 %v3295, %v3428
        %v3485 = vmul.f32 %v3344, %v3429
        %v3486 = vmul.f32 %v3393, %v3430
        %v3487 = vmul.f32 %v3053, %v3423
        %v3488 = vmul.f32 %v3102, %v3424
        %v3489 = vmul.f32 %v3151, %v3425
        %v3490 = vmul.f32 %v3200, %v3426
        %v3491 = vmul.f32 %v3249, %v3427
        %v3492 = vmul.f32 %v3298, %v3428
        %v3493 = vmul.f32 %v3347, %v3429
        %v3494 = vmul.f32 %v3396, %v3430
        %v3495 = vmul.f32 %v3055, %v3423
        %v3496 = vmul.f32 %v3104, %v3424
        %v3497 = vmul.f32 %v3153, %v3425
        %v3498 = vmul.f32 %v3202, %v3426
        %v3499 = vmul.f32 %v3251, %v3427
        %v3500 = vmul.f32 %v3300, %v3428
        %v3501 = vmul.f32 %v3349, %v3429
        %v3502 = vmul.f32 %v3398, %v3430
        %v3503 = vmul.f32 %v3058, %v3423
        %v3504 = vmul.f32 %v3107, %v3424
        %v3505 = vmul.f32 %v3156, %v3425
        %v3506 = vmul.f32 %v3205, %v3426
        %v3507 = vmul.f32 %v3254, %v3427
        %v3508 = vmul.f32 %v3303, %v3428
        %v3509 = vmul.f32 %v3352, %v3429
        %v3510 = vmul.f32 %v3401, %v3430
        %v3511 = vmul.f32 %v3060, %v3423
        %v3512 = vmul.f32 %v3109, %v3424
        %v3513 = vmul.f32 %v3158, %v3425
        %v3514 = vmul.f32 %v3207, %v3426
        %v3515 = vmul.f32 %v3256, %v3427
        %v3516 = vmul.f32 %v3305, %v3428
        %v3517 = vmul.f32 %v3354, %v3429
        %v3518 = vmul.f32 %v3403, %v3430
        %v3519 = vmul.f32 %v3063, %v3423
        %v3520 = vmul.f32 %v3112, %v3424
        %v3521 = vmul.f32 %v3161, %v3425
        %v3522 = vmul.f32 %v3210, %v3426
        %v3523 = vmul.f32 %v3259, %v3427
        %v3524 = vmul.f32 %v3308, %v3428
        %v3525 = vmul.f32 %v3357, %v3429
        %v3526 = vmul.f32 %v3406, %v3430
        %v3527 = vmul.f32 %v3065, %v3423
        %v3528 = vmul.f32 %v3114, %v3424
        %v3529 = vmul.f32 %v3163, %v3425
        %v3530 = vmul.f32 %v3212, %v3426
        %v3531 = vmul.f32 %v3261, %v3427
        %v3532 = vmul.f32 %v3310, %v3428
        %v3533 = vmul.f32 %v3359, %v3429
        %v3534 = vmul.f32 %v3408, %v3430
        %v3535 = vmul.f32 %v3068, %v3423
        %v3536 = vmul.f32 %v3117, %v3424
        %v3537 = vmul.f32 %v3166, %v3425
        %v3538 = vmul.f32 %v3215, %v3426
        %v3539 = vmul.f32 %v3264, %v3427
        %v3540 = vmul.f32 %v3313, %v3428
        %v3541 = vmul.f32 %v3362, %v3429
        %v3542 = vmul.f32 %v3411, %v3430
        %v3543 = vmul.f32 %v3070, %v3423
        %v3544 = vmul.f32 %v3119, %v3424
        %v3545 = vmul.f32 %v3168, %v3425
        %v3546 = vmul.f32 %v3217, %v3426
        %v3547 = vmul.f32 %v3266, %v3427
        %v3548 = vmul.f32 %v3315, %v3428
        %v3549 = vmul.f32 %v3364, %v3429
        %v3550 = vmul.f32 %v3413, %v3430
        %v3551 = vmul.f32 %v3073, %v3423
        %v3552 = vmul.f32 %v3122, %v3424
        %v3553 = vmul.f32 %v3171, %v3425
        %v3554 = vmul.f32 %v3220, %v3426
        %v3555 = vmul.f32 %v3269, %v3427
        %v3556 = vmul.f32 %v3318, %v3428
        %v3557 = vmul.f32 %v3367, %v3429
        %v3558 = vmul.f32 %v3416, %v3430
        %v3559 = vmul.f32 %v3075, %v3423
        %v3560 = vmul.f32 %v3124, %v3424
        %v3561 = vmul.f32 %v3173, %v3425
        %v3562 = vmul.f32 %v3222, %v3426
        %v3563 = vmul.f32 %v3271, %v3427
        %v3564 = vmul.f32 %v3320, %v3428
        %v3565 = vmul.f32 %v3369, %v3429
        %v3566 = vmul.f32 %v3418, %v3430
        %s3567 = scalar_lea.vmem %s9, 8
        %v3568 = vld [vmem:[%s3567] sm:$0xff]
        %v3570 = vperm.slane %v3568, 0
        %v3571 = vperm.slane %v3568, 1
        %v3572 = vperm.slane %v3568, 2
        %v3573 = vperm.slane %v3568, 3
        %v3574 = vperm.slane %v3568, 4
        %v3575 = vperm.slane %v3568, 5
        %v3576 = vperm.slane %v3568, 6
        %v3577 = vperm.slane %v3568, 7
        %v3586 = vadd.f32 %v3439, %v3570
        %v3587 = vadd.f32 %v3440, %v3571
        %v3588 = vadd.f32 %v3441, %v3572
        %v3589 = vadd.f32 %v3442, %v3573
        %v3590 = vadd.f32 %v3443, %v3574
        %v3591 = vadd.f32 %v3444, %v3575
        %v3592 = vadd.f32 %v3445, %v3576
        %v3593 = vadd.f32 %v3446, %v3577
        %v3594 = vadd.f32 %v3447, %v3570
        %v3595 = vadd.f32 %v3448, %v3571
        %v3596 = vadd.f32 %v3449, %v3572
        %v3597 = vadd.f32 %v3450, %v3573
        %v3598 = vadd.f32 %v3451, %v3574
        %v3599 = vadd.f32 %v3452, %v3575
        %v3600 = vadd.f32 %v3453, %v3576
        %v3601 = vadd.f32 %v3454, %v3577
        %v3602 = vadd.f32 %v3455, %v3570
        %v3603 = vadd.f32 %v3456, %v3571
        %v3604 = vadd.f32 %v3457, %v3572
        %v3605 = vadd.f32 %v3458, %v3573
        %v3606 = vadd.f32 %v3459, %v3574
        %v3607 = vadd.f32 %v3460, %v3575
        %v3608 = vadd.f32 %v3461, %v3576
        %v3609 = vadd.f32 %v3462, %v3577
        %v3610 = vadd.f32 %v3463, %v3570
        %v3611 = vadd.f32 %v3464, %v3571
        %v3612 = vadd.f32 %v3465, %v3572
        %v3613 = vadd.f32 %v3466, %v3573
        %v3614 = vadd.f32 %v3467, %v3574
        %v3615 = vadd.f32 %v3468, %v3575
        %v3616 = vadd.f32 %v3469, %v3576
        %v3617 = vadd.f32 %v3470, %v3577
        %v3618 = vadd.f32 %v3471, %v3570
        %v3619 = vadd.f32 %v3472, %v3571
        %v3620 = vadd.f32 %v3473, %v3572
        %v3621 = vadd.f32 %v3474, %v3573
        %v3622 = vadd.f32 %v3475, %v3574
        %v3623 = vadd.f32 %v3476, %v3575
        %v3624 = vadd.f32 %v3477, %v3576
        %v3625 = vadd.f32 %v3478, %v3577
        %v3626 = vadd.f32 %v3479, %v3570
        %v3627 = vadd.f32 %v3480, %v3571
        %v3628 = vadd.f32 %v3481, %v3572
        %v3629 = vadd.f32 %v3482, %v3573
        %v3630 = vadd.f32 %v3483, %v3574
        %v3631 = vadd.f32 %v3484, %v3575
        %v3632 = vadd.f32 %v3485, %v3576
        %v3633 = vadd.f32 %v3486, %v3577
        %v3634 = vadd.f32 %v3487, %v3570
        %v3635 = vadd.f32 %v3488, %v3571
        %v3636 = vadd.f32 %v3489, %v3572
        %v3637 = vadd.f32 %v3490, %v3573
        %v3638 = vadd.f32 %v3491, %v3574
        %v3639 = vadd.f32 %v3492, %v3575
        %v3640 = vadd.f32 %v3493, %v3576
        %v3641 = vadd.f32 %v3494, %v3577
        %v3642 = vadd.f32 %v3495, %v3570
        %v3643 = vadd.f32 %v3496, %v3571
        %v3644 = vadd.f32 %v3497, %v3572
        %v3645 = vadd.f32 %v3498, %v3573
        %v3646 = vadd.f32 %v3499, %v3574
        %v3647 = vadd.f32 %v3500, %v3575
        %v3648 = vadd.f32 %v3501, %v3576
        %v3649 = vadd.f32 %v3502, %v3577
        %v3650 = vadd.f32 %v3503, %v3570
        %v3651 = vadd.f32 %v3504, %v3571
        %v3652 = vadd.f32 %v3505, %v3572
        %v3653 = vadd.f32 %v3506, %v3573
        %v3654 = vadd.f32 %v3507, %v3574
        %v3655 = vadd.f32 %v3508, %v3575
        %v3656 = vadd.f32 %v3509, %v3576
        %v3657 = vadd.f32 %v3510, %v3577
        %v3658 = vadd.f32 %v3511, %v3570
        %v3659 = vadd.f32 %v3512, %v3571
        %v3660 = vadd.f32 %v3513, %v3572
        %v3661 = vadd.f32 %v3514, %v3573
        %v3662 = vadd.f32 %v3515, %v3574
        %v3663 = vadd.f32 %v3516, %v3575
        %v3664 = vadd.f32 %v3517, %v3576
        %v3665 = vadd.f32 %v3518, %v3577
        %v3666 = vadd.f32 %v3519, %v3570
        %v3667 = vadd.f32 %v3520, %v3571
        %v3668 = vadd.f32 %v3521, %v3572
        %v3669 = vadd.f32 %v3522, %v3573
        %v3670 = vadd.f32 %v3523, %v3574
        %v3671 = vadd.f32 %v3524, %v3575
        %v3672 = vadd.f32 %v3525, %v3576
        %v3673 = vadd.f32 %v3526, %v3577
        %v3674 = vadd.f32 %v3527, %v3570
        %v3675 = vadd.f32 %v3528, %v3571
        %v3676 = vadd.f32 %v3529, %v3572
        %v3677 = vadd.f32 %v3530, %v3573
        %v3678 = vadd.f32 %v3531, %v3574
        %v3679 = vadd.f32 %v3532, %v3575
        %v3680 = vadd.f32 %v3533, %v3576
        %v3681 = vadd.f32 %v3534, %v3577
        %v3682 = vadd.f32 %v3535, %v3570
        %v3683 = vadd.f32 %v3536, %v3571
        %v3684 = vadd.f32 %v3537, %v3572
        %v3685 = vadd.f32 %v3538, %v3573
        %v3686 = vadd.f32 %v3539, %v3574
        %v3687 = vadd.f32 %v3540, %v3575
        %v3688 = vadd.f32 %v3541, %v3576
        %v3689 = vadd.f32 %v3542, %v3577
        %v3690 = vadd.f32 %v3543, %v3570
        %v3691 = vadd.f32 %v3544, %v3571
        %v3692 = vadd.f32 %v3545, %v3572
        %v3693 = vadd.f32 %v3546, %v3573
        %v3694 = vadd.f32 %v3547, %v3574
        %v3695 = vadd.f32 %v3548, %v3575
        %v3696 = vadd.f32 %v3549, %v3576
        %v3697 = vadd.f32 %v3550, %v3577
        %v3698 = vadd.f32 %v3551, %v3570
        %v3699 = vadd.f32 %v3552, %v3571
        %v3700 = vadd.f32 %v3553, %v3572
        %v3701 = vadd.f32 %v3554, %v3573
        %v3702 = vadd.f32 %v3555, %v3574
        %v3703 = vadd.f32 %v3556, %v3575
        %v3704 = vadd.f32 %v3557, %v3576
        %v3705 = vadd.f32 %v3558, %v3577
        %v3706 = vadd.f32 %v3559, %v3570
        %v3707 = vadd.f32 %v3560, %v3571
        %v3708 = vadd.f32 %v3561, %v3572
        %v3709 = vadd.f32 %v3562, %v3573
        %v3710 = vadd.f32 %v3563, %v3574
        %v3711 = vadd.f32 %v3564, %v3575
        %v3712 = vadd.f32 %v3565, %v3576
        %v3713 = vadd.f32 %v3566, %v3577
        %v3714 = vpack.c.bf16 %v3594, %v3586
        %v3715 = vpack.c.bf16 %v3595, %v3587
        %v3716 = vpack.c.bf16 %v3596, %v3588
        %v3717 = vpack.c.bf16 %v3597, %v3589
        %v3718 = vpack.c.bf16 %v3598, %v3590
        %v3719 = vpack.c.bf16 %v3599, %v3591
        %v3720 = vpack.c.bf16 %v3600, %v3592
        %v3721 = vpack.c.bf16 %v3601, %v3593
        %v3722 = vpack.c.bf16 %v3610, %v3602
        %v3723 = vpack.c.bf16 %v3611, %v3603
        %v3724 = vpack.c.bf16 %v3612, %v3604
        %v3725 = vpack.c.bf16 %v3613, %v3605
        %v3726 = vpack.c.bf16 %v3614, %v3606
        %v3727 = vpack.c.bf16 %v3615, %v3607
        %v3728 = vpack.c.bf16 %v3616, %v3608
        %v3729 = vpack.c.bf16 %v3617, %v3609
        %v3730 = vpack.c.bf16 %v3626, %v3618
        %v3731 = vpack.c.bf16 %v3627, %v3619
        %v3732 = vpack.c.bf16 %v3628, %v3620
        %v3733 = vpack.c.bf16 %v3629, %v3621
        %v3734 = vpack.c.bf16 %v3630, %v3622
        %v3735 = vpack.c.bf16 %v3631, %v3623
        %v3736 = vpack.c.bf16 %v3632, %v3624
        %v3737 = vpack.c.bf16 %v3633, %v3625
        %v3738 = vpack.c.bf16 %v3642, %v3634
        %v3739 = vpack.c.bf16 %v3643, %v3635
        %v3740 = vpack.c.bf16 %v3644, %v3636
        %v3741 = vpack.c.bf16 %v3645, %v3637
        %v3742 = vpack.c.bf16 %v3646, %v3638
        %v3743 = vpack.c.bf16 %v3647, %v3639
        %v3744 = vpack.c.bf16 %v3648, %v3640
        %v3745 = vpack.c.bf16 %v3649, %v3641
        %v3746 = vpack.c.bf16 %v3658, %v3650
        %v3747 = vpack.c.bf16 %v3659, %v3651
        %v3748 = vpack.c.bf16 %v3660, %v3652
        %v3749 = vpack.c.bf16 %v3661, %v3653
        %v3750 = vpack.c.bf16 %v3662, %v3654
        %v3751 = vpack.c.bf16 %v3663, %v3655
        %v3752 = vpack.c.bf16 %v3664, %v3656
        %v3753 = vpack.c.bf16 %v3665, %v3657
        %v3754 = vpack.c.bf16 %v3674, %v3666
        %v3755 = vpack.c.bf16 %v3675, %v3667
        %v3756 = vpack.c.bf16 %v3676, %v3668
        %v3757 = vpack.c.bf16 %v3677, %v3669
        %v3758 = vpack.c.bf16 %v3678, %v3670
        %v3759 = vpack.c.bf16 %v3679, %v3671
        %v3760 = vpack.c.bf16 %v3680, %v3672
        %v3761 = vpack.c.bf16 %v3681, %v3673
        %v3762 = vpack.c.bf16 %v3690, %v3682
        %v3763 = vpack.c.bf16 %v3691, %v3683
        %v3764 = vpack.c.bf16 %v3692, %v3684
        %v3765 = vpack.c.bf16 %v3693, %v3685
        %v3766 = vpack.c.bf16 %v3694, %v3686
        %v3767 = vpack.c.bf16 %v3695, %v3687
        %v3768 = vpack.c.bf16 %v3696, %v3688
        %v3769 = vpack.c.bf16 %v3697, %v3689
        %v3770 = vpack.c.bf16 %v3706, %v3698
        %v3771 = vpack.c.bf16 %v3707, %v3699
        %v3772 = vpack.c.bf16 %v3708, %v3700
        %v3773 = vpack.c.bf16 %v3709, %v3701
        %v3774 = vpack.c.bf16 %v3710, %v3702
        %v3775 = vpack.c.bf16 %v3711, %v3703
        %v3776 = vpack.c.bf16 %v3712, %v3704
        %v3777 = vpack.c.bf16 %v3713, %v3705
        %s3778 = scalar_lea.vmem %s10, 512
        %v3779 = vld [vmem:[%s3778] sm:$0xf]
        %v3780 = vld [vmem:[%s3778 + $0x4] sm:$0xf]
        %v3781 = vld [vmem:[%s3778 + $0x8] sm:$0xf]
        %v3782 = vld [vmem:[%s3778 + $0xc] sm:$0xf]
        %v3783 = vld [vmem:[%s3778 + $0x10] sm:$0xf]
        %v3784 = vld [vmem:[%s3778 + $0x14] sm:$0xf]
        %v3785 = vld [vmem:[%s3778 + $0x18] sm:$0xf]
        %v3786 = vld [vmem:[%s3778 + $0x1c] sm:$0xf]
        %v3787 = vld [vmem:[%s3778 + $0x20] sm:$0xf]
        %v3788 = vld [vmem:[%s3778 + $0x24] sm:$0xf]
        %v3789 = vld [vmem:[%s3778 + $0x28] sm:$0xf]
        %v3790 = vld [vmem:[%s3778 + $0x2c] sm:$0xf]
        %v3791 = vld [vmem:[%s3778 + $0x30] sm:$0xf]
        %v3792 = vld [vmem:[%s3778 + $0x34] sm:$0xf]
        %v3793 = vld [vmem:[%s3778 + $0x38] sm:$0xf]
        %v3794 = vld [vmem:[%s3778 + $0x3c] sm:$0xf]
        %v3795 = vld [vmem:[%s3778 + $0x40] sm:$0xf]
        %v3796 = vld [vmem:[%s3778 + $0x44] sm:$0xf]
        %v3797 = vld [vmem:[%s3778 + $0x48] sm:$0xf]
        %v3798 = vld [vmem:[%s3778 + $0x4c] sm:$0xf]
        %v3799 = vld [vmem:[%s3778 + $0x50] sm:$0xf]
        %v3800 = vld [vmem:[%s3778 + $0x54] sm:$0xf]
        %v3801 = vld [vmem:[%s3778 + $0x58] sm:$0xf]
        %v3802 = vld [vmem:[%s3778 + $0x5c] sm:$0xf]
        %v3803 = vld [vmem:[%s3778 + $0x60] sm:$0xf]
        %v3804 = vld [vmem:[%s3778 + $0x64] sm:$0xf]
        %v3805 = vld [vmem:[%s3778 + $0x68] sm:$0xf]
        %v3806 = vld [vmem:[%s3778 + $0x6c] sm:$0xf]
        %v3807 = vld [vmem:[%s3778 + $0x70] sm:$0xf]
        %v3808 = vld [vmem:[%s3778 + $0x74] sm:$0xf]
        %v3809 = vld [vmem:[%s3778 + $0x78] sm:$0xf]
        %v3810 = vld [vmem:[%s3778 + $0x7c] sm:$0xf]
        %v3811 = vld [vmem:[%s3778 + $0x80] sm:$0xf]
        %v3812 = vld [vmem:[%s3778 + $0x84] sm:$0xf]
        %v3813 = vld [vmem:[%s3778 + $0x88] sm:$0xf]
        %v3814 = vld [vmem:[%s3778 + $0x8c] sm:$0xf]
        %v3815 = vld [vmem:[%s3778 + $0x90] sm:$0xf]
        %v3816 = vld [vmem:[%s3778 + $0x94] sm:$0xf]
        %v3817 = vld [vmem:[%s3778 + $0x98] sm:$0xf]
        %v3818 = vld [vmem:[%s3778 + $0x9c] sm:$0xf]
        %v3819 = vld [vmem:[%s3778 + $0xa0] sm:$0xf]
        %v3820 = vld [vmem:[%s3778 + $0xa4] sm:$0xf]
        %v3821 = vld [vmem:[%s3778 + $0xa8] sm:$0xf]
        %v3822 = vld [vmem:[%s3778 + $0xac] sm:$0xf]
        %v3823 = vld [vmem:[%s3778 + $0xb0] sm:$0xf]
        %v3824 = vld [vmem:[%s3778 + $0xb4] sm:$0xf]
        %v3825 = vld [vmem:[%s3778 + $0xb8] sm:$0xf]
        %v3826 = vld [vmem:[%s3778 + $0xbc] sm:$0xf]
        %v3827 = vld [vmem:[%s3778 + $0xc0] sm:$0xf]
        %v3828 = vld [vmem:[%s3778 + $0xc4] sm:$0xf]
        %v3829 = vld [vmem:[%s3778 + $0xc8] sm:$0xf]
        %v3830 = vld [vmem:[%s3778 + $0xcc] sm:$0xf]
        %v3831 = vld [vmem:[%s3778 + $0xd0] sm:$0xf]
        %v3832 = vld [vmem:[%s3778 + $0xd4] sm:$0xf]
        %v3833 = vld [vmem:[%s3778 + $0xd8] sm:$0xf]
        %v3834 = vld [vmem:[%s3778 + $0xdc] sm:$0xf]
        %v3835 = vld [vmem:[%s3778 + $0xe0] sm:$0xf]
        %v3836 = vld [vmem:[%s3778 + $0xe4] sm:$0xf]
        %v3837 = vld [vmem:[%s3778 + $0xe8] sm:$0xf]
        %v3838 = vld [vmem:[%s3778 + $0xec] sm:$0xf]
        %v3839 = vld [vmem:[%s3778 + $0xf0] sm:$0xf]
        %v3840 = vld [vmem:[%s3778 + $0xf4] sm:$0xf]
        %v3841 = vld [vmem:[%s3778 + $0xf8] sm:$0xf]
        %v3842 = vld [vmem:[%s3778 + $0xfc] sm:$0xf]
        %v3843 = vld [vmem:[%s3778 + $0x100] sm:$0xf]
        %v3844 = vld [vmem:[%s3778 + $0x104] sm:$0xf]
        %v3845 = vld [vmem:[%s3778 + $0x108] sm:$0xf]
        %v3846 = vld [vmem:[%s3778 + $0x10c] sm:$0xf]
        %v3847 = vld [vmem:[%s3778 + $0x110] sm:$0xf]
        %v3848 = vld [vmem:[%s3778 + $0x114] sm:$0xf]
        %v3849 = vld [vmem:[%s3778 + $0x118] sm:$0xf]
        %v3850 = vld [vmem:[%s3778 + $0x11c] sm:$0xf]
        %v3851 = vld [vmem:[%s3778 + $0x120] sm:$0xf]
        %v3852 = vld [vmem:[%s3778 + $0x124] sm:$0xf]
        %v3853 = vld [vmem:[%s3778 + $0x128] sm:$0xf]
        %v3854 = vld [vmem:[%s3778 + $0x12c] sm:$0xf]
        %v3855 = vld [vmem:[%s3778 + $0x130] sm:$0xf]
        %v3856 = vld [vmem:[%s3778 + $0x134] sm:$0xf]
        %v3857 = vld [vmem:[%s3778 + $0x138] sm:$0xf]
        %v3858 = vld [vmem:[%s3778 + $0x13c] sm:$0xf]
        %v3859 = vld [vmem:[%s3778 + $0x140] sm:$0xf]
        %v3860 = vld [vmem:[%s3778 + $0x144] sm:$0xf]
        %v3861 = vld [vmem:[%s3778 + $0x148] sm:$0xf]
        %v3862 = vld [vmem:[%s3778 + $0x14c] sm:$0xf]
        %v3863 = vld [vmem:[%s3778 + $0x150] sm:$0xf]
        %v3864 = vld [vmem:[%s3778 + $0x154] sm:$0xf]
        %v3865 = vld [vmem:[%s3778 + $0x158] sm:$0xf]
        %v3866 = vld [vmem:[%s3778 + $0x15c] sm:$0xf]
        %v3867 = vld [vmem:[%s3778 + $0x160] sm:$0xf]
        %v3868 = vld [vmem:[%s3778 + $0x164] sm:$0xf]
        %v3869 = vld [vmem:[%s3778 + $0x168] sm:$0xf]
        %v3870 = vld [vmem:[%s3778 + $0x16c] sm:$0xf]
        %v3871 = vld [vmem:[%s3778 + $0x170] sm:$0xf]
        %v3872 = vld [vmem:[%s3778 + $0x174] sm:$0xf]
        %v3873 = vld [vmem:[%s3778 + $0x178] sm:$0xf]
        %v3874 = vld [vmem:[%s3778 + $0x17c] sm:$0xf]
        %v3875 = vld [vmem:[%s3778 + $0x180] sm:$0xf]
        %v3876 = vld [vmem:[%s3778 + $0x184] sm:$0xf]
        %v3877 = vld [vmem:[%s3778 + $0x188] sm:$0xf]
        %v3878 = vld [vmem:[%s3778 + $0x18c] sm:$0xf]
        %v3879 = vld [vmem:[%s3778 + $0x190] sm:$0xf]
        %v3880 = vld [vmem:[%s3778 + $0x194] sm:$0xf]
        %v3881 = vld [vmem:[%s3778 + $0x198] sm:$0xf]
        %v3882 = vld [vmem:[%s3778 + $0x19c] sm:$0xf]
        %v3883 = vld [vmem:[%s3778 + $0x1a0] sm:$0xf]
        %v3884 = vld [vmem:[%s3778 + $0x1a4] sm:$0xf]
        %v3885 = vld [vmem:[%s3778 + $0x1a8] sm:$0xf]
        %v3886 = vld [vmem:[%s3778 + $0x1ac] sm:$0xf]
        %v3887 = vld [vmem:[%s3778 + $0x1b0] sm:$0xf]
        %v3888 = vld [vmem:[%s3778 + $0x1b4] sm:$0xf]
        %v3889 = vld [vmem:[%s3778 + $0x1b8] sm:$0xf]
        %v3890 = vld [vmem:[%s3778 + $0x1bc] sm:$0xf]
        %v3891 = vld [vmem:[%s3778 + $0x1c0] sm:$0xf]
        %v3892 = vld [vmem:[%s3778 + $0x1c4] sm:$0xf]
        %v3893 = vld [vmem:[%s3778 + $0x1c8] sm:$0xf]
        %v3894 = vld [vmem:[%s3778 + $0x1cc] sm:$0xf]
        %v3895 = vld [vmem:[%s3778 + $0x1d0] sm:$0xf]
        %v3896 = vld [vmem:[%s3778 + $0x1d4] sm:$0xf]
        %v3897 = vld [vmem:[%s3778 + $0x1d8] sm:$0xf]
        %v3898 = vld [vmem:[%s3778 + $0x1dc] sm:$0xf]
        %v3899 = vld [vmem:[%s3778 + $0x1e0] sm:$0xf]
        %v3900 = vld [vmem:[%s3778 + $0x1e4] sm:$0xf]
        %v3901 = vld [vmem:[%s3778 + $0x1e8] sm:$0xf]
        %v3902 = vld [vmem:[%s3778 + $0x1ec] sm:$0xf]
        %v3903 = vld [vmem:[%s3778 + $0x1f0] sm:$0xf]
        %v3904 = vld [vmem:[%s3778 + $0x1f4] sm:$0xf]
        %v3905 = vld [vmem:[%s3778 + $0x1f8] sm:$0xf]
        %v3906 = vld [vmem:[%s3778 + $0x1fc] sm:$0xf]
        %v4035 = vunpack.c.l.b16 %v3779
        %v4036 = vunpack.c.l.b16 %v3780
        %v4037 = vunpack.c.l.b16 %v3781
        %v4038 = vunpack.c.l.b16 %v3782
        %v4039 = vunpack.c.l.b16 %v3783
        %v4040 = vunpack.c.l.b16 %v3784
        %v4041 = vunpack.c.l.b16 %v3785
        %v4042 = vunpack.c.l.b16 %v3786
        %v4043 = vunpack.c.l.b16 %v3787
        %v4044 = vunpack.c.l.b16 %v3788
        %v4045 = vunpack.c.l.b16 %v3789
        %v4046 = vunpack.c.l.b16 %v3790
        %v4047 = vunpack.c.l.b16 %v3791
        %v4048 = vunpack.c.l.b16 %v3792
        %v4049 = vunpack.c.l.b16 %v3793
        %v4050 = vunpack.c.l.b16 %v3794
        %v4051 = vunpack.c.l.b16 %v3795
        %v4052 = vunpack.c.l.b16 %v3796
        %v4053 = vunpack.c.l.b16 %v3797
        %v4054 = vunpack.c.l.b16 %v3798
        %v4055 = vunpack.c.l.b16 %v3799
        %v4056 = vunpack.c.l.b16 %v3800
        %v4057 = vunpack.c.l.b16 %v3801
        %v4058 = vunpack.c.l.b16 %v3802
        %v4059 = vunpack.c.l.b16 %v3803
        %v4060 = vunpack.c.l.b16 %v3804
        %v4061 = vunpack.c.l.b16 %v3805
        %v4062 = vunpack.c.l.b16 %v3806
        %v4063 = vunpack.c.l.b16 %v3807
        %v4064 = vunpack.c.l.b16 %v3808
        %v4065 = vunpack.c.l.b16 %v3809
        %v4066 = vunpack.c.l.b16 %v3810
        %v4067 = vunpack.c.l.b16 %v3811
        %v4068 = vunpack.c.l.b16 %v3812
        %v4069 = vunpack.c.l.b16 %v3813
        %v4070 = vunpack.c.l.b16 %v3814
        %v4071 = vunpack.c.l.b16 %v3815
        %v4072 = vunpack.c.l.b16 %v3816
        %v4073 = vunpack.c.l.b16 %v3817
        %v4074 = vunpack.c.l.b16 %v3818
        %v4075 = vunpack.c.l.b16 %v3819
        %v4076 = vunpack.c.l.b16 %v3820
        %v4077 = vunpack.c.l.b16 %v3821
        %v4078 = vunpack.c.l.b16 %v3822
        %v4079 = vunpack.c.l.b16 %v3823
        %v4080 = vunpack.c.l.b16 %v3824
        %v4081 = vunpack.c.l.b16 %v3825
        %v4082 = vunpack.c.l.b16 %v3826
        %v4083 = vunpack.c.l.b16 %v3827
        %v4084 = vunpack.c.l.b16 %v3828
        %v4085 = vunpack.c.l.b16 %v3829
        %v4086 = vunpack.c.l.b16 %v3830
        %v4087 = vunpack.c.l.b16 %v3831
        %v4088 = vunpack.c.l.b16 %v3832
        %v4089 = vunpack.c.l.b16 %v3833
        %v4090 = vunpack.c.l.b16 %v3834
        %v4091 = vunpack.c.l.b16 %v3835
        %v4092 = vunpack.c.l.b16 %v3836
        %v4093 = vunpack.c.l.b16 %v3837
        %v4094 = vunpack.c.l.b16 %v3838
        %v4095 = vunpack.c.l.b16 %v3839
        %v4096 = vunpack.c.l.b16 %v3840
        %v4097 = vunpack.c.l.b16 %v3841
        %v4098 = vunpack.c.l.b16 %v3842
        %v4099 = vunpack.c.l.b16 %v3843
        %v4100 = vunpack.c.l.b16 %v3844
        %v4101 = vunpack.c.l.b16 %v3845
        %v4102 = vunpack.c.l.b16 %v3846
        %v4103 = vunpack.c.l.b16 %v3847
        %v4104 = vunpack.c.l.b16 %v3848
        %v4105 = vunpack.c.l.b16 %v3849
        %v4106 = vunpack.c.l.b16 %v3850
        %v4107 = vunpack.c.l.b16 %v3851
        %v4108 = vunpack.c.l.b16 %v3852
        %v4109 = vunpack.c.l.b16 %v3853
        %v4110 = vunpack.c.l.b16 %v3854
        %v4111 = vunpack.c.l.b16 %v3855
        %v4112 = vunpack.c.l.b16 %v3856
        %v4113 = vunpack.c.l.b16 %v3857
        %v4114 = vunpack.c.l.b16 %v3858
        %v4115 = vunpack.c.l.b16 %v3859
        %v4116 = vunpack.c.l.b16 %v3860
        %v4117 = vunpack.c.l.b16 %v3861
        %v4118 = vunpack.c.l.b16 %v3862
        %v4119 = vunpack.c.l.b16 %v3863
        %v4120 = vunpack.c.l.b16 %v3864
        %v4121 = vunpack.c.l.b16 %v3865
        %v4122 = vunpack.c.l.b16 %v3866
        %v4123 = vunpack.c.l.b16 %v3867
        %v4124 = vunpack.c.l.b16 %v3868
        %v4125 = vunpack.c.l.b16 %v3869
        %v4126 = vunpack.c.l.b16 %v3870
        %v4127 = vunpack.c.l.b16 %v3871
        %v4128 = vunpack.c.l.b16 %v3872
        %v4129 = vunpack.c.l.b16 %v3873
        %v4130 = vunpack.c.l.b16 %v3874
        %v4131 = vunpack.c.l.b16 %v3875
        %v4132 = vunpack.c.l.b16 %v3876
        %v4133 = vunpack.c.l.b16 %v3877
        %v4134 = vunpack.c.l.b16 %v3878
        %v4135 = vunpack.c.l.b16 %v3879
        %v4136 = vunpack.c.l.b16 %v3880
        %v4137 = vunpack.c.l.b16 %v3881
        %v4138 = vunpack.c.l.b16 %v3882
        %v4139 = vunpack.c.l.b16 %v3883
        %v4140 = vunpack.c.l.b16 %v3884
        %v4141 = vunpack.c.l.b16 %v3885
        %v4142 = vunpack.c.l.b16 %v3886
        %v4143 = vunpack.c.l.b16 %v3887
        %v4144 = vunpack.c.l.b16 %v3888
        %v4145 = vunpack.c.l.b16 %v3889
        %v4146 = vunpack.c.l.b16 %v3890
        %v4147 = vunpack.c.l.b16 %v3891
        %v4148 = vunpack.c.l.b16 %v3892
        %v4149 = vunpack.c.l.b16 %v3893
        %v4150 = vunpack.c.l.b16 %v3894
        %v4151 = vunpack.c.l.b16 %v3895
        %v4152 = vunpack.c.l.b16 %v3896
        %v4153 = vunpack.c.l.b16 %v3897
        %v4154 = vunpack.c.l.b16 %v3898
        %v4155 = vunpack.c.l.b16 %v3899
        %v4156 = vunpack.c.l.b16 %v3900
        %v4157 = vunpack.c.l.b16 %v3901
        %v4158 = vunpack.c.l.b16 %v3902
        %v4159 = vunpack.c.l.b16 %v3903
        %v4160 = vunpack.c.l.b16 %v3904
        %v4161 = vunpack.c.l.b16 %v3905
        %v4162 = vunpack.c.l.b16 %v3906
        %v4163 = vpack.c.b16 %v4036, %v4035
        %v4164 = vpack.c.b16 %v4038, %v4037
        %v4165 = vpack.c.b16 %v4040, %v4039
        %v4166 = vpack.c.b16 %v4042, %v4041
        %v4167 = vpack.c.b16 %v4044, %v4043
        %v4168 = vpack.c.b16 %v4046, %v4045
        %v4169 = vpack.c.b16 %v4048, %v4047
        %v4170 = vpack.c.b16 %v4050, %v4049
        %v4171 = vpack.c.b16 %v4052, %v4051
        %v4172 = vpack.c.b16 %v4054, %v4053
        %v4173 = vpack.c.b16 %v4056, %v4055
        %v4174 = vpack.c.b16 %v4058, %v4057
        %v4175 = vpack.c.b16 %v4060, %v4059
        %v4176 = vpack.c.b16 %v4062, %v4061
        %v4177 = vpack.c.b16 %v4064, %v4063
        %v4178 = vpack.c.b16 %v4066, %v4065
        %v4179 = vpack.c.b16 %v4068, %v4067
        %v4180 = vpack.c.b16 %v4070, %v4069
        %v4181 = vpack.c.b16 %v4072, %v4071
        %v4182 = vpack.c.b16 %v4074, %v4073
        %v4183 = vpack.c.b16 %v4076, %v4075
        %v4184 = vpack.c.b16 %v4078, %v4077
        %v4185 = vpack.c.b16 %v4080, %v4079
        %v4186 = vpack.c.b16 %v4082, %v4081
        %v4187 = vpack.c.b16 %v4084, %v4083
        %v4188 = vpack.c.b16 %v4086, %v4085
        %v4189 = vpack.c.b16 %v4088, %v4087
        %v4190 = vpack.c.b16 %v4090, %v4089
        %v4191 = vpack.c.b16 %v4092, %v4091
        %v4192 = vpack.c.b16 %v4094, %v4093
        %v4193 = vpack.c.b16 %v4096, %v4095
        %v4194 = vpack.c.b16 %v4098, %v4097
        %v4195 = vpack.c.b16 %v4100, %v4099
        %v4196 = vpack.c.b16 %v4102, %v4101
        %v4197 = vpack.c.b16 %v4104, %v4103
        %v4198 = vpack.c.b16 %v4106, %v4105
        %v4199 = vpack.c.b16 %v4108, %v4107
        %v4200 = vpack.c.b16 %v4110, %v4109
        %v4201 = vpack.c.b16 %v4112, %v4111
        %v4202 = vpack.c.b16 %v4114, %v4113
        %v4203 = vpack.c.b16 %v4116, %v4115
        %v4204 = vpack.c.b16 %v4118, %v4117
        %v4205 = vpack.c.b16 %v4120, %v4119
        %v4206 = vpack.c.b16 %v4122, %v4121
        %v4207 = vpack.c.b16 %v4124, %v4123
        %v4208 = vpack.c.b16 %v4126, %v4125
        %v4209 = vpack.c.b16 %v4128, %v4127
        %v4210 = vpack.c.b16 %v4130, %v4129
        %v4211 = vpack.c.b16 %v4132, %v4131
        %v4212 = vpack.c.b16 %v4134, %v4133
        %v4213 = vpack.c.b16 %v4136, %v4135
        %v4214 = vpack.c.b16 %v4138, %v4137
        %v4215 = vpack.c.b16 %v4140, %v4139
        %v4216 = vpack.c.b16 %v4142, %v4141
        %v4217 = vpack.c.b16 %v4144, %v4143
        %v4218 = vpack.c.b16 %v4146, %v4145
        %v4219 = vpack.c.b16 %v4148, %v4147
        %v4220 = vpack.c.b16 %v4150, %v4149
        %v4221 = vpack.c.b16 %v4152, %v4151
        %v4222 = vpack.c.b16 %v4154, %v4153
        %v4223 = vpack.c.b16 %v4156, %v4155
        %v4224 = vpack.c.b16 %v4158, %v4157
        %v4225 = vpack.c.b16 %v4160, %v4159
        %v4226 = vpack.c.b16 %v4162, %v4161
        %4291 = vmatpush.bf16.msra.mxu0 %v4170
        %4292 = vmatpush.bf16.msra.mxu0 %v4169
        %4293 = vmatpush.bf16.msra.mxu0 %v4168
        %4294 = vmatpush.bf16.msra.mxu0 %v4167
        %4295 = vmatpush.bf16.msra.mxu0 %v4166
        %4296 = vmatpush.bf16.msra.mxu0 %v4165
        %4297 = vmatpush.bf16.msra.mxu0 %v4164
        %4298 = vmatpush.bf16.msra.mxu0 %v4163
        %4299 = vmatmul.bf16.gmra.mxu0 %v3714
        %v4300 = vpop.f32.mrf.mxu0
        %v4301 = vadd.f32 0.0, %v4300
        %v4302 = vpop.f32.mrf.mxu0
        %v4303 = vadd.f32 0.0, %v4302
        %4304 = vmatmul.bf16.gmra.mxu0 %v3722
        %v4305 = vpop.f32.mrf.mxu0
        %v4306 = vadd.f32 0.0, %v4305
        %v4307 = vpop.f32.mrf.mxu0
        %v4308 = vadd.f32 0.0, %v4307
        %4309 = vmatmul.bf16.gmra.mxu0 %v3730
        %v4310 = vpop.f32.mrf.mxu0
        %v4311 = vadd.f32 0.0, %v4310
        %v4312 = vpop.f32.mrf.mxu0
        %v4313 = vadd.f32 0.0, %v4312
        %4314 = vmatmul.bf16.gmra.mxu0 %v3738
        %v4315 = vpop.f32.mrf.mxu0
        %v4316 = vadd.f32 0.0, %v4315
        %v4317 = vpop.f32.mrf.mxu0
        %v4318 = vadd.f32 0.0, %v4317
        %4319 = vmatmul.bf16.gmra.mxu0 %v3746
        %v4320 = vpop.f32.mrf.mxu0
        %v4321 = vadd.f32 0.0, %v4320
        %v4322 = vpop.f32.mrf.mxu0
        %v4323 = vadd.f32 0.0, %v4322
        %4324 = vmatmul.bf16.gmra.mxu0 %v3754
        %v4325 = vpop.f32.mrf.mxu0
        %v4326 = vadd.f32 0.0, %v4325
        %v4327 = vpop.f32.mrf.mxu0
        %v4328 = vadd.f32 0.0, %v4327
        %4329 = vmatmul.bf16.gmra.mxu0 %v3762
        %v4330 = vpop.f32.mrf.mxu0
        %v4331 = vadd.f32 0.0, %v4330
        %v4332 = vpop.f32.mrf.mxu0
        %v4333 = vadd.f32 0.0, %v4332
        %4334 = vmatmul.bf16.gmra.mxu0 %v3770
        %v4335 = vpop.f32.mrf.mxu0
        %v4336 = vadd.f32 0.0, %v4335
        %v4337 = vpop.f32.mrf.mxu0
        %v4338 = vadd.f32 0.0, %v4337
        %4339 = vdwg.mxu0
        %4340 = vmatpush.bf16.msra.mxu0 %v4178
        %4341 = vmatpush.bf16.msra.mxu0 %v4177
        %4342 = vmatpush.bf16.msra.mxu0 %v4176
        %4343 = vmatpush.bf16.msra.mxu0 %v4175
        %4344 = vmatpush.bf16.msra.mxu0 %v4174
        %4345 = vmatpush.bf16.msra.mxu0 %v4173
        %4346 = vmatpush.bf16.msra.mxu0 %v4172
        %4347 = vmatpush.bf16.msra.mxu0 %v4171
        %4348 = vmatmul.bf16.gmra.mxu0 %v3715
        %v4349 = vpop.f32.mrf.mxu0
        %v4350 = vadd.f32 %v4301, %v4349
        %v4351 = vpop.f32.mrf.mxu0
        %v4352 = vadd.f32 %v4303, %v4351
        %4353 = vmatmul.bf16.gmra.mxu0 %v3723
        %v4354 = vpop.f32.mrf.mxu0
        %v4355 = vadd.f32 %v4306, %v4354
        %v4356 = vpop.f32.mrf.mxu0
        %v4357 = vadd.f32 %v4308, %v4356
        %4358 = vmatmul.bf16.gmra.mxu0 %v3731
        %v4359 = vpop.f32.mrf.mxu0
        %v4360 = vadd.f32 %v4311, %v4359
        %v4361 = vpop.f32.mrf.mxu0
        %v4362 = vadd.f32 %v4313, %v4361
        %4363 = vmatmul.bf16.gmra.mxu0 %v3739
        %v4364 = vpop.f32.mrf.mxu0
        %v4365 = vadd.f32 %v4316, %v4364
        %v4366 = vpop.f32.mrf.mxu0
        %v4367 = vadd.f32 %v4318, %v4366
        %4368 = vmatmul.bf16.gmra.mxu0 %v3747
        %v4369 = vpop.f32.mrf.mxu0
        %v4370 = vadd.f32 %v4321, %v4369
        %v4371 = vpop.f32.mrf.mxu0
        %v4372 = vadd.f32 %v4323, %v4371
        %4373 = vmatmul.bf16.gmra.mxu0 %v3755
        %v4374 = vpop.f32.mrf.mxu0
        %v4375 = vadd.f32 %v4326, %v4374
        %v4376 = vpop.f32.mrf.mxu0
        %v4377 = vadd.f32 %v4328, %v4376
        %4378 = vmatmul.bf16.gmra.mxu0 %v3763
        %v4379 = vpop.f32.mrf.mxu0
        %v4380 = vadd.f32 %v4331, %v4379
        %v4381 = vpop.f32.mrf.mxu0
        %v4382 = vadd.f32 %v4333, %v4381
        %4383 = vmatmul.bf16.gmra.mxu0 %v3771
        %v4384 = vpop.f32.mrf.mxu0
        %v4385 = vadd.f32 %v4336, %v4384
        %v4386 = vpop.f32.mrf.mxu0
        %v4387 = vadd.f32 %v4338, %v4386
        %4388 = vdwg.mxu0
        %4389 = vmatpush.bf16.msra.mxu0 %v4186
        %4390 = vmatpush.bf16.msra.mxu0 %v4185
        %4391 = vmatpush.bf16.msra.mxu0 %v4184
        %4392 = vmatpush.bf16.msra.mxu0 %v4183
        %4393 = vmatpush.bf16.msra.mxu0 %v4182
        %4394 = vmatpush.bf16.msra.mxu0 %v4181
        %4395 = vmatpush.bf16.msra.mxu0 %v4180
        %4396 = vmatpush.bf16.msra.mxu0 %v4179
        %4397 = vmatmul.bf16.gmra.mxu0 %v3716
        %v4398 = vpop.f32.mrf.mxu0
        %v4399 = vadd.f32 %v4350, %v4398
        %v4400 = vpop.f32.mrf.mxu0
        %v4401 = vadd.f32 %v4352, %v4400
        %4402 = vmatmul.bf16.gmra.mxu0 %v3724
        %v4403 = vpop.f32.mrf.mxu0
        %v4404 = vadd.f32 %v4355, %v4403
        %v4405 = vpop.f32.mrf.mxu0
        %v4406 = vadd.f32 %v4357, %v4405
        %4407 = vmatmul.bf16.gmra.mxu0 %v3732
        %v4408 = vpop.f32.mrf.mxu0
        %v4409 = vadd.f32 %v4360, %v4408
        %v4410 = vpop.f32.mrf.mxu0
        %v4411 = vadd.f32 %v4362, %v4410
        %4412 = vmatmul.bf16.gmra.mxu0 %v3740
        %v4413 = vpop.f32.mrf.mxu0
        %v4414 = vadd.f32 %v4365, %v4413
        %v4415 = vpop.f32.mrf.mxu0
        %v4416 = vadd.f32 %v4367, %v4415
        %4417 = vmatmul.bf16.gmra.mxu0 %v3748
        %v4418 = vpop.f32.mrf.mxu0
        %v4419 = vadd.f32 %v4370, %v4418
        %v4420 = vpop.f32.mrf.mxu0
        %v4421 = vadd.f32 %v4372, %v4420
        %4422 = vmatmul.bf16.gmra.mxu0 %v3756
        %v4423 = vpop.f32.mrf.mxu0
        %v4424 = vadd.f32 %v4375, %v4423
        %v4425 = vpop.f32.mrf.mxu0
        %v4426 = vadd.f32 %v4377, %v4425
        %4427 = vmatmul.bf16.gmra.mxu0 %v3764
        %v4428 = vpop.f32.mrf.mxu0
        %v4429 = vadd.f32 %v4380, %v4428
        %v4430 = vpop.f32.mrf.mxu0
        %v4431 = vadd.f32 %v4382, %v4430
        %4432 = vmatmul.bf16.gmra.mxu0 %v3772
        %v4433 = vpop.f32.mrf.mxu0
        %v4434 = vadd.f32 %v4385, %v4433
        %v4435 = vpop.f32.mrf.mxu0
        %v4436 = vadd.f32 %v4387, %v4435
        %4437 = vdwg.mxu0
        %4438 = vmatpush.bf16.msra.mxu0 %v4194
        %4439 = vmatpush.bf16.msra.mxu0 %v4193
        %4440 = vmatpush.bf16.msra.mxu0 %v4192
        %4441 = vmatpush.bf16.msra.mxu0 %v4191
        %4442 = vmatpush.bf16.msra.mxu0 %v4190
        %4443 = vmatpush.bf16.msra.mxu0 %v4189
        %4444 = vmatpush.bf16.msra.mxu0 %v4188
        %4445 = vmatpush.bf16.msra.mxu0 %v4187
        %4446 = vmatmul.bf16.gmra.mxu0 %v3717
        %v4447 = vpop.f32.mrf.mxu0
        %v4448 = vadd.f32 %v4399, %v4447
        %v4449 = vpop.f32.mrf.mxu0
        %v4450 = vadd.f32 %v4401, %v4449
        %4451 = vmatmul.bf16.gmra.mxu0 %v3725
        %v4452 = vpop.f32.mrf.mxu0
        %v4453 = vadd.f32 %v4404, %v4452
        %v4454 = vpop.f32.mrf.mxu0
        %v4455 = vadd.f32 %v4406, %v4454
        %4456 = vmatmul.bf16.gmra.mxu0 %v3733
        %v4457 = vpop.f32.mrf.mxu0
        %v4458 = vadd.f32 %v4409, %v4457
        %v4459 = vpop.f32.mrf.mxu0
        %v4460 = vadd.f32 %v4411, %v4459
        %4461 = vmatmul.bf16.gmra.mxu0 %v3741
        %v4462 = vpop.f32.mrf.mxu0
        %v4463 = vadd.f32 %v4414, %v4462
        %v4464 = vpop.f32.mrf.mxu0
        %v4465 = vadd.f32 %v4416, %v4464
        %4466 = vmatmul.bf16.gmra.mxu0 %v3749
        %v4467 = vpop.f32.mrf.mxu0
        %v4468 = vadd.f32 %v4419, %v4467
        %v4469 = vpop.f32.mrf.mxu0
        %v4470 = vadd.f32 %v4421, %v4469
        %4471 = vmatmul.bf16.gmra.mxu0 %v3757
        %v4472 = vpop.f32.mrf.mxu0
        %v4473 = vadd.f32 %v4424, %v4472
        %v4474 = vpop.f32.mrf.mxu0
        %v4475 = vadd.f32 %v4426, %v4474
        %4476 = vmatmul.bf16.gmra.mxu0 %v3765
        %v4477 = vpop.f32.mrf.mxu0
        %v4478 = vadd.f32 %v4429, %v4477
        %v4479 = vpop.f32.mrf.mxu0
        %v4480 = vadd.f32 %v4431, %v4479
        %4481 = vmatmul.bf16.gmra.mxu0 %v3773
        %v4482 = vpop.f32.mrf.mxu0
        %v4483 = vadd.f32 %v4434, %v4482
        %v4484 = vpop.f32.mrf.mxu0
        %v4485 = vadd.f32 %v4436, %v4484
        %4486 = vdwg.mxu0
        %4487 = vmatpush.bf16.msra.mxu0 %v4202
        %4488 = vmatpush.bf16.msra.mxu0 %v4201
        %4489 = vmatpush.bf16.msra.mxu0 %v4200
        %4490 = vmatpush.bf16.msra.mxu0 %v4199
        %4491 = vmatpush.bf16.msra.mxu0 %v4198
        %4492 = vmatpush.bf16.msra.mxu0 %v4197
        %4493 = vmatpush.bf16.msra.mxu0 %v4196
        %4494 = vmatpush.bf16.msra.mxu0 %v4195
        %4495 = vmatmul.bf16.gmra.mxu0 %v3718
        %v4496 = vpop.f32.mrf.mxu0
        %v4497 = vadd.f32 %v4448, %v4496
        %v4498 = vpop.f32.mrf.mxu0
        %v4499 = vadd.f32 %v4450, %v4498
        %4500 = vmatmul.bf16.gmra.mxu0 %v3726
        %v4501 = vpop.f32.mrf.mxu0
        %v4502 = vadd.f32 %v4453, %v4501
        %v4503 = vpop.f32.mrf.mxu0
        %v4504 = vadd.f32 %v4455, %v4503
        %4505 = vmatmul.bf16.gmra.mxu0 %v3734
        %v4506 = vpop.f32.mrf.mxu0
        %v4507 = vadd.f32 %v4458, %v4506
        %v4508 = vpop.f32.mrf.mxu0
        %v4509 = vadd.f32 %v4460, %v4508
        %4510 = vmatmul.bf16.gmra.mxu0 %v3742
        %v4511 = vpop.f32.mrf.mxu0
        %v4512 = vadd.f32 %v4463, %v4511
        %v4513 = vpop.f32.mrf.mxu0
        %v4514 = vadd.f32 %v4465, %v4513
        %4515 = vmatmul.bf16.gmra.mxu0 %v3750
        %v4516 = vpop.f32.mrf.mxu0
        %v4517 = vadd.f32 %v4468, %v4516
        %v4518 = vpop.f32.mrf.mxu0
        %v4519 = vadd.f32 %v4470, %v4518
        %4520 = vmatmul.bf16.gmra.mxu0 %v3758
        %v4521 = vpop.f32.mrf.mxu0
        %v4522 = vadd.f32 %v4473, %v4521
        %v4523 = vpop.f32.mrf.mxu0
        %v4524 = vadd.f32 %v4475, %v4523
        %4525 = vmatmul.bf16.gmra.mxu0 %v3766
        %v4526 = vpop.f32.mrf.mxu0
        %v4527 = vadd.f32 %v4478, %v4526
        %v4528 = vpop.f32.mrf.mxu0
        %v4529 = vadd.f32 %v4480, %v4528
        %4530 = vmatmul.bf16.gmra.mxu0 %v3774
        %v4531 = vpop.f32.mrf.mxu0
        %v4532 = vadd.f32 %v4483, %v4531
        %v4533 = vpop.f32.mrf.mxu0
        %v4534 = vadd.f32 %v4485, %v4533
        %4535 = vdwg.mxu0
        %4536 = vmatpush.bf16.msra.mxu0 %v4210
        %4537 = vmatpush.bf16.msra.mxu0 %v4209
        %4538 = vmatpush.bf16.msra.mxu0 %v4208
        %4539 = vmatpush.bf16.msra.mxu0 %v4207
        %4540 = vmatpush.bf16.msra.mxu0 %v4206
        %4541 = vmatpush.bf16.msra.mxu0 %v4205
        %4542 = vmatpush.bf16.msra.mxu0 %v4204
        %4543 = vmatpush.bf16.msra.mxu0 %v4203
        %4544 = vmatmul.bf16.gmra.mxu0 %v3719
        %v4545 = vpop.f32.mrf.mxu0
        %v4546 = vadd.f32 %v4497, %v4545
        %v4547 = vpop.f32.mrf.mxu0
        %v4548 = vadd.f32 %v4499, %v4547
        %4549 = vmatmul.bf16.gmra.mxu0 %v3727
        %v4550 = vpop.f32.mrf.mxu0
        %v4551 = vadd.f32 %v4502, %v4550
        %v4552 = vpop.f32.mrf.mxu0
        %v4553 = vadd.f32 %v4504, %v4552
        %4554 = vmatmul.bf16.gmra.mxu0 %v3735
        %v4555 = vpop.f32.mrf.mxu0
        %v4556 = vadd.f32 %v4507, %v4555
        %v4557 = vpop.f32.mrf.mxu0
        %v4558 = vadd.f32 %v4509, %v4557
        %4559 = vmatmul.bf16.gmra.mxu0 %v3743
        %v4560 = vpop.f32.mrf.mxu0
        %v4561 = vadd.f32 %v4512, %v4560
        %v4562 = vpop.f32.mrf.mxu0
        %v4563 = vadd.f32 %v4514, %v4562
        %4564 = vmatmul.bf16.gmra.mxu0 %v3751
        %v4565 = vpop.f32.mrf.mxu0
        %v4566 = vadd.f32 %v4517, %v4565
        %v4567 = vpop.f32.mrf.mxu0
        %v4568 = vadd.f32 %v4519, %v4567
        %4569 = vmatmul.bf16.gmra.mxu0 %v3759
        %v4570 = vpop.f32.mrf.mxu0
        %v4571 = vadd.f32 %v4522, %v4570
        %v4572 = vpop.f32.mrf.mxu0
        %v4573 = vadd.f32 %v4524, %v4572
        %4574 = vmatmul.bf16.gmra.mxu0 %v3767
        %v4575 = vpop.f32.mrf.mxu0
        %v4576 = vadd.f32 %v4527, %v4575
        %v4577 = vpop.f32.mrf.mxu0
        %v4578 = vadd.f32 %v4529, %v4577
        %4579 = vmatmul.bf16.gmra.mxu0 %v3775
        %v4580 = vpop.f32.mrf.mxu0
        %v4581 = vadd.f32 %v4532, %v4580
        %v4582 = vpop.f32.mrf.mxu0
        %v4583 = vadd.f32 %v4534, %v4582
        %4584 = vdwg.mxu0
        %4585 = vmatpush.bf16.msra.mxu0 %v4218
        %4586 = vmatpush.bf16.msra.mxu0 %v4217
        %4587 = vmatpush.bf16.msra.mxu0 %v4216
        %4588 = vmatpush.bf16.msra.mxu0 %v4215
        %4589 = vmatpush.bf16.msra.mxu0 %v4214
        %4590 = vmatpush.bf16.msra.mxu0 %v4213
        %4591 = vmatpush.bf16.msra.mxu0 %v4212
        %4592 = vmatpush.bf16.msra.mxu0 %v4211
        %4593 = vmatmul.bf16.gmra.mxu0 %v3720
        %v4594 = vpop.f32.mrf.mxu0
        %v4595 = vadd.f32 %v4546, %v4594
        %v4596 = vpop.f32.mrf.mxu0
        %v4597 = vadd.f32 %v4548, %v4596
        %4598 = vmatmul.bf16.gmra.mxu0 %v3728
        %v4599 = vpop.f32.mrf.mxu0
        %v4600 = vadd.f32 %v4551, %v4599
        %v4601 = vpop.f32.mrf.mxu0
        %v4602 = vadd.f32 %v4553, %v4601
        %4603 = vmatmul.bf16.gmra.mxu0 %v3736
        %v4604 = vpop.f32.mrf.mxu0
        %v4605 = vadd.f32 %v4556, %v4604
        %v4606 = vpop.f32.mrf.mxu0
        %v4607 = vadd.f32 %v4558, %v4606
        %4608 = vmatmul.bf16.gmra.mxu0 %v3744
        %v4609 = vpop.f32.mrf.mxu0
        %v4610 = vadd.f32 %v4561, %v4609
        %v4611 = vpop.f32.mrf.mxu0
        %v4612 = vadd.f32 %v4563, %v4611
        %4613 = vmatmul.bf16.gmra.mxu0 %v3752
        %v4614 = vpop.f32.mrf.mxu0
        %v4615 = vadd.f32 %v4566, %v4614
        %v4616 = vpop.f32.mrf.mxu0
        %v4617 = vadd.f32 %v4568, %v4616
        %4618 = vmatmul.bf16.gmra.mxu0 %v3760
        %v4619 = vpop.f32.mrf.mxu0
        %v4620 = vadd.f32 %v4571, %v4619
        %v4621 = vpop.f32.mrf.mxu0
        %v4622 = vadd.f32 %v4573, %v4621
        %4623 = vmatmul.bf16.gmra.mxu0 %v3768
        %v4624 = vpop.f32.mrf.mxu0
        %v4625 = vadd.f32 %v4576, %v4624
        %v4626 = vpop.f32.mrf.mxu0
        %v4627 = vadd.f32 %v4578, %v4626
        %4628 = vmatmul.bf16.gmra.mxu0 %v3776
        %v4629 = vpop.f32.mrf.mxu0
        %v4630 = vadd.f32 %v4581, %v4629
        %v4631 = vpop.f32.mrf.mxu0
        %v4632 = vadd.f32 %v4583, %v4631
        %4633 = vdwg.mxu0
        %4634 = vmatpush.bf16.msra.mxu0 %v4226
        %4635 = vmatpush.bf16.msra.mxu0 %v4225
        %4636 = vmatpush.bf16.msra.mxu0 %v4224
        %4637 = vmatpush.bf16.msra.mxu0 %v4223
        %4638 = vmatpush.bf16.msra.mxu0 %v4222
        %4639 = vmatpush.bf16.msra.mxu0 %v4221
        %4640 = vmatpush.bf16.msra.mxu0 %v4220
        %4641 = vmatpush.bf16.msra.mxu0 %v4219
        %4642 = vmatmul.bf16.gmra.mxu0 %v3721
        %v4643 = vpop.f32.mrf.mxu0
        %v4644 = vadd.f32 %v4595, %v4643
        %v4645 = vpop.f32.mrf.mxu0
        %v4646 = vadd.f32 %v4597, %v4645
        %4647 = vmatmul.bf16.gmra.mxu0 %v3729
        %v4648 = vpop.f32.mrf.mxu0
        %v4649 = vadd.f32 %v4600, %v4648
        %v4650 = vpop.f32.mrf.mxu0
        %v4651 = vadd.f32 %v4602, %v4650
        %4652 = vmatmul.bf16.gmra.mxu0 %v3737
        %v4653 = vpop.f32.mrf.mxu0
        %v4654 = vadd.f32 %v4605, %v4653
        %v4655 = vpop.f32.mrf.mxu0
        %v4656 = vadd.f32 %v4607, %v4655
        %4657 = vmatmul.bf16.gmra.mxu0 %v3745
        %v4658 = vpop.f32.mrf.mxu0
        %v4659 = vadd.f32 %v4610, %v4658
        %v4660 = vpop.f32.mrf.mxu0
        %v4661 = vadd.f32 %v4612, %v4660
        %4662 = vmatmul.bf16.gmra.mxu0 %v3753
        %v4663 = vpop.f32.mrf.mxu0
        %v4664 = vadd.f32 %v4615, %v4663
        %v4665 = vpop.f32.mrf.mxu0
        %v4666 = vadd.f32 %v4617, %v4665
        %4667 = vmatmul.bf16.gmra.mxu0 %v3761
        %v4668 = vpop.f32.mrf.mxu0
        %v4669 = vadd.f32 %v4620, %v4668
        %v4670 = vpop.f32.mrf.mxu0
        %v4671 = vadd.f32 %v4622, %v4670
        %4672 = vmatmul.bf16.gmra.mxu0 %v3769
        %v4673 = vpop.f32.mrf.mxu0
        %v4674 = vadd.f32 %v4625, %v4673
        %v4675 = vpop.f32.mrf.mxu0
        %v4676 = vadd.f32 %v4627, %v4675
        %4677 = vmatmul.bf16.gmra.mxu0 %v3777
        %v4678 = vpop.f32.mrf.mxu0
        %v4679 = vadd.f32 %v4630, %v4678
        %v4680 = vpop.f32.mrf.mxu0
        %v4681 = vadd.f32 %v4632, %v4680
        %4682 = vdwg.mxu0
        %v4811 = vunpack.c.l.b16 %v2142
        %v4812 = vunpack.c.l.b16 %v2143
        %v4813 = vunpack.c.l.b16 %v2144
        %v4814 = vunpack.c.l.b16 %v2145
        %v4815 = vunpack.c.l.b16 %v2146
        %v4816 = vunpack.c.l.b16 %v2147
        %v4817 = vunpack.c.l.b16 %v2148
        %v4818 = vunpack.c.l.b16 %v2149
        %v4819 = vunpack.c.l.b16 %v2150
        %v4820 = vunpack.c.l.b16 %v2151
        %v4821 = vunpack.c.l.b16 %v2152
        %v4822 = vunpack.c.l.b16 %v2153
        %v4823 = vunpack.c.l.b16 %v2154
        %v4824 = vunpack.c.l.b16 %v2155
        %v4825 = vunpack.c.l.b16 %v2156
        %v4826 = vunpack.c.l.b16 %v2157
        %v4827 = vunpack.c.l.b16 %v2158
        %v4828 = vunpack.c.l.b16 %v2159
        %v4829 = vunpack.c.l.b16 %v2160
        %v4830 = vunpack.c.l.b16 %v2161
        %v4831 = vunpack.c.l.b16 %v2162
        %v4832 = vunpack.c.l.b16 %v2163
        %v4833 = vunpack.c.l.b16 %v2164
        %v4834 = vunpack.c.l.b16 %v2165
        %v4835 = vunpack.c.l.b16 %v2166
        %v4836 = vunpack.c.l.b16 %v2167
        %v4837 = vunpack.c.l.b16 %v2168
        %v4838 = vunpack.c.l.b16 %v2169
        %v4839 = vunpack.c.l.b16 %v2170
        %v4840 = vunpack.c.l.b16 %v2171
        %v4841 = vunpack.c.l.b16 %v2172
        %v4842 = vunpack.c.l.b16 %v2173
        %v4843 = vunpack.c.l.b16 %v2174
        %v4844 = vunpack.c.l.b16 %v2175
        %v4845 = vunpack.c.l.b16 %v2176
        %v4846 = vunpack.c.l.b16 %v2177
        %v4847 = vunpack.c.l.b16 %v2178
        %v4848 = vunpack.c.l.b16 %v2179
        %v4849 = vunpack.c.l.b16 %v2180
        %v4850 = vunpack.c.l.b16 %v2181
        %v4851 = vunpack.c.l.b16 %v2182
        %v4852 = vunpack.c.l.b16 %v2183
        %v4853 = vunpack.c.l.b16 %v2184
        %v4854 = vunpack.c.l.b16 %v2185
        %v4855 = vunpack.c.l.b16 %v2186
        %v4856 = vunpack.c.l.b16 %v2187
        %v4857 = vunpack.c.l.b16 %v2188
        %v4858 = vunpack.c.l.b16 %v2189
        %v4859 = vunpack.c.l.b16 %v2190
        %v4860 = vunpack.c.l.b16 %v2191
        %v4861 = vunpack.c.l.b16 %v2192
        %v4862 = vunpack.c.l.b16 %v2193
        %v4863 = vunpack.c.l.b16 %v2194
        %v4864 = vunpack.c.l.b16 %v2195
        %v4865 = vunpack.c.l.b16 %v2196
        %v4866 = vunpack.c.l.b16 %v2197
        %v4867 = vunpack.c.l.b16 %v2198
        %v4868 = vunpack.c.l.b16 %v2199
        %v4869 = vunpack.c.l.b16 %v2200
        %v4870 = vunpack.c.l.b16 %v2201
        %v4871 = vunpack.c.l.b16 %v2202
        %v4872 = vunpack.c.l.b16 %v2203
        %v4873 = vunpack.c.l.b16 %v2204
        %v4874 = vunpack.c.l.b16 %v2205
        %v4875 = vunpack.c.l.b16 %v2206
        %v4876 = vunpack.c.l.b16 %v2207
        %v4877 = vunpack.c.l.b16 %v2208
        %v4878 = vunpack.c.l.b16 %v2209
        %v4879 = vunpack.c.l.b16 %v2210
        %v4880 = vunpack.c.l.b16 %v2211
        %v4881 = vunpack.c.l.b16 %v2212
        %v4882 = vunpack.c.l.b16 %v2213
        %v4883 = vunpack.c.l.b16 %v2214
        %v4884 = vunpack.c.l.b16 %v2215
        %v4885 = vunpack.c.l.b16 %v2216
        %v4886 = vunpack.c.l.b16 %v2217
        %v4887 = vunpack.c.l.b16 %v2218
        %v4888 = vunpack.c.l.b16 %v2219
        %v4889 = vunpack.c.l.b16 %v2220
        %v4890 = vunpack.c.l.b16 %v2221
        %v4891 = vunpack.c.l.b16 %v2222
        %v4892 = vunpack.c.l.b16 %v2223
        %v4893 = vunpack.c.l.b16 %v2224
        %v4894 = vunpack.c.l.b16 %v2225
        %v4895 = vunpack.c.l.b16 %v2226
        %v4896 = vunpack.c.l.b16 %v2227
        %v4897 = vunpack.c.l.b16 %v2228
        %v4898 = vunpack.c.l.b16 %v2229
        %v4899 = vunpack.c.l.b16 %v2230
        %v4900 = vunpack.c.l.b16 %v2231
        %v4901 = vunpack.c.l.b16 %v2232
        %v4902 = vunpack.c.l.b16 %v2233
        %v4903 = vunpack.c.l.b16 %v2234
        %v4904 = vunpack.c.l.b16 %v2235
        %v4905 = vunpack.c.l.b16 %v2236
        %v4906 = vunpack.c.l.b16 %v2237
        %v4907 = vunpack.c.l.b16 %v2238
        %v4908 = vunpack.c.l.b16 %v2239
        %v4909 = vunpack.c.l.b16 %v2240
        %v4910 = vunpack.c.l.b16 %v2241
        %v4911 = vunpack.c.l.b16 %v2242
        %v4912 = vunpack.c.l.b16 %v2243
        %v4913 = vunpack.c.l.b16 %v2244
        %v4914 = vunpack.c.l.b16 %v2245
        %v4915 = vunpack.c.l.b16 %v2246
        %v4916 = vunpack.c.l.b16 %v2247
        %v4917 = vunpack.c.l.b16 %v2248
        %v4918 = vunpack.c.l.b16 %v2249
        %v4919 = vunpack.c.l.b16 %v2250
        %v4920 = vunpack.c.l.b16 %v2251
        %v4921 = vunpack.c.l.b16 %v2252
        %v4922 = vunpack.c.l.b16 %v2253
        %v4923 = vunpack.c.l.b16 %v2254
        %v4924 = vunpack.c.l.b16 %v2255
        %v4925 = vunpack.c.l.b16 %v2256
        %v4926 = vunpack.c.l.b16 %v2257
        %v4927 = vunpack.c.l.b16 %v2258
        %v4928 = vunpack.c.l.b16 %v2259
        %v4929 = vunpack.c.l.b16 %v2260
        %v4930 = vunpack.c.l.b16 %v2261
        %v4931 = vunpack.c.l.b16 %v2262
        %v4932 = vunpack.c.l.b16 %v2263
        %v4933 = vunpack.c.l.b16 %v2264
        %v4934 = vunpack.c.l.b16 %v2265
        %v4935 = vunpack.c.l.b16 %v2266
        %v4936 = vunpack.c.l.b16 %v2267
        %v4937 = vunpack.c.l.b16 %v2268
        %v4938 = vunpack.c.l.b16 %v2269
        %v4939 = vpack.c.b16 %v4812, %v4811
        %v4940 = vpack.c.b16 %v4814, %v4813
        %v4941 = vpack.c.b16 %v4816, %v4815
        %v4942 = vpack.c.b16 %v4818, %v4817
        %v4943 = vpack.c.b16 %v4820, %v4819
        %v4944 = vpack.c.b16 %v4822, %v4821
        %v4945 = vpack.c.b16 %v4824, %v4823
        %v4946 = vpack.c.b16 %v4826, %v4825
        %v4947 = vpack.c.b16 %v4828, %v4827
        %v4948 = vpack.c.b16 %v4830, %v4829
        %v4949 = vpack.c.b16 %v4832, %v4831
        %v4950 = vpack.c.b16 %v4834, %v4833
        %v4951 = vpack.c.b16 %v4836, %v4835
        %v4952 = vpack.c.b16 %v4838, %v4837
        %v4953 = vpack.c.b16 %v4840, %v4839
        %v4954 = vpack.c.b16 %v4842, %v4841
        %v4955 = vpack.c.b16 %v4844, %v4843
        %v4956 = vpack.c.b16 %v4846, %v4845
        %v4957 = vpack.c.b16 %v4848, %v4847
        %v4958 = vpack.c.b16 %v4850, %v4849
        %v4959 = vpack.c.b16 %v4852, %v4851
        %v4960 = vpack.c.b16 %v4854, %v4853
        %v4961 = vpack.c.b16 %v4856, %v4855
        %v4962 = vpack.c.b16 %v4858, %v4857
        %v4963 = vpack.c.b16 %v4860, %v4859
        %v4964 = vpack.c.b16 %v4862, %v4861
        %v4965 = vpack.c.b16 %v4864, %v4863
        %v4966 = vpack.c.b16 %v4866, %v4865
        %v4967 = vpack.c.b16 %v4868, %v4867
        %v4968 = vpack.c.b16 %v4870, %v4869
        %v4969 = vpack.c.b16 %v4872, %v4871
        %v4970 = vpack.c.b16 %v4874, %v4873
        %v4971 = vpack.c.b16 %v4876, %v4875
        %v4972 = vpack.c.b16 %v4878, %v4877
        %v4973 = vpack.c.b16 %v4880, %v4879
        %v4974 = vpack.c.b16 %v4882, %v4881
        %v4975 = vpack.c.b16 %v4884, %v4883
        %v4976 = vpack.c.b16 %v4886, %v4885
        %v4977 = vpack.c.b16 %v4888, %v4887
        %v4978 = vpack.c.b16 %v4890, %v4889
        %v4979 = vpack.c.b16 %v4892, %v4891
        %v4980 = vpack.c.b16 %v4894, %v4893
        %v4981 = vpack.c.b16 %v4896, %v4895
        %v4982 = vpack.c.b16 %v4898, %v4897
        %v4983 = vpack.c.b16 %v4900, %v4899
        %v4984 = vpack.c.b16 %v4902, %v4901
        %v4985 = vpack.c.b16 %v4904, %v4903
        %v4986 = vpack.c.b16 %v4906, %v4905
        %v4987 = vpack.c.b16 %v4908, %v4907
        %v4988 = vpack.c.b16 %v4910, %v4909
        %v4989 = vpack.c.b16 %v4912, %v4911
        %v4990 = vpack.c.b16 %v4914, %v4913
        %v4991 = vpack.c.b16 %v4916, %v4915
        %v4992 = vpack.c.b16 %v4918, %v4917
        %v4993 = vpack.c.b16 %v4920, %v4919
        %v4994 = vpack.c.b16 %v4922, %v4921
        %v4995 = vpack.c.b16 %v4924, %v4923
        %v4996 = vpack.c.b16 %v4926, %v4925
        %v4997 = vpack.c.b16 %v4928, %v4927
        %v4998 = vpack.c.b16 %v4930, %v4929
        %v4999 = vpack.c.b16 %v4932, %v4931
        %v5000 = vpack.c.b16 %v4934, %v4933
        %v5001 = vpack.c.b16 %v4936, %v4935
        %v5002 = vpack.c.b16 %v4938, %v4937
        %5067 = vmatpush.bf16.msra.mxu0 %v4946
        %5068 = vmatpush.bf16.msra.mxu0 %v4945
        %5069 = vmatpush.bf16.msra.mxu0 %v4944
        %5070 = vmatpush.bf16.msra.mxu0 %v4943
        %5071 = vmatpush.bf16.msra.mxu0 %v4942
        %5072 = vmatpush.bf16.msra.mxu0 %v4941
        %5073 = vmatpush.bf16.msra.mxu0 %v4940
        %5074 = vmatpush.bf16.msra.mxu0 %v4939
        %5075 = vmatmul.bf16.gmra.mxu0 %v2078
        %v5076 = vpop.f32.mrf.mxu0
        %v5077 = vadd.f32 %v4644, %v5076
        %v5078 = vpop.f32.mrf.mxu0
        %v5079 = vadd.f32 %v4646, %v5078
        %5080 = vmatmul.bf16.gmra.mxu0 %v2086
        %v5081 = vpop.f32.mrf.mxu0
        %v5082 = vadd.f32 %v4649, %v5081
        %v5083 = vpop.f32.mrf.mxu0
        %v5084 = vadd.f32 %v4651, %v5083
        %5085 = vmatmul.bf16.gmra.mxu0 %v2094
        %v5086 = vpop.f32.mrf.mxu0
        %v5087 = vadd.f32 %v4654, %v5086
        %v5088 = vpop.f32.mrf.mxu0
        %v5089 = vadd.f32 %v4656, %v5088
        %5090 = vmatmul.bf16.gmra.mxu0 %v2102
        %v5091 = vpop.f32.mrf.mxu0
        %v5092 = vadd.f32 %v4659, %v5091
        %v5093 = vpop.f32.mrf.mxu0
        %v5094 = vadd.f32 %v4661, %v5093
        %5095 = vmatmul.bf16.gmra.mxu0 %v2110
        %v5096 = vpop.f32.mrf.mxu0
        %v5097 = vadd.f32 %v4664, %v5096
        %v5098 = vpop.f32.mrf.mxu0
        %v5099 = vadd.f32 %v4666, %v5098
        %5100 = vmatmul.bf16.gmra.mxu0 %v2118
        %v5101 = vpop.f32.mrf.mxu0
        %v5102 = vadd.f32 %v4669, %v5101
        %v5103 = vpop.f32.mrf.mxu0
        %v5104 = vadd.f32 %v4671, %v5103
        %5105 = vmatmul.bf16.gmra.mxu0 %v2126
        %v5106 = vpop.f32.mrf.mxu0
        %v5107 = vadd.f32 %v4674, %v5106
        %v5108 = vpop.f32.mrf.mxu0
        %v5109 = vadd.f32 %v4676, %v5108
        %5110 = vmatmul.bf16.gmra.mxu0 %v2134
        %v5111 = vpop.f32.mrf.mxu0
        %v5112 = vadd.f32 %v4679, %v5111
        %v5113 = vpop.f32.mrf.mxu0
        %v5114 = vadd.f32 %v4681, %v5113
        %5115 = vdwg.mxu0
        %5116 = vmatpush.bf16.msra.mxu0 %v4954
        %5117 = vmatpush.bf16.msra.mxu0 %v4953
        %5118 = vmatpush.bf16.msra.mxu0 %v4952
        %5119 = vmatpush.bf16.msra.mxu0 %v4951
        %5120 = vmatpush.bf16.msra.mxu0 %v4950
        %5121 = vmatpush.bf16.msra.mxu0 %v4949
        %5122 = vmatpush.bf16.msra.mxu0 %v4948
        %5123 = vmatpush.bf16.msra.mxu0 %v4947
        %5124 = vmatmul.bf16.gmra.mxu0 %v2079
        %v5125 = vpop.f32.mrf.mxu0
        %v5126 = vadd.f32 %v5077, %v5125
        %v5127 = vpop.f32.mrf.mxu0
        %v5128 = vadd.f32 %v5079, %v5127
        %5129 = vmatmul.bf16.gmra.mxu0 %v2087
        %v5130 = vpop.f32.mrf.mxu0
        %v5131 = vadd.f32 %v5082, %v5130
        %v5132 = vpop.f32.mrf.mxu0
        %v5133 = vadd.f32 %v5084, %v5132
        %5134 = vmatmul.bf16.gmra.mxu0 %v2095
        %v5135 = vpop.f32.mrf.mxu0
        %v5136 = vadd.f32 %v5087, %v5135
        %v5137 = vpop.f32.mrf.mxu0
        %v5138 = vadd.f32 %v5089, %v5137
        %5139 = vmatmul.bf16.gmra.mxu0 %v2103
        %v5140 = vpop.f32.mrf.mxu0
        %v5141 = vadd.f32 %v5092, %v5140
        %v5142 = vpop.f32.mrf.mxu0
        %v5143 = vadd.f32 %v5094, %v5142
        %5144 = vmatmul.bf16.gmra.mxu0 %v2111
        %v5145 = vpop.f32.mrf.mxu0
        %v5146 = vadd.f32 %v5097, %v5145
        %v5147 = vpop.f32.mrf.mxu0
        %v5148 = vadd.f32 %v5099, %v5147
        %5149 = vmatmul.bf16.gmra.mxu0 %v2119
        %v5150 = vpop.f32.mrf.mxu0
        %v5151 = vadd.f32 %v5102, %v5150
        %v5152 = vpop.f32.mrf.mxu0
        %v5153 = vadd.f32 %v5104, %v5152
        %5154 = vmatmul.bf16.gmra.mxu0 %v2127
        %v5155 = vpop.f32.mrf.mxu0
        %v5156 = vadd.f32 %v5107, %v5155
        %v5157 = vpop.f32.mrf.mxu0
        %v5158 = vadd.f32 %v5109, %v5157
        %5159 = vmatmul.bf16.gmra.mxu0 %v2135
        %v5160 = vpop.f32.mrf.mxu0
        %v5161 = vadd.f32 %v5112, %v5160
        %v5162 = vpop.f32.mrf.mxu0
        %v5163 = vadd.f32 %v5114, %v5162
        %5164 = vdwg.mxu0
        %5165 = vmatpush.bf16.msra.mxu0 %v4962
        %5166 = vmatpush.bf16.msra.mxu0 %v4961
        %5167 = vmatpush.bf16.msra.mxu0 %v4960
        %5168 = vmatpush.bf16.msra.mxu0 %v4959
        %5169 = vmatpush.bf16.msra.mxu0 %v4958
        %5170 = vmatpush.bf16.msra.mxu0 %v4957
        %5171 = vmatpush.bf16.msra.mxu0 %v4956
        %5172 = vmatpush.bf16.msra.mxu0 %v4955
        %5173 = vmatmul.bf16.gmra.mxu0 %v2080
        %v5174 = vpop.f32.mrf.mxu0
        %v5175 = vadd.f32 %v5126, %v5174
        %v5176 = vpop.f32.mrf.mxu0
        %v5177 = vadd.f32 %v5128, %v5176
        %5178 = vmatmul.bf16.gmra.mxu0 %v2088
        %v5179 = vpop.f32.mrf.mxu0
        %v5180 = vadd.f32 %v5131, %v5179
        %v5181 = vpop.f32.mrf.mxu0
        %v5182 = vadd.f32 %v5133, %v5181
        %5183 = vmatmul.bf16.gmra.mxu0 %v2096
        %v5184 = vpop.f32.mrf.mxu0
        %v5185 = vadd.f32 %v5136, %v5184
        %v5186 = vpop.f32.mrf.mxu0
        %v5187 = vadd.f32 %v5138, %v5186
        %5188 = vmatmul.bf16.gmra.mxu0 %v2104
        %v5189 = vpop.f32.mrf.mxu0
        %v5190 = vadd.f32 %v5141, %v5189
        %v5191 = vpop.f32.mrf.mxu0
        %v5192 = vadd.f32 %v5143, %v5191
        %5193 = vmatmul.bf16.gmra.mxu0 %v2112
        %v5194 = vpop.f32.mrf.mxu0
        %v5195 = vadd.f32 %v5146, %v5194
        %v5196 = vpop.f32.mrf.mxu0
        %v5197 = vadd.f32 %v5148, %v5196
        %5198 = vmatmul.bf16.gmra.mxu0 %v2120
        %v5199 = vpop.f32.mrf.mxu0
        %v5200 = vadd.f32 %v5151, %v5199
        %v5201 = vpop.f32.mrf.mxu0
        %v5202 = vadd.f32 %v5153, %v5201
        %5203 = vmatmul.bf16.gmra.mxu0 %v2128
        %v5204 = vpop.f32.mrf.mxu0
        %v5205 = vadd.f32 %v5156, %v5204
        %v5206 = vpop.f32.mrf.mxu0
        %v5207 = vadd.f32 %v5158, %v5206
        %5208 = vmatmul.bf16.gmra.mxu0 %v2136
        %v5209 = vpop.f32.mrf.mxu0
        %v5210 = vadd.f32 %v5161, %v5209
        %v5211 = vpop.f32.mrf.mxu0
        %v5212 = vadd.f32 %v5163, %v5211
        %5213 = vdwg.mxu0
        %5214 = vmatpush.bf16.msra.mxu0 %v4970
        %5215 = vmatpush.bf16.msra.mxu0 %v4969
        %5216 = vmatpush.bf16.msra.mxu0 %v4968
        %5217 = vmatpush.bf16.msra.mxu0 %v4967
        %5218 = vmatpush.bf16.msra.mxu0 %v4966
        %5219 = vmatpush.bf16.msra.mxu0 %v4965
        %5220 = vmatpush.bf16.msra.mxu0 %v4964
        %5221 = vmatpush.bf16.msra.mxu0 %v4963
        %5222 = vmatmul.bf16.gmra.mxu0 %v2081
        %v5223 = vpop.f32.mrf.mxu0
        %v5224 = vadd.f32 %v5175, %v5223
        %v5225 = vpop.f32.mrf.mxu0
        %v5226 = vadd.f32 %v5177, %v5225
        %5227 = vmatmul.bf16.gmra.mxu0 %v2089
        %v5228 = vpop.f32.mrf.mxu0
        %v5229 = vadd.f32 %v5180, %v5228
        %v5230 = vpop.f32.mrf.mxu0
        %v5231 = vadd.f32 %v5182, %v5230
        %5232 = vmatmul.bf16.gmra.mxu0 %v2097
        %v5233 = vpop.f32.mrf.mxu0
        %v5234 = vadd.f32 %v5185, %v5233
        %v5235 = vpop.f32.mrf.mxu0
        %v5236 = vadd.f32 %v5187, %v5235
        %5237 = vmatmul.bf16.gmra.mxu0 %v2105
        %v5238 = vpop.f32.mrf.mxu0
        %v5239 = vadd.f32 %v5190, %v5238
        %v5240 = vpop.f32.mrf.mxu0
        %v5241 = vadd.f32 %v5192, %v5240
        %5242 = vmatmul.bf16.gmra.mxu0 %v2113
        %v5243 = vpop.f32.mrf.mxu0
        %v5244 = vadd.f32 %v5195, %v5243
        %v5245 = vpop.f32.mrf.mxu0
        %v5246 = vadd.f32 %v5197, %v5245
        %5247 = vmatmul.bf16.gmra.mxu0 %v2121
        %v5248 = vpop.f32.mrf.mxu0
        %v5249 = vadd.f32 %v5200, %v5248
        %v5250 = vpop.f32.mrf.mxu0
        %v5251 = vadd.f32 %v5202, %v5250
        %5252 = vmatmul.bf16.gmra.mxu0 %v2129
        %v5253 = vpop.f32.mrf.mxu0
        %v5254 = vadd.f32 %v5205, %v5253
        %v5255 = vpop.f32.mrf.mxu0
        %v5256 = vadd.f32 %v5207, %v5255
        %5257 = vmatmul.bf16.gmra.mxu0 %v2137
        %v5258 = vpop.f32.mrf.mxu0
        %v5259 = vadd.f32 %v5210, %v5258
        %v5260 = vpop.f32.mrf.mxu0
        %v5261 = vadd.f32 %v5212, %v5260
        %5262 = vdwg.mxu0
        %5263 = vmatpush.bf16.msra.mxu0 %v4978
        %5264 = vmatpush.bf16.msra.mxu0 %v4977
        %5265 = vmatpush.bf16.msra.mxu0 %v4976
        %5266 = vmatpush.bf16.msra.mxu0 %v4975
        %5267 = vmatpush.bf16.msra.mxu0 %v4974
        %5268 = vmatpush.bf16.msra.mxu0 %v4973
        %5269 = vmatpush.bf16.msra.mxu0 %v4972
        %5270 = vmatpush.bf16.msra.mxu0 %v4971
        %5271 = vmatmul.bf16.gmra.mxu0 %v2082
        %v5272 = vpop.f32.mrf.mxu0
        %v5273 = vadd.f32 %v5224, %v5272
        %v5274 = vpop.f32.mrf.mxu0
        %v5275 = vadd.f32 %v5226, %v5274
        %5276 = vmatmul.bf16.gmra.mxu0 %v2090
        %v5277 = vpop.f32.mrf.mxu0
        %v5278 = vadd.f32 %v5229, %v5277
        %v5279 = vpop.f32.mrf.mxu0
        %v5280 = vadd.f32 %v5231, %v5279
        %5281 = vmatmul.bf16.gmra.mxu0 %v2098
        %v5282 = vpop.f32.mrf.mxu0
        %v5283 = vadd.f32 %v5234, %v5282
        %v5284 = vpop.f32.mrf.mxu0
        %v5285 = vadd.f32 %v5236, %v5284
        %5286 = vmatmul.bf16.gmra.mxu0 %v2106
        %v5287 = vpop.f32.mrf.mxu0
        %v5288 = vadd.f32 %v5239, %v5287
        %v5289 = vpop.f32.mrf.mxu0
        %v5290 = vadd.f32 %v5241, %v5289
        %5291 = vmatmul.bf16.gmra.mxu0 %v2114
        %v5292 = vpop.f32.mrf.mxu0
        %v5293 = vadd.f32 %v5244, %v5292
        %v5294 = vpop.f32.mrf.mxu0
        %v5295 = vadd.f32 %v5246, %v5294
        %5296 = vmatmul.bf16.gmra.mxu0 %v2122
        %v5297 = vpop.f32.mrf.mxu0
        %v5298 = vadd.f32 %v5249, %v5297
        %v5299 = vpop.f32.mrf.mxu0
        %v5300 = vadd.f32 %v5251, %v5299
        %5301 = vmatmul.bf16.gmra.mxu0 %v2130
        %v5302 = vpop.f32.mrf.mxu0
        %v5303 = vadd.f32 %v5254, %v5302
        %v5304 = vpop.f32.mrf.mxu0
        %v5305 = vadd.f32 %v5256, %v5304
        %5306 = vmatmul.bf16.gmra.mxu0 %v2138
        %v5307 = vpop.f32.mrf.mxu0
        %v5308 = vadd.f32 %v5259, %v5307
        %v5309 = vpop.f32.mrf.mxu0
        %v5310 = vadd.f32 %v5261, %v5309
        %5311 = vdwg.mxu0
        %5312 = vmatpush.bf16.msra.mxu0 %v4986
        %5313 = vmatpush.bf16.msra.mxu0 %v4985
        %5314 = vmatpush.bf16.msra.mxu0 %v4984
        %5315 = vmatpush.bf16.msra.mxu0 %v4983
        %5316 = vmatpush.bf16.msra.mxu0 %v4982
        %5317 = vmatpush.bf16.msra.mxu0 %v4981
        %5318 = vmatpush.bf16.msra.mxu0 %v4980
        %5319 = vmatpush.bf16.msra.mxu0 %v4979
        %5320 = vmatmul.bf16.gmra.mxu0 %v2083
        %v5321 = vpop.f32.mrf.mxu0
        %v5322 = vadd.f32 %v5273, %v5321
        %v5323 = vpop.f32.mrf.mxu0
        %v5324 = vadd.f32 %v5275, %v5323
        %5325 = vmatmul.bf16.gmra.mxu0 %v2091
        %v5326 = vpop.f32.mrf.mxu0
        %v5327 = vadd.f32 %v5278, %v5326
        %v5328 = vpop.f32.mrf.mxu0
        %v5329 = vadd.f32 %v5280, %v5328
        %5330 = vmatmul.bf16.gmra.mxu0 %v2099
        %v5331 = vpop.f32.mrf.mxu0
        %v5332 = vadd.f32 %v5283, %v5331
        %v5333 = vpop.f32.mrf.mxu0
        %v5334 = vadd.f32 %v5285, %v5333
        %5335 = vmatmul.bf16.gmra.mxu0 %v2107
        %v5336 = vpop.f32.mrf.mxu0
        %v5337 = vadd.f32 %v5288, %v5336
        %v5338 = vpop.f32.mrf.mxu0
        %v5339 = vadd.f32 %v5290, %v5338
        %5340 = vmatmul.bf16.gmra.mxu0 %v2115
        %v5341 = vpop.f32.mrf.mxu0
        %v5342 = vadd.f32 %v5293, %v5341
        %v5343 = vpop.f32.mrf.mxu0
        %v5344 = vadd.f32 %v5295, %v5343
        %5345 = vmatmul.bf16.gmra.mxu0 %v2123
        %v5346 = vpop.f32.mrf.mxu0
        %v5347 = vadd.f32 %v5298, %v5346
        %v5348 = vpop.f32.mrf.mxu0
        %v5349 = vadd.f32 %v5300, %v5348
        %5350 = vmatmul.bf16.gmra.mxu0 %v2131
        %v5351 = vpop.f32.mrf.mxu0
        %v5352 = vadd.f32 %v5303, %v5351
        %v5353 = vpop.f32.mrf.mxu0
        %v5354 = vadd.f32 %v5305, %v5353
        %5355 = vmatmul.bf16.gmra.mxu0 %v2139
        %v5356 = vpop.f32.mrf.mxu0
        %v5357 = vadd.f32 %v5308, %v5356
        %v5358 = vpop.f32.mrf.mxu0
        %v5359 = vadd.f32 %v5310, %v5358
        %5360 = vdwg.mxu0
        %5361 = vmatpush.bf16.msra.mxu0 %v4994
        %5362 = vmatpush.bf16.msra.mxu0 %v4993
        %5363 = vmatpush.bf16.msra.mxu0 %v4992
        %5364 = vmatpush.bf16.msra.mxu0 %v4991
        %5365 = vmatpush.bf16.msra.mxu0 %v4990
        %5366 = vmatpush.bf16.msra.mxu0 %v4989
        %5367 = vmatpush.bf16.msra.mxu0 %v4988
        %5368 = vmatpush.bf16.msra.mxu0 %v4987
        %5369 = vmatmul.bf16.gmra.mxu0 %v2084
        %v5370 = vpop.f32.mrf.mxu0
        %v5371 = vadd.f32 %v5322, %v5370
        %v5372 = vpop.f32.mrf.mxu0
        %v5373 = vadd.f32 %v5324, %v5372
        %5374 = vmatmul.bf16.gmra.mxu0 %v2092
        %v5375 = vpop.f32.mrf.mxu0
        %v5376 = vadd.f32 %v5327, %v5375
        %v5377 = vpop.f32.mrf.mxu0
        %v5378 = vadd.f32 %v5329, %v5377
        %5379 = vmatmul.bf16.gmra.mxu0 %v2100
        %v5380 = vpop.f32.mrf.mxu0
        %v5381 = vadd.f32 %v5332, %v5380
        %v5382 = vpop.f32.mrf.mxu0
        %v5383 = vadd.f32 %v5334, %v5382
        %5384 = vmatmul.bf16.gmra.mxu0 %v2108
        %v5385 = vpop.f32.mrf.mxu0
        %v5386 = vadd.f32 %v5337, %v5385
        %v5387 = vpop.f32.mrf.mxu0
        %v5388 = vadd.f32 %v5339, %v5387
        %5389 = vmatmul.bf16.gmra.mxu0 %v2116
        %v5390 = vpop.f32.mrf.mxu0
        %v5391 = vadd.f32 %v5342, %v5390
        %v5392 = vpop.f32.mrf.mxu0
        %v5393 = vadd.f32 %v5344, %v5392
        %5394 = vmatmul.bf16.gmra.mxu0 %v2124
        %v5395 = vpop.f32.mrf.mxu0
        %v5396 = vadd.f32 %v5347, %v5395
        %v5397 = vpop.f32.mrf.mxu0
        %v5398 = vadd.f32 %v5349, %v5397
        %5399 = vmatmul.bf16.gmra.mxu0 %v2132
        %v5400 = vpop.f32.mrf.mxu0
        %v5401 = vadd.f32 %v5352, %v5400
        %v5402 = vpop.f32.mrf.mxu0
        %v5403 = vadd.f32 %v5354, %v5402
        %5404 = vmatmul.bf16.gmra.mxu0 %v2140
        %v5405 = vpop.f32.mrf.mxu0
        %v5406 = vadd.f32 %v5357, %v5405
        %v5407 = vpop.f32.mrf.mxu0
        %v5408 = vadd.f32 %v5359, %v5407
        %5409 = vdwg.mxu0
        %5410 = vmatpush.bf16.msra.mxu0 %v5002
        %5411 = vmatpush.bf16.msra.mxu0 %v5001
        %5412 = vmatpush.bf16.msra.mxu0 %v5000
        %5413 = vmatpush.bf16.msra.mxu0 %v4999
        %5414 = vmatpush.bf16.msra.mxu0 %v4998
        %5415 = vmatpush.bf16.msra.mxu0 %v4997
        %5416 = vmatpush.bf16.msra.mxu0 %v4996
        %5417 = vmatpush.bf16.msra.mxu0 %v4995
        %5418 = vmatmul.bf16.gmra.mxu0 %v2085
        %v5419 = vpop.f32.mrf.mxu0
        %v5420 = vadd.f32 %v5371, %v5419
        %v5421 = vpop.f32.mrf.mxu0
        %v5422 = vadd.f32 %v5373, %v5421
        %5423 = vmatmul.bf16.gmra.mxu0 %v2093
        %v5424 = vpop.f32.mrf.mxu0
        %v5425 = vadd.f32 %v5376, %v5424
        %v5426 = vpop.f32.mrf.mxu0
        %v5427 = vadd.f32 %v5378, %v5426
        %5428 = vmatmul.bf16.gmra.mxu0 %v2101
        %v5429 = vpop.f32.mrf.mxu0
        %v5430 = vadd.f32 %v5381, %v5429
        %v5431 = vpop.f32.mrf.mxu0
        %v5432 = vadd.f32 %v5383, %v5431
        %5433 = vmatmul.bf16.gmra.mxu0 %v2109
        %v5434 = vpop.f32.mrf.mxu0
        %v5435 = vadd.f32 %v5386, %v5434
        %v5436 = vpop.f32.mrf.mxu0
        %v5437 = vadd.f32 %v5388, %v5436
        %5438 = vmatmul.bf16.gmra.mxu0 %v2117
        %v5439 = vpop.f32.mrf.mxu0
        %v5440 = vadd.f32 %v5391, %v5439
        %v5441 = vpop.f32.mrf.mxu0
        %v5442 = vadd.f32 %v5393, %v5441
        %5443 = vmatmul.bf16.gmra.mxu0 %v2125
        %v5444 = vpop.f32.mrf.mxu0
        %v5445 = vadd.f32 %v5396, %v5444
        %v5446 = vpop.f32.mrf.mxu0
        %v5447 = vadd.f32 %v5398, %v5446
        %5448 = vmatmul.bf16.gmra.mxu0 %v2133
        %v5449 = vpop.f32.mrf.mxu0
        %v5450 = vadd.f32 %v5401, %v5449
        %v5451 = vpop.f32.mrf.mxu0
        %v5452 = vadd.f32 %v5403, %v5451
        %5453 = vmatmul.bf16.gmra.mxu0 %v2141
        %v5454 = vpop.f32.mrf.mxu0
        %v5455 = vadd.f32 %v5406, %v5454
        %v5456 = vpop.f32.mrf.mxu0
        %v5457 = vadd.f32 %v5408, %v5456
        %5458 = vdwg.mxu0
        %v5459 = vld [vmem:[%s11] sm:$0x1]
        %v5461 = vperm.slane %v5459, 0
        %v5463 = vmul.f32 %v5420, %v5461
        %v5464 = vmul.f32 %v5422, %v5461
        %v5465 = vmul.f32 %v5425, %v5461
        %v5466 = vmul.f32 %v5427, %v5461
        %v5467 = vmul.f32 %v5430, %v5461
        %v5468 = vmul.f32 %v5432, %v5461
        %v5469 = vmul.f32 %v5435, %v5461
        %v5470 = vmul.f32 %v5437, %v5461
        %v5471 = vmul.f32 %v5440, %v5461
        %v5472 = vmul.f32 %v5442, %v5461
        %v5473 = vmul.f32 %v5445, %v5461
        %v5474 = vmul.f32 %v5447, %v5461
        %v5475 = vmul.f32 %v5450, %v5461
        %v5476 = vmul.f32 %v5452, %v5461
        %v5477 = vmul.f32 %v5455, %v5461
        %v5478 = vmul.f32 %v5457, %v5461
        %v5479 = vld [vmem:[%s12] sm:$0x1]
        %v5481 = vperm.slane %v5479, 0
        %v5483 = vadd.f32 %v5463, %v5481
        %v5484 = vadd.f32 %v5464, %v5481
        %v5485 = vadd.f32 %v5465, %v5481
        %v5486 = vadd.f32 %v5466, %v5481
        %v5487 = vadd.f32 %v5467, %v5481
        %v5488 = vadd.f32 %v5468, %v5481
        %v5489 = vadd.f32 %v5469, %v5481
        %v5490 = vadd.f32 %v5470, %v5481
        %v5491 = vadd.f32 %v5471, %v5481
        %v5492 = vadd.f32 %v5472, %v5481
        %v5493 = vadd.f32 %v5473, %v5481
        %v5494 = vadd.f32 %v5474, %v5481
        %v5495 = vadd.f32 %v5475, %v5481
        %v5496 = vadd.f32 %v5476, %v5481
        %v5497 = vadd.f32 %v5477, %v5481
        %v5498 = vadd.f32 %v5478, %v5481
        %v5499 = vmax.f32 %v5483, 0.0
        %v5500 = vmax.f32 %v5484, 0.0
        %v5501 = vmax.f32 %v5485, 0.0
        %v5502 = vmax.f32 %v5486, 0.0
        %v5503 = vmax.f32 %v5487, 0.0
        %v5504 = vmax.f32 %v5488, 0.0
        %v5505 = vmax.f32 %v5489, 0.0
        %v5506 = vmax.f32 %v5490, 0.0
        %v5507 = vmax.f32 %v5491, 0.0
        %v5508 = vmax.f32 %v5492, 0.0
        %v5509 = vmax.f32 %v5493, 0.0
        %v5510 = vmax.f32 %v5494, 0.0
        %v5511 = vmax.f32 %v5495, 0.0
        %v5512 = vmax.f32 %v5496, 0.0
        %v5513 = vmax.f32 %v5497, 0.0
        %v5514 = vmax.f32 %v5498, 0.0
        %v5515 = vpack.c.bf16 %v5499, %v5499
        %v5516 = vpack.c.bf16 %v5500, %v5500
        %v5517 = vpack.c.bf16 %v5501, %v5501
        %v5518 = vpack.c.bf16 %v5502, %v5502
        %v5519 = vpack.c.bf16 %v5503, %v5503
        %v5520 = vpack.c.bf16 %v5504, %v5504
        %v5521 = vpack.c.bf16 %v5505, %v5505
        %v5522 = vpack.c.bf16 %v5506, %v5506
        %v5523 = vpack.c.bf16 %v5507, %v5507
        %v5524 = vpack.c.bf16 %v5508, %v5508
        %v5525 = vpack.c.bf16 %v5509, %v5509
        %v5526 = vpack.c.bf16 %v5510, %v5510
        %v5527 = vpack.c.bf16 %v5511, %v5511
        %v5528 = vpack.c.bf16 %v5512, %v5512
        %v5529 = vpack.c.bf16 %v5513, %v5513
        %v5530 = vpack.c.bf16 %v5514, %v5514
        %vm5531 = vcmask 519168
        %5532 = vst.msk [vmem:[%s635] sm:$0xf] %vm5531, %v5515
        %5533 = vst.msk [vmem:[%s635 + $0x4] sm:$0xf] %vm5531, %v5516
        %5534 = vst.msk [vmem:[%s635 + $0x8] sm:$0xf] %vm5531, %v5517
        %5535 = vst.msk [vmem:[%s635 + $0xc] sm:$0xf] %vm5531, %v5518
        %5536 = vst.msk [vmem:[%s635 + $0x10] sm:$0xf] %vm5531, %v5519
        %5537 = vst.msk [vmem:[%s635 + $0x14] sm:$0xf] %vm5531, %v5520
        %5538 = vst.msk [vmem:[%s635 + $0x18] sm:$0xf] %vm5531, %v5521
        %5539 = vst.msk [vmem:[%s635 + $0x1c] sm:$0xf] %vm5531, %v5522
        %5540 = vst.msk [vmem:[%s635 + $0x20] sm:$0xf] %vm5531, %v5523
        %5541 = vst.msk [vmem:[%s635 + $0x24] sm:$0xf] %vm5531, %v5524
        %5542 = vst.msk [vmem:[%s635 + $0x28] sm:$0xf] %vm5531, %v5525
        %5543 = vst.msk [vmem:[%s635 + $0x2c] sm:$0xf] %vm5531, %v5526
        %5544 = vst.msk [vmem:[%s635 + $0x30] sm:$0xf] %vm5531, %v5527
        %5545 = vst.msk [vmem:[%s635 + $0x34] sm:$0xf] %vm5531, %v5528
        %5546 = vst.msk [vmem:[%s635 + $0x38] sm:$0xf] %vm5531, %v5529
        %5547 = vst.msk [vmem:[%s635 + $0x3c] sm:$0xf] %vm5531, %v5530
        %s5548 = smul.u32 16, %s29
        %p5549 = scmp.lt.s32.totalorder %s28, 1
        %s5550 = scalar_select %p5549, %s28, 1
        %p5551 = scmp.lt.s32.totalorder %s5548, 31
        %s5552 = scalar_select %p5551, %s5548, 31
        %s5553 = smul.addr %s5550, 32
        %s5554 = sadd.s32 %s5552, %s5553
        %s5555 = smul.addr %s5554, 4
        %s5556 = scalar_lea.vmem %s13, %s5555
        // Predicated region
        $region114: #{tpu_custom_call.1} parent=108 // pred_check
          %p5557 = pneg %p336
        $region115: #{tpu_custom_call.1} parent=108 // pred_check_branch
          %5559 = sbr.rel (%p5557) target = $region117
        $region116: #{tpu_custom_call.1} parent=108 // pred_region
          %s5560 = smul.u32 16, %s29
        $region117: #{tpu_custom_call.1} parent=108 // pred_fallthru
          _
      $region109: #{tpu_custom_call.1} parent=5 // pred_fallthru
        _
      %p5561 = scmp.le.s32.totalorder 2, %s19
      // Predicated region
      $region118: #{tpu_custom_call.1} parent=5 // pred_check
        %p5562 = pneg %p5561
      $region119: #{tpu_custom_call.1} parent=5 // pred_check_branch
        %5564 = sbr.rel (%p5562) target = $region121
      $region120: #{tpu_custom_call.1} parent=5 // pred_region
        %s5565 = ssub.s32 %s19, 2
        // Predicated region
        $region122: #{tpu_custom_call.1} parent=120 // pred_check
          %p5566 = pneg %p342
        $region123: #{tpu_custom_call.1} parent=120 // pred_check_branch
          %5568 = sbr.rel (%p5566) target = $region125
        $region124: #{tpu_custom_call.1} parent=120 // pred_region
          %s5569 = smul.u32 16, %s31
          %p5570 = scmp.lt.s32.totalorder %s30, 1
          %s5571 = scalar_select %p5570, %s30, 1
          %p5572 = scmp.lt.s32.totalorder %s5569, 31
          %s5573 = scalar_select %p5572, %s5569, 31
          %s5574 = smul.addr %s5571, 32
          %s5575 = sadd.s32 %s5573, %s5574
          %s5576 = smul.addr %s5575, 4
          %s5577 = scalar_lea.vmem %s13, %s5576
        $region125: #{tpu_custom_call.1} parent=120 // pred_fallthru
          _
      $region121: #{tpu_custom_call.1} parent=5 // pred_fallthru
        _
    $region6: #{tpu_custom_call.1} parent=1 // loop_footer
      %s23 = sadd.s32 1, %s19
    $region7: #{tpu_custom_call.1} parent=1 // loop_footer_branch
      %18 = sbr.rel target = $region3
    $region8: #{tpu_custom_call.1} parent=1 // loop_exit
      _

</llo_original>
